<compile_context>
chip_gen: v5e
topology: v5e:2x2
jax: 0.10.0
libtpu: 0.0.40
codegen_flags: <defaults>
</compile_context>

<pallas_src>
from functools import partial

import numpy as np
import jax
import jax.numpy as jnp
from jax.experimental import pallas as pl
from jax.experimental.pallas import tpu as pltpu

MATMUL_DTYPE = jnp.bfloat16   # MXU operand dtype; accumulation + elementwise stay f32
BN_EPS = 1e-5


# ----------------------------------------------------------------------------- kernel
def fused_encoder_kernel(*refs, block_meta, inv_n):
    """Whole Encoder forward in one kernel (all activations stay in VMEM).

    refs = [x] + [wc_b, pp_b, bavg_b per conv block] + [w1, b1, w2, b2, w3, b3] + [out]

      x      : (N, Cin*H*W) bf16, per-sample NCHW-flatten order (c, h, w)
      wc_b   : (Din_b, ps*M_b) bf16 circulant conv weight; output columns ordered
               (pool_row r, cout, hp, w); M_b = Cout*Hp*W is a multiple of 128
      pp_b   : (3, M_b) f32 = [conv bias; BN gamma; BN beta], lane order (cout, hp, w)
      bavg_b : (M_b, M_b) f32 same-channel indicator / (Hp*W): one matmul both reduces
               per channel and broadcasts back to lanes (BatchNorm statistics)
      w1/b1  : fused first head layer (final_mu | final_logsigma concat on output dim)
      w2/b2, w3/b3 : block-diagonal layers 2/3 (the two heads never mix)
      out    : (N, 2*latent) f32 = [mu | logsigma]
    """
    out_ref = refs[-1]
    a = refs[0][...]                                              # (N, Din0) bf16
    idx = 1
    for (ps, M) in block_meta:
        wc_ref, pp_ref, bavg_ref = refs[idx], refs[idx + 1], refs[idx + 2]
        idx += 3

        # Conv2d (circular padding) == ONE MXU matmul against the circulant weight.
        y = jnp.dot(a, wc_ref[...], preferred_element_type=jnp.float32)   # (N, ps*M)

        pp = pp_ref[...]
        bias, gamma, beta = pp[0:1, :], pp[1:2, :], pp[2:3, :]

        # bias + ReLU + AvgPool2d([ps, 1]): pool row r lives in lanes [r*M, (r+1)*M).
        acc = jnp.maximum(y[:, 0:M] + bias, 0.0)
        for r in range(1, ps):
            acc = acc + jnp.maximum(y[:, r * M:(r + 1) * M] + bias, 0.0)
        pooled = acc * (1.0 / ps)                                          # (N, M) f32

        # BatchNorm2d (training-mode batch stats, biased variance), all in f32.
        # TODO(synk): running_mean/running_var buffer updates not tracked.
        bavg = bavg_ref[...]
        mean_l = jnp.dot(jnp.sum(pooled, axis=0, keepdims=True), bavg,
                         preferred_element_type=jnp.float32) * inv_n       # (1, M)
        cent = pooled - mean_l
        var_l = jnp.dot(jnp.sum(cent * cent, axis=0, keepdims=True), bavg,
                        preferred_element_type=jnp.float32) * inv_n        # (1, M)
        a = (cent * jax.lax.rsqrt(var_l + BN_EPS) * gamma + beta).astype(MATMUL_DTYPE)

    # Fused final_mu / final_logsigma heads (layers 2/3 block-diagonal).
    w1, b1, w2, b2, w3, b3 = refs[idx:idx + 6]
    h = jnp.maximum(jnp.dot(a, w1[...], preferred_element_type=jnp.float32) + b1[...], 0.0)
    h = jnp.maximum(jnp.dot(h.astype(MATMUL_DTYPE), w2[...],
                            preferred_element_type=jnp.float32) + b2[...], 0.0)
    out_ref[...] = jnp.dot(h.astype(MATMUL_DTYPE), w3[...],
                           preferred_element_type=jnp.float32) + b3[...]


# ----------------------------------------------------------------------------- forward
def encoder_forward(prepped, x):
    """Jittable forward: one reshape/cast of x, one pallas_call, two output slices."""
    N = x.shape[0]
    x_flat = x.reshape(N, -1).astype(MATMUL_DTYPE)    # NCHW flatten == (c, h, w) order
    args = [x_flat]
    block_meta = []
    for blk in prepped["blocks"]:
        M = blk["pp"].shape[1]
        ps = blk["wc"].shape[1] // M
        block_meta.append((ps, M))
        args += [blk["wc"], blk["pp"], blk["bavg"]]
    args += [prepped["w1"], prepped["b1"], prepped["w2"], prepped["b2"],
             prepped["w3"], prepped["b3"]]
    two_l = prepped["w3"].shape[1]

    out = pl.pallas_call(
        partial(fused_encoder_kernel, block_meta=tuple(block_meta), inv_n=1.0 / float(N)),
        out_shape=jax.ShapeDtypeStruct((N, two_l), jnp.float32),
        in_specs=[pl.BlockSpec(memory_space=pltpu.MemorySpace.VMEM)] * len(args),
        out_specs=pl.BlockSpec(memory_space=pltpu.MemorySpace.VMEM),
    )(*args)
    L = two_l // 2
    return out[:, :L], out[:, L:]


# ----------------------------------------------------------------------------- params
def init_encoder_params(key, input_channels, input_size, hidden_channels,
                        latent_dimension, pooling_size, kernel_size):
    """Raw params in PyTorch-equivalent layouts (Conv2d (O,I,K,K); Linear stored (in,out))."""
    keys = iter(jax.random.split(key, 64))
    raw = {"conv_blocks": [], "mu": [], "logsigma": []}
    cin = input_channels
    for cout in hidden_channels:
        w = 0.1 * jax.random.normal(next(keys), (cout, cin, kernel_size, kernel_size),
                                    jnp.float32)
        b = 0.1 * jax.random.normal(next(keys), (cout,), jnp.float32)
        gamma = 1.0 + 0.1 * jax.random.normal(next(keys), (cout,), jnp.float32)
        beta = 0.1 * jax.random.normal(next(keys), (cout,), jnp.float32)
        raw["conv_blocks"].append((w, b, gamma, beta))
        cin = cout

    flat_mu = hidden_channels[-1] * int(
        input_size[0] * input_size[1] / pooling_size ** len(hidden_channels))
    flat_ls = hidden_channels[-1] * int(
        input_size[0] * input_size[1] * input_channels / pooling_size ** len(hidden_channels))

    def make_mlp(dims):
        layers = []
        for din, dout in zip(dims[:-1], dims[1:]):
            w = jax.random.normal(next(keys), (din, dout), jnp.float32) / jnp.sqrt(float(din))
            b = 0.1 * jax.random.normal(next(keys), (dout,), jnp.float32)
            layers.append((w, b))
        return layers

    raw["mu"] = make_mlp([flat_mu, 100, 50, latent_dimension])
    raw["logsigma"] = make_mlp([flat_ls, 100, 50, latent_dimension])
    return raw


def prepare_encoder_params(raw, *, input_size, padding, kernel_size, pooling_size):
    """One-time weight formatting, hoisted out of the jitted forward."""
    K, pad, ps = kernel_size, padding, pooling_size
    blocks = []
    hin, win = int(input_size[0]), int(input_size[1])
    for (w, b, gamma, beta) in raw["conv_blocks"]:
        w_np = np.asarray(w, np.float32)
        cout, cin = w_np.shape[0], w_np.shape[1]
        hout = hin + 2 * pad - K + 1
        wout = win + 2 * pad - K + 1
        hp = hout // ps

        # One-hot circular-shift matrices: sh[k][h, ho] = 1 iff h == (ho + k - pad) % hin.
        sh = np.zeros((K, hin, hout), np.float32)
        sw = np.zeros((K, win, wout), np.float32)
        for k in range(K):
            sh[k, (np.arange(hout) + k - pad) % hin, np.arange(hout)] = 1.0
            sw[k, (np.arange(wout) + k - pad) % win, np.arange(wout)] = 1.0

        # Circulant conv weight: rows = input features in NCHW-flatten order (c, h, w),
        # cols = (pool_row r, cout, hp, wout).
        wfull = np.einsum("ocab,ahH,bwW->chwoHW", w_np, sh, sw, optimize=True)
        wfull = wfull[:, :, :, :, :hp * ps, :]
        wfull = wfull.reshape(cin, hin, win, cout, hp, ps, wout)
        wfull = wfull.transpose(0, 1, 2, 5, 3, 4, 6)            # (c, h, w, r, o, hp, W)
        M = cout * hp * wout
        wc = wfull.reshape(cin * hin * win, ps * M)

        rep = hp * wout
        pp = np.stack([np.repeat(np.asarray(b, np.float32), rep),
                       np.repeat(np.asarray(gamma, np.float32), rep),
                       np.repeat(np.asarray(beta, np.float32), rep)], axis=0)   # (3, M)

        ch = np.repeat(np.arange(cout), rep)
        bavg = (ch[:, None] == ch[None, :]).astype(np.float32) / float(rep)     # (M, M)

        blocks.append({"wc": jnp.asarray(wc, MATMUL_DTYPE),
                       "pp": jnp.asarray(pp, jnp.float32),
                       "bavg": jnp.asarray(bavg, jnp.float32)})
        hin, win = hp, wout

    (w1m, b1m), (w2m, b2m), (w3m, b3m) = raw["mu"]
    (w1l, b1l), (w2l, b2l), (w3l, b3l) = raw["logsigma"]
    assert w1m.shape[0] == w1l.shape[0], (
        "fused heads need flat_mu == flat_logsigma (requires input_channels == 1)")

    def block_diag(a, b_):
        a = np.asarray(a, np.float32); b_ = np.asarray(b_, np.float32)
        out = np.zeros((a.shape[0] + b_.shape[0], a.shape[1] + b_.shape[1]), np.float32)
        out[:a.shape[0], :a.shape[1]] = a
        out[a.shape[0]:, a.shape[1]:] = b_
        return out

    w1 = np.concatenate([np.asarray(w1m, np.float32), np.asarray(w1l, np.float32)], axis=1)
    w2 = block_diag(w2m, w2l)
    w3 = block_diag(w3m, w3l)
    b1 = np.concatenate([np.asarray(b1m, np.float32), np.asarray(b1l, np.float32)])[None, :]
    b2 = np.concatenate([np.asarray(b2m, np.float32), np.asarray(b2l, np.float32)])[None, :]
    b3 = np.concatenate([np.asarray(b3m, np.float32), np.asarray(b3l, np.float32)])[None, :]

    return {"blocks": blocks,
            "w1": jnp.asarray(w1, MATMUL_DTYPE), "b1": jnp.asarray(b1, jnp.float32),
            "w2": jnp.asarray(w2, MATMUL_DTYPE), "b2": jnp.asarray(b2, jnp.float32),
            "w3": jnp.asarray(w3, MATMUL_DTYPE), "b3": jnp.asarray(b3, jnp.float32)}


# ----------------------------------------------------------------------------- reference
def encoder_reference(raw, x, *, padding, pooling_size):
    """Pure-JAX f32 reference of the PyTorch forward (train-mode BatchNorm)."""
    act = x
    for (w, b, gamma, beta) in raw["conv_blocks"]:
        xp = jnp.pad(act, ((0, 0), (0, 0), (padding, padding), (padding, padding)),
                     mode="wrap")
        y = jax.lax.conv_general_dilated(xp, w, (1, 1), "VALID",
                                         dimension_numbers=("NCHW", "OIHW", "NCHW"))
        y = jnp.maximum(y + b[None, :, None, None], 0.0)
        n_, c_, h_, w_ = y.shape
        hp = h_ // pooling_size
        y = y[:, :, :hp * pooling_size, :].reshape(n_, c_, hp, pooling_size, w_).mean(axis=3)
        mean = y.mean(axis=(0, 2, 3), keepdims=True)
        var = ((y - mean) ** 2).mean(axis=(0, 2, 3), keepdims=True)
        act = ((y - mean) * jax.lax.rsqrt(var + BN_EPS)
               * gamma[None, :, None, None] + beta[None, :, None, None])
    flat = act.reshape(act.shape[0], -1)

    def mlp(layers, h):
        (l1w, l1b), (l2w, l2b), (l3w, l3b) = layers
        h = jnp.maximum(h @ l1w + l1b, 0.0)
        h = jnp.maximum(h @ l2w + l2b, 0.0)
        return h @ l3w + l3b

    return mlp(raw["mu"], flat), mlp(raw["logsigma"], flat)


# ----------------------------------------------------------------------------- main
if __name__ == "__main__":
    # final_logsigma's first Linear only has a consistent input dim when
    # input_channels == 1 (the PyTorch module's shape arithmetic requires it).
    input_channels = 1
    input_size = (16, 16)
    hidden_channels = [4, 8]
    latent_dimension = 4
    padding = 1
    kernel_size = 3
    pooling_size = 2
    # activation = 'ReLU'  (baked into the kernel as jnp.maximum(x, 0))

    key = jax.random.PRNGKey(0)
    pkey, xkey = jax.random.split(key)
    raw = init_encoder_params(pkey, input_channels, input_size, hidden_channels,
                              latent_dimension, pooling_size, kernel_size)
    prepped = prepare_encoder_params(raw, input_size=input_size, padding=padding,
                                     kernel_size=kernel_size, pooling_size=pooling_size)
    x = jax.random.normal(
        xkey, (2, input_channels, input_size[0], input_size[1]), jnp.float32)

    fwd = jax.jit(encoder_forward)
    x_mu, x_logstd = fwd(prepped, x)
    jax.block_until_ready((x_mu, x_logstd))

    assert x_mu.shape == (2, latent_dimension), x_mu.shape
    assert x_logstd.shape == (2, latent_dimension), x_logstd.shape
    assert jnp.all(jnp.isfinite(x_mu)) and jnp.all(jnp.isfinite(x_logstd))

    # Correctness vs. a pure-JAX f32 reference (bf16 MXU operands -> loose tolerance).
    ref_mu, ref_ls = encoder_reference(raw, x, padding=padding, pooling_size=pooling_size)
    assert jnp.allclose(x_mu, ref_mu, rtol=0.1, atol=0.1), (
        "mu mismatch, max abs err = %f" % float(jnp.max(jnp.abs(x_mu - ref_mu))))
    assert jnp.allclose(x_logstd, ref_ls, rtol=0.1, atol=0.1), (
        "logsigma mismatch, max abs err = %f" % float(jnp.max(jnp.abs(x_logstd - ref_ls))))

    print("KERNEL_OK")
</pallas_src>

<mosaic_0001>
module attributes {stable_mosaic.version = 11 : i64} {
  func.func @fused_encoder_kernel(%arg0: memref<2x256xbf16, #tpu.memory_space<vmem>>, %arg1: memref<256x1024xbf16, #tpu.memory_space<vmem>>, %arg2: memref<3x512xf32, #tpu.memory_space<vmem>>, %arg3: memref<512x512xf32, #tpu.memory_space<vmem>>, %arg4: memref<512x1024xbf16, #tpu.memory_space<vmem>>, %arg5: memref<3x512xf32, #tpu.memory_space<vmem>>, %arg6: memref<512x512xf32, #tpu.memory_space<vmem>>, %arg7: memref<512x200xbf16, #tpu.memory_space<vmem>>, %arg8: memref<1x200xf32, #tpu.memory_space<vmem>>, %arg9: memref<200x100xbf16, #tpu.memory_space<vmem>>, %arg10: memref<1x100xf32, #tpu.memory_space<vmem>>, %arg11: memref<100x8xbf16, #tpu.memory_space<vmem>>, %arg12: memref<1x8xf32, #tpu.memory_space<vmem>>, %arg13: memref<2x8xf32, #tpu.memory_space<vmem>>) attributes {dimension_semantics = [], scalar_prefetch = 0 : i64, scratch_operands = 0 : i64, tpu.core_type = #tpu.core_type<tc>} {
    %c0 = arith.constant 0 : index
    %c0_0 = arith.constant 0 : index
    %0 = vector.load %arg0[%c0, %c0_0] : memref<2x256xbf16, #tpu.memory_space<vmem>>, vector<2x256xbf16>
    %c0_1 = arith.constant 0 : index
    %c0_2 = arith.constant 0 : index
    %1 = vector.load %arg1[%c0_1, %c0_2] : memref<256x1024xbf16, #tpu.memory_space<vmem>>, vector<256x1024xbf16>
    %cst = arith.constant dense<0.000000e+00> : vector<2x1024xf32>
    %2 = tpu.matmul %0, %1, %cst {dimension_numbers = #tpu.dot_dimension_numbers<[1], [0], [0], [1], [0, 0, 1, 1], [], []>} : vector<2x256xbf16>, vector<256x1024xbf16>, vector<2x1024xf32> -> vector<2x1024xf32>
    %c0_3 = arith.constant 0 : index
    %c0_4 = arith.constant 0 : index
    %3 = vector.load %arg2[%c0_3, %c0_4] : memref<3x512xf32, #tpu.memory_space<vmem>>, vector<3x512xf32>
    %4 = vector.extract_strided_slice %3 {offsets = [0, 0], sizes = [1, 512], strides = [1, 1]} : vector<3x512xf32> to vector<1x512xf32>
    %5 = vector.extract_strided_slice %3 {offsets = [1, 0], sizes = [1, 512], strides = [1, 1]} : vector<3x512xf32> to vector<1x512xf32>
    %6 = vector.extract_strided_slice %3 {offsets = [2, 0], sizes = [1, 512], strides = [1, 1]} : vector<3x512xf32> to vector<1x512xf32>
    %7 = vector.extract_strided_slice %2 {offsets = [0, 0], sizes = [2, 512], strides = [1, 1]} : vector<2x1024xf32> to vector<2x512xf32>
    %8 = vector.broadcast %4 : vector<1x512xf32> to vector<2x512xf32>
    %9 = arith.addf %7, %8 : vector<2x512xf32>
    %cst_5 = arith.constant 0.000000e+00 : f32
    %10 = vector.broadcast %cst_5 : f32 to vector<2x512xf32>
    %11 = arith.maximumf %9, %10 : vector<2x512xf32>
    %12 = vector.extract_strided_slice %2 {offsets = [0, 512], sizes = [2, 512], strides = [1, 1]} : vector<2x1024xf32> to vector<2x512xf32>
    %13 = vector.broadcast %4 : vector<1x512xf32> to vector<2x512xf32>
    %14 = arith.addf %12, %13 : vector<2x512xf32>
    %cst_6 = arith.constant 0.000000e+00 : f32
    %15 = vector.broadcast %cst_6 : f32 to vector<2x512xf32>
    %16 = arith.maximumf %14, %15 : vector<2x512xf32>
    %17 = arith.addf %11, %16 : vector<2x512xf32>
    %cst_7 = arith.constant 5.000000e-01 : f32
    %18 = vector.broadcast %cst_7 : f32 to vector<2x512xf32>
    %19 = arith.mulf %17, %18 : vector<2x512xf32>
    %c0_8 = arith.constant 0 : index
    %c0_9 = arith.constant 0 : index
    %20 = vector.load %arg3[%c0_8, %c0_9] : memref<512x512xf32, #tpu.memory_space<vmem>>, vector<512x512xf32>
    %cst_10 = arith.constant dense<0.000000e+00> : vector<512xf32>
    %21 = vector.multi_reduction <add>, %19, %cst_10 [0] : vector<2x512xf32> to vector<512xf32>
    %22 = vector.shape_cast %21 : vector<512xf32> to vector<1x512xf32>
    %cst_11 = arith.constant dense<0.000000e+00> : vector<1x512xf32>
    %23 = tpu.matmul %22, %20, %cst_11 {dimension_numbers = #tpu.dot_dimension_numbers<[1], [0], [0], [1], [0, 0, 1, 1], [], []>} : vector<1x512xf32>, vector<512x512xf32>, vector<1x512xf32> -> vector<1x512xf32>
    %cst_12 = arith.constant 5.000000e-01 : f32
    %24 = vector.broadcast %cst_12 : f32 to vector<1x512xf32>
    %25 = arith.mulf %23, %24 : vector<1x512xf32>
    %26 = vector.broadcast %25 : vector<1x512xf32> to vector<2x512xf32>
    %27 = arith.subf %19, %26 : vector<2x512xf32>
    %28 = arith.mulf %27, %27 : vector<2x512xf32>
    %cst_13 = arith.constant dense<0.000000e+00> : vector<512xf32>
    %29 = vector.multi_reduction <add>, %28, %cst_13 [0] : vector<2x512xf32> to vector<512xf32>
    %30 = vector.shape_cast %29 : vector<512xf32> to vector<1x512xf32>
    %cst_14 = arith.constant dense<0.000000e+00> : vector<1x512xf32>
    %31 = tpu.matmul %30, %20, %cst_14 {dimension_numbers = #tpu.dot_dimension_numbers<[1], [0], [0], [1], [0, 0, 1, 1], [], []>} : vector<1x512xf32>, vector<512x512xf32>, vector<1x512xf32> -> vector<1x512xf32>
    %cst_15 = arith.constant 5.000000e-01 : f32
    %32 = vector.broadcast %cst_15 : f32 to vector<1x512xf32>
    %33 = arith.mulf %31, %32 : vector<1x512xf32>
    %cst_16 = arith.constant 9.99999974E-6 : f32
    %34 = vector.broadcast %cst_16 : f32 to vector<1x512xf32>
    %35 = arith.addf %33, %34 : vector<1x512xf32>
    %36 = math.rsqrt %35 : vector<1x512xf32>
    %37 = vector.broadcast %36 : vector<1x512xf32> to vector<2x512xf32>
    %38 = arith.mulf %27, %37 : vector<2x512xf32>
    %39 = vector.broadcast %5 : vector<1x512xf32> to vector<2x512xf32>
    %40 = arith.mulf %38, %39 : vector<2x512xf32>
    %41 = vector.broadcast %6 : vector<1x512xf32> to vector<2x512xf32>
    %42 = arith.addf %40, %41 : vector<2x512xf32>
    %43 = arith.truncf %42 : vector<2x512xf32> to vector<2x512xbf16>
    %c0_17 = arith.constant 0 : index
    %c0_18 = arith.constant 0 : index
    %44 = vector.load %arg4[%c0_17, %c0_18] : memref<512x1024xbf16, #tpu.memory_space<vmem>>, vector<512x1024xbf16>
    %cst_19 = arith.constant dense<0.000000e+00> : vector<2x1024xf32>
    %45 = tpu.matmul %43, %44, %cst_19 {dimension_numbers = #tpu.dot_dimension_numbers<[1], [0], [0], [1], [0, 0, 1, 1], [], []>} : vector<2x512xbf16>, vector<512x1024xbf16>, vector<2x1024xf32> -> vector<2x1024xf32>
    %c0_20 = arith.constant 0 : index
    %c0_21 = arith.constant 0 : index
    %46 = vector.load %arg5[%c0_20, %c0_21] : memref<3x512xf32, #tpu.memory_space<vmem>>, vector<3x512xf32>
    %47 = vector.extract_strided_slice %46 {offsets = [0, 0], sizes = [1, 512], strides = [1, 1]} : vector<3x512xf32> to vector<1x512xf32>
    %48 = vector.extract_strided_slice %46 {offsets = [1, 0], sizes = [1, 512], strides = [1, 1]} : vector<3x512xf32> to vector<1x512xf32>
    %49 = vector.extract_strided_slice %46 {offsets = [2, 0], sizes = [1, 512], strides = [1, 1]} : vector<3x512xf32> to vector<1x512xf32>
    %50 = vector.extract_strided_slice %45 {offsets = [0, 0], sizes = [2, 512], strides = [1, 1]} : vector<2x1024xf32> to vector<2x512xf32>
    %51 = vector.broadcast %47 : vector<1x512xf32> to vector<2x512xf32>
    %52 = arith.addf %50, %51 : vector<2x512xf32>
    %cst_22 = arith.constant 0.000000e+00 : f32
    %53 = vector.broadcast %cst_22 : f32 to vector<2x512xf32>
    %54 = arith.maximumf %52, %53 : vector<2x512xf32>
    %55 = vector.extract_strided_slice %45 {offsets = [0, 512], sizes = [2, 512], strides = [1, 1]} : vector<2x1024xf32> to vector<2x512xf32>
    %56 = vector.broadcast %47 : vector<1x512xf32> to vector<2x512xf32>
    %57 = arith.addf %55, %56 : vector<2x512xf32>
    %cst_23 = arith.constant 0.000000e+00 : f32
    %58 = vector.broadcast %cst_23 : f32 to vector<2x512xf32>
    %59 = arith.maximumf %57, %58 : vector<2x512xf32>
    %60 = arith.addf %54, %59 : vector<2x512xf32>
    %cst_24 = arith.constant 5.000000e-01 : f32
    %61 = vector.broadcast %cst_24 : f32 to vector<2x512xf32>
    %62 = arith.mulf %60, %61 : vector<2x512xf32>
    %c0_25 = arith.constant 0 : index
    %c0_26 = arith.constant 0 : index
    %63 = vector.load %arg6[%c0_25, %c0_26] : memref<512x512xf32, #tpu.memory_space<vmem>>, vector<512x512xf32>
    %cst_27 = arith.constant dense<0.000000e+00> : vector<512xf32>
    %64 = vector.multi_reduction <add>, %62, %cst_27 [0] : vector<2x512xf32> to vector<512xf32>
    %65 = vector.shape_cast %64 : vector<512xf32> to vector<1x512xf32>
    %cst_28 = arith.constant dense<0.000000e+00> : vector<1x512xf32>
    %66 = tpu.matmul %65, %63, %cst_28 {dimension_numbers = #tpu.dot_dimension_numbers<[1], [0], [0], [1], [0, 0, 1, 1], [], []>} : vector<1x512xf32>, vector<512x512xf32>, vector<1x512xf32> -> vector<1x512xf32>
    %cst_29 = arith.constant 5.000000e-01 : f32
    %67 = vector.broadcast %cst_29 : f32 to vector<1x512xf32>
    %68 = arith.mulf %66, %67 : vector<1x512xf32>
    %69 = vector.broadcast %68 : vector<1x512xf32> to vector<2x512xf32>
    %70 = arith.subf %62, %69 : vector<2x512xf32>
    %71 = arith.mulf %70, %70 : vector<2x512xf32>
    %cst_30 = arith.constant dense<0.000000e+00> : vector<512xf32>
    %72 = vector.multi_reduction <add>, %71, %cst_30 [0] : vector<2x512xf32> to vector<512xf32>
    %73 = vector.shape_cast %72 : vector<512xf32> to vector<1x512xf32>
    %cst_31 = arith.constant dense<0.000000e+00> : vector<1x512xf32>
    %74 = tpu.matmul %73, %63, %cst_31 {dimension_numbers = #tpu.dot_dimension_numbers<[1], [0], [0], [1], [0, 0, 1, 1], [], []>} : vector<1x512xf32>, vector<512x512xf32>, vector<1x512xf32> -> vector<1x512xf32>
    %cst_32 = arith.constant 5.000000e-01 : f32
    %75 = vector.broadcast %cst_32 : f32 to vector<1x512xf32>
    %76 = arith.mulf %74, %75 : vector<1x512xf32>
    %cst_33 = arith.constant 9.99999974E-6 : f32
    %77 = vector.broadcast %cst_33 : f32 to vector<1x512xf32>
    %78 = arith.addf %76, %77 : vector<1x512xf32>
    %79 = math.rsqrt %78 : vector<1x512xf32>
    %80 = vector.broadcast %79 : vector<1x512xf32> to vector<2x512xf32>
    %81 = arith.mulf %70, %80 : vector<2x512xf32>
    %82 = vector.broadcast %48 : vector<1x512xf32> to vector<2x512xf32>
    %83 = arith.mulf %81, %82 : vector<2x512xf32>
    %84 = vector.broadcast %49 : vector<1x512xf32> to vector<2x512xf32>
    %85 = arith.addf %83, %84 : vector<2x512xf32>
    %86 = arith.truncf %85 : vector<2x512xf32> to vector<2x512xbf16>
    %c0_34 = arith.constant 0 : index
    %c0_35 = arith.constant 0 : index
    %87 = vector.load %arg7[%c0_34, %c0_35] : memref<512x200xbf16, #tpu.memory_space<vmem>>, vector<512x200xbf16>
    %cst_36 = arith.constant dense<0.000000e+00> : vector<2x200xf32>
    %88 = tpu.matmul %86, %87, %cst_36 {dimension_numbers = #tpu.dot_dimension_numbers<[1], [0], [0], [1], [0, 0, 1, 1], [], []>} : vector<2x512xbf16>, vector<512x200xbf16>, vector<2x200xf32> -> vector<2x200xf32>
    %c0_37 = arith.constant 0 : index
    %c0_38 = arith.constant 0 : index
    %89 = vector.load %arg8[%c0_37, %c0_38] : memref<1x200xf32, #tpu.memory_space<vmem>>, vector<1x200xf32>
    %90 = vector.broadcast %89 : vector<1x200xf32> to vector<2x200xf32>
    %91 = arith.addf %88, %90 : vector<2x200xf32>
    %cst_39 = arith.constant 0.000000e+00 : f32
    %92 = vector.broadcast %cst_39 : f32 to vector<2x200xf32>
    %93 = arith.maximumf %91, %92 : vector<2x200xf32>
    %94 = arith.truncf %93 : vector<2x200xf32> to vector<2x200xbf16>
    %c0_40 = arith.constant 0 : index
    %c0_41 = arith.constant 0 : index
    %95 = vector.load %arg9[%c0_40, %c0_41] : memref<200x100xbf16, #tpu.memory_space<vmem>>, vector<200x100xbf16>
    %cst_42 = arith.constant dense<0.000000e+00> : vector<2x100xf32>
    %96 = tpu.matmul %94, %95, %cst_42 {dimension_numbers = #tpu.dot_dimension_numbers<[1], [0], [0], [1], [0, 0, 1, 1], [], []>} : vector<2x200xbf16>, vector<200x100xbf16>, vector<2x100xf32> -> vector<2x100xf32>
    %c0_43 = arith.constant 0 : index
    %c0_44 = arith.constant 0 : index
    %97 = vector.load %arg10[%c0_43, %c0_44] : memref<1x100xf32, #tpu.memory_space<vmem>>, vector<1x100xf32>
    %98 = vector.broadcast %97 : vector<1x100xf32> to vector<2x100xf32>
    %99 = arith.addf %96, %98 : vector<2x100xf32>
    %cst_45 = arith.constant 0.000000e+00 : f32
    %100 = vector.broadcast %cst_45 : f32 to vector<2x100xf32>
    %101 = arith.maximumf %99, %100 : vector<2x100xf32>
    %102 = arith.truncf %101 : vector<2x100xf32> to vector<2x100xbf16>
    %c0_46 = arith.constant 0 : index
    %c0_47 = arith.constant 0 : index
    %103 = vector.load %arg11[%c0_46, %c0_47] : memref<100x8xbf16, #tpu.memory_space<vmem>>, vector<100x8xbf16>
    %cst_48 = arith.constant dense<0.000000e+00> : vector<2x8xf32>
    %104 = tpu.matmul %102, %103, %cst_48 {dimension_numbers = #tpu.dot_dimension_numbers<[1], [0], [0], [1], [0, 0, 1, 1], [], []>} : vector<2x100xbf16>, vector<100x8xbf16>, vector<2x8xf32> -> vector<2x8xf32>
    %c0_49 = arith.constant 0 : index
    %c0_50 = arith.constant 0 : index
    %105 = vector.load %arg12[%c0_49, %c0_50] : memref<1x8xf32, #tpu.memory_space<vmem>>, vector<1x8xf32>
    %106 = vector.broadcast %105 : vector<1x8xf32> to vector<2x8xf32>
    %107 = arith.addf %104, %106 : vector<2x8xf32>
    %c0_51 = arith.constant 0 : index
    %c0_52 = arith.constant 0 : index
    %108 = vector.load %arg13[%c0_51, %c0_52] : memref<2x8xf32, #tpu.memory_space<vmem>>, vector<2x8xf32>
    tpu.vector_store %arg13[%c0_51, %c0_52], %107 {strides = array<i32>} : memref<2x8xf32, #tpu.memory_space<vmem>>, vector<2x8xf32>,
    return
  }
}

</mosaic_0001>

<llo_original>
// kernel: encoder_forward.1
$region0: #{encoder_forward.1}
  #allocation0 [shape = 'u32[]', space=smem, size = 0x4, offset = 0x4, fixed_abs, tag = 'smem constant byte address 0x4 - core index']
  #allocation1 [shape = 'u32[72,128]{1,0:T(1,128)}', space=vmem, size = 0x9000, scoped, tag = 'internal scratch']
  %s0 = inlined_call_operand.vmem [shape: bf16[2,256], index: 0, kind: input, shape index: {}]
  %s1 = inlined_call_operand.hbm [shape: bf16[256,1024], index: 1, kind: input, shape index: {}]
  %s2 = inlined_call_operand.vmem [shape: f32[3,512], index: 2, kind: input, shape index: {}]
  %s3 = inlined_call_operand.hbm [shape: f32[512,512], index: 3, kind: input, shape index: {}]
  %s4 = inlined_call_operand.hbm [shape: bf16[512,1024], index: 4, kind: input, shape index: {}]
  %s5 = inlined_call_operand.vmem [shape: f32[3,512], index: 5, kind: input, shape index: {}]
  %s6 = inlined_call_operand.hbm [shape: f32[512,512], index: 6, kind: input, shape index: {}]
  %s7 = inlined_call_operand.vmem [shape: bf16[512,200], index: 7, kind: input, shape index: {}]
  %s8 = inlined_call_operand.vmem [shape: f32[1,200], index: 8, kind: input, shape index: {}]
  %s9 = inlined_call_operand.vmem [shape: bf16[200,100], index: 9, kind: input, shape index: {}]
  %s10 = inlined_call_operand.vmem [shape: f32[1,100], index: 10, kind: input, shape index: {}]
  %s11 = inlined_call_operand.vmem [shape: bf16[100,8], index: 11, kind: input, shape index: {}]
  %s12 = inlined_call_operand.vmem [shape: f32[1,8], index: 12, kind: input, shape index: {}]
  %s13 = inlined_call_operand.vmem [shape: f32[2,8], index: 13, kind: output, shape index: {}]
  %s14 = sld [smem:[#allocation0]]
  $region78: #{encoder_forward.1} parent=0
    _
  %s16 = ssub.s32 1, %s14
  %s17 = scalar_select 0, %s16, %s14
  $region1: #{encoder_forward.1} parent=0
    #allocation2 [shape = 'u8[524288]{0}', space=vmem, size = 0x80000, scoped, tag = 'input window, operand 1, single buffered']
    #allocation3 [shape = 's32[1]{0}', space=sflag, size = 0x4, scoped, tag = 'scoped memory for encoder_forward.1']
    #allocation4 [shape = 'u8[1048576]{0}', space=vmem, size = 0x100000, scoped, tag = 'input window, operand 3, single buffered']
    #allocation5 [shape = 's32[1]{0}', space=sflag, size = 0x4, scoped, tag = 'scoped memory for encoder_forward.1']
    #allocation6 [shape = 'u8[1048576]{0}', space=vmem, size = 0x100000, scoped, tag = 'input window, operand 4, single buffered']
    #allocation7 [shape = 'u8[1048576]{0}', space=vmem, size = 0x100000, scoped, tag = 'input window, operand 6, single buffered']
    #allocation8 [shape = 's32[1]{0}', space=sflag, size = 0x4, scoped, tag = 'scoped memory for encoder_forward.1']
    %18 = vsyncpa [#allocation3], 0
    %19 = vsyncpa [#allocation5], 0
    %20 = vsyncpa [#allocation8], 0
    // Predicated region
    $region2: #{encoder_forward.1} parent=1 // pred_check
      _
    $region3: #{encoder_forward.1} parent=1 // pred_check_branch
      %22 = sbr.rel (0) target = $region5
    $region4: #{encoder_forward.1} parent=1 // pred_region
      _
    $region5: #{encoder_forward.1} parent=1 // pred_fallthru
      _
    // Predicated region
    $region6: #{encoder_forward.1} parent=1 // pred_check
      _
    $region7: #{encoder_forward.1} parent=1 // pred_check_branch
      %24 = sbr.rel (0) target = $region9
    $region8: #{encoder_forward.1} parent=1 // pred_region
      %26 = vsyncadd [#allocation3], 0
      %s27 = sshll.u32 %s1, 4
      %s28 = int_to_ptr.hbm [resolvable:$true] %s27
      %s29 = sshll.u32 [#allocation2], 4
      %s30 = int_to_ptr.vmem [resolvable:$true] %s29
      %35 = dma.hbm_to_vmem [thread:$0]  %s28, 16384, %s30, [#allocation3], 512, 512, 32
    $region9: #{encoder_forward.1} parent=1 // pred_fallthru
      _
    // Predicated region
    $region10: #{encoder_forward.1} parent=1 // pred_check
      _
    $region11: #{encoder_forward.1} parent=1 // pred_check_branch
      %37 = sbr.rel (0) target = $region13
    $region12: #{encoder_forward.1} parent=1 // pred_region
      _
    $region13: #{encoder_forward.1} parent=1 // pred_fallthru
      _
    // Predicated region
    $region14: #{encoder_forward.1} parent=1 // pred_check
      _
    $region15: #{encoder_forward.1} parent=1 // pred_check_branch
      %39 = sbr.rel (0) target = $region17
    $region16: #{encoder_forward.1} parent=1 // pred_region
      %41 = vsyncadd [#allocation5], 0
      %s42 = sshll.u32 %s3, 4
      %s43 = int_to_ptr.hbm [resolvable:$true] %s42
      %s44 = sshll.u32 [#allocation4], 4
      %s45 = int_to_ptr.vmem [resolvable:$true] %s44
      %50 = dma.hbm_to_vmem [thread:$0]  %s43, 32768, %s45, [#allocation5], 512, 512, 32
    $region17: #{encoder_forward.1} parent=1 // pred_fallthru
      _
    // Predicated region
    $region18: #{encoder_forward.1} parent=1 // pred_check
      _
    $region19: #{encoder_forward.1} parent=1 // pred_check_branch
      %52 = sbr.rel (0) target = $region21
    $region20: #{encoder_forward.1} parent=1 // pred_region
      %54 = vsyncadd [#allocation5], 0
      %s55 = sshll.u32 %s4, 4
      %s56 = int_to_ptr.hbm [resolvable:$true] %s55
      %s57 = sshll.u32 [#allocation6], 4
      %s58 = int_to_ptr.vmem [resolvable:$true] %s57
      %63 = dma.hbm_to_vmem [thread:$0]  %s56, 32768, %s58, [#allocation5], 512, 512, 32
    $region21: #{encoder_forward.1} parent=1 // pred_fallthru
      _
    // Predicated region
    $region22: #{encoder_forward.1} parent=1 // pred_check
      _
    $region23: #{encoder_forward.1} parent=1 // pred_check_branch
      %65 = sbr.rel (0) target = $region25
    $region24: #{encoder_forward.1} parent=1 // pred_region
      _
    $region25: #{encoder_forward.1} parent=1 // pred_fallthru
      _
    // Predicated region
    $region26: #{encoder_forward.1} parent=1 // pred_check
      _
    $region27: #{encoder_forward.1} parent=1 // pred_check_branch
      %67 = sbr.rel (0) target = $region29
    $region28: #{encoder_forward.1} parent=1 // pred_region
      %69 = vsyncadd [#allocation8], 0
      %s70 = sshll.u32 %s6, 4
      %s71 = int_to_ptr.hbm [resolvable:$true] %s70
      %s72 = sshll.u32 [#allocation7], 4
      %s73 = int_to_ptr.vmem [resolvable:$true] %s72
      %78 = dma.hbm_to_vmem [thread:$0]  %s71, 32768, %s73, [#allocation8], 512, 512, 32
    $region29: #{encoder_forward.1} parent=1 // pred_fallthru
      _
    // Predicated region
    $region30: #{encoder_forward.1} parent=1 // pred_check
      _
    $region31: #{encoder_forward.1} parent=1 // pred_check_branch
      %80 = sbr.rel (0) target = $region33
    $region32: #{encoder_forward.1} parent=1 // pred_region
      _
    $region33: #{encoder_forward.1} parent=1 // pred_fallthru
      _
    // Predicated region
    $region34: #{encoder_forward.1} parent=1 // pred_check
      _
    $region35: #{encoder_forward.1} parent=1 // pred_check_branch
      %82 = sbr.rel (0) target = $region37
    $region36: #{encoder_forward.1} parent=1 // pred_region
      _
    $region37: #{encoder_forward.1} parent=1 // pred_fallthru
      _
    // Predicated region
    $region38: #{encoder_forward.1} parent=1 // pred_check
      _
    $region39: #{encoder_forward.1} parent=1 // pred_check_branch
      %84 = sbr.rel (0) target = $region41
    $region40: #{encoder_forward.1} parent=1 // pred_region
      _
    $region41: #{encoder_forward.1} parent=1 // pred_fallthru
      _
    // Predicated region
    $region42: #{encoder_forward.1} parent=1 // pred_check
      _
    $region43: #{encoder_forward.1} parent=1 // pred_check_branch
      %86 = sbr.rel (0) target = $region45
    $region44: #{encoder_forward.1} parent=1 // pred_region
      _
    $region45: #{encoder_forward.1} parent=1 // pred_fallthru
      _
    // Predicated region
    $region46: #{encoder_forward.1} parent=1 // pred_check
      _
    $region47: #{encoder_forward.1} parent=1 // pred_check_branch
      %88 = sbr.rel (0) target = $region49
    $region48: #{encoder_forward.1} parent=1 // pred_region
      _
    $region49: #{encoder_forward.1} parent=1 // pred_fallthru
      _
    // Predicated region
    $region50: #{encoder_forward.1} parent=1 // pred_check
      _
    $region51: #{encoder_forward.1} parent=1 // pred_check_branch
      %90 = sbr.rel (0) target = $region53
    $region52: #{encoder_forward.1} parent=1 // pred_region
      _
    $region53: #{encoder_forward.1} parent=1 // pred_fallthru
      _
    // Predicated region
    $region54: #{encoder_forward.1} parent=1 // pred_check
      _
    $region55: #{encoder_forward.1} parent=1 // pred_check_branch
      %92 = sbr.rel (0) target = $region57
    $region56: #{encoder_forward.1} parent=1 // pred_region
      %94 = dma.done [#allocation3], 16384
    $region57: #{encoder_forward.1} parent=1 // pred_fallthru
      _
    // Predicated region
    $region58: #{encoder_forward.1} parent=1 // pred_check
      _
    $region59: #{encoder_forward.1} parent=1 // pred_check_branch
      %96 = sbr.rel (0) target = $region61
    $region60: #{encoder_forward.1} parent=1 // pred_region
      %98 = dma.done [#allocation5], 32768
    $region61: #{encoder_forward.1} parent=1 // pred_fallthru
      _
    // Predicated region
    $region62: #{encoder_forward.1} parent=1 // pred_check
      _
    $region63: #{encoder_forward.1} parent=1 // pred_check_branch
      %100 = sbr.rel (0) target = $region65
    $region64: #{encoder_forward.1} parent=1 // pred_region
      %102 = dma.done [#allocation5], 32768
    $region65: #{encoder_forward.1} parent=1 // pred_fallthru
      _
    // Predicated region
    $region66: #{encoder_forward.1} parent=1 // pred_check
      _
    $region67: #{encoder_forward.1} parent=1 // pred_check_branch
      %104 = sbr.rel (0) target = $region69
    $region68: #{encoder_forward.1} parent=1 // pred_region
      %106 = dma.done [#allocation8], 32768
    $region69: #{encoder_forward.1} parent=1 // pred_fallthru
      _
    %v108 = vld [vmem:[%s0] sm:$0x3]
    %v109 = vld [vmem:[#allocation2] sm:$0xff]
    %v110 = vld [vmem:[#allocation2 + $0x8] sm:$0xff]
    %v111 = vld [vmem:[#allocation2 + $0x10] sm:$0xff]
    %v112 = vld [vmem:[#allocation2 + $0x18] sm:$0xff]
    %v113 = vld [vmem:[#allocation2 + $0x20] sm:$0xff]
    %v114 = vld [vmem:[#allocation2 + $0x28] sm:$0xff]
    %v115 = vld [vmem:[#allocation2 + $0x30] sm:$0xff]
    %v116 = vld [vmem:[#allocation2 + $0x38] sm:$0xff]
    %v117 = vld [vmem:[#allocation2 + $0x40] sm:$0xff]
    %v118 = vld [vmem:[#allocation2 + $0x48] sm:$0xff]
    %v119 = vld [vmem:[#allocation2 + $0x50] sm:$0xff]
    %v120 = vld [vmem:[#allocation2 + $0x58] sm:$0xff]
    %v121 = vld [vmem:[#allocation2 + $0x60] sm:$0xff]
    %v122 = vld [vmem:[#allocation2 + $0x68] sm:$0xff]
    %v123 = vld [vmem:[#allocation2 + $0x70] sm:$0xff]
    %v124 = vld [vmem:[#allocation2 + $0x78] sm:$0xff]
    %v125 = vld [vmem:[#allocation2 + $0x80] sm:$0xff]
    %v126 = vld [vmem:[#allocation2 + $0x88] sm:$0xff]
    %v127 = vld [vmem:[#allocation2 + $0x90] sm:$0xff]
    %v128 = vld [vmem:[#allocation2 + $0x98] sm:$0xff]
    %v129 = vld [vmem:[#allocation2 + $0xa0] sm:$0xff]
    %v130 = vld [vmem:[#allocation2 + $0xa8] sm:$0xff]
    %v131 = vld [vmem:[#allocation2 + $0xb0] sm:$0xff]
    %v132 = vld [vmem:[#allocation2 + $0xb8] sm:$0xff]
    %v133 = vld [vmem:[#allocation2 + $0xc0] sm:$0xff]
    %v134 = vld [vmem:[#allocation2 + $0xc8] sm:$0xff]
    %v135 = vld [vmem:[#allocation2 + $0xd0] sm:$0xff]
    %v136 = vld [vmem:[#allocation2 + $0xd8] sm:$0xff]
    %v137 = vld [vmem:[#allocation2 + $0xe0] sm:$0xff]
    %v138 = vld [vmem:[#allocation2 + $0xe8] sm:$0xff]
    %v139 = vld [vmem:[#allocation2 + $0xf0] sm:$0xff]
    %v140 = vld [vmem:[#allocation2 + $0xf8] sm:$0xff]
    %v141 = vld [vmem:[#allocation2 + $0x100] sm:$0xff]
    %v142 = vld [vmem:[#allocation2 + $0x108] sm:$0xff]
    %v143 = vld [vmem:[#allocation2 + $0x110] sm:$0xff]
    %v144 = vld [vmem:[#allocation2 + $0x118] sm:$0xff]
    %v145 = vld [vmem:[#allocation2 + $0x120] sm:$0xff]
    %v146 = vld [vmem:[#allocation2 + $0x128] sm:$0xff]
    %v147 = vld [vmem:[#allocation2 + $0x130] sm:$0xff]
    %v148 = vld [vmem:[#allocation2 + $0x138] sm:$0xff]
    %v149 = vld [vmem:[#allocation2 + $0x140] sm:$0xff]
    %v150 = vld [vmem:[#allocation2 + $0x148] sm:$0xff]
    %v151 = vld [vmem:[#allocation2 + $0x150] sm:$0xff]
    %v152 = vld [vmem:[#allocation2 + $0x158] sm:$0xff]
    %v153 = vld [vmem:[#allocation2 + $0x160] sm:$0xff]
    %v154 = vld [vmem:[#allocation2 + $0x168] sm:$0xff]
    %v155 = vld [vmem:[#allocation2 + $0x170] sm:$0xff]
    %v156 = vld [vmem:[#allocation2 + $0x178] sm:$0xff]
    %v157 = vld [vmem:[#allocation2 + $0x180] sm:$0xff]
    %v158 = vld [vmem:[#allocation2 + $0x188] sm:$0xff]
    %v159 = vld [vmem:[#allocation2 + $0x190] sm:$0xff]
    %v160 = vld [vmem:[#allocation2 + $0x198] sm:$0xff]
    %v161 = vld [vmem:[#allocation2 + $0x1a0] sm:$0xff]
    %v162 = vld [vmem:[#allocation2 + $0x1a8] sm:$0xff]
    %v163 = vld [vmem:[#allocation2 + $0x1b0] sm:$0xff]
    %v164 = vld [vmem:[#allocation2 + $0x1b8] sm:$0xff]
    %v165 = vld [vmem:[#allocation2 + $0x1c0] sm:$0xff]
    %v166 = vld [vmem:[#allocation2 + $0x1c8] sm:$0xff]
    %v167 = vld [vmem:[#allocation2 + $0x1d0] sm:$0xff]
    %v168 = vld [vmem:[#allocation2 + $0x1d8] sm:$0xff]
    %v169 = vld [vmem:[#allocation2 + $0x1e0] sm:$0xff]
    %v170 = vld [vmem:[#allocation2 + $0x1e8] sm:$0xff]
    %v171 = vld [vmem:[#allocation2 + $0x1f0] sm:$0xff]
    %v172 = vld [vmem:[#allocation2 + $0x1f8] sm:$0xff]
    %v173 = vld [vmem:[#allocation2 + $0x200] sm:$0xff]
    %v174 = vld [vmem:[#allocation2 + $0x208] sm:$0xff]
    %v175 = vld [vmem:[#allocation2 + $0x210] sm:$0xff]
    %v176 = vld [vmem:[#allocation2 + $0x218] sm:$0xff]
    %v177 = vld [vmem:[#allocation2 + $0x220] sm:$0xff]
    %v178 = vld [vmem:[#allocation2 + $0x228] sm:$0xff]
    %v179 = vld [vmem:[#allocation2 + $0x230] sm:$0xff]
    %v180 = vld [vmem:[#allocation2 + $0x238] sm:$0xff]
    %v181 = vld [vmem:[#allocation2 + $0x240] sm:$0xff]
    %v182 = vld [vmem:[#allocation2 + $0x248] sm:$0xff]
    %v183 = vld [vmem:[#allocation2 + $0x250] sm:$0xff]
    %v184 = vld [vmem:[#allocation2 + $0x258] sm:$0xff]
    %v185 = vld [vmem:[#allocation2 + $0x260] sm:$0xff]
    %v186 = vld [vmem:[#allocation2 + $0x268] sm:$0xff]
    %v187 = vld [vmem:[#allocation2 + $0x270] sm:$0xff]
    %v188 = vld [vmem:[#allocation2 + $0x278] sm:$0xff]
    %v189 = vld [vmem:[#allocation2 + $0x280] sm:$0xff]
    %v190 = vld [vmem:[#allocation2 + $0x288] sm:$0xff]
    %v191 = vld [vmem:[#allocation2 + $0x290] sm:$0xff]
    %v192 = vld [vmem:[#allocation2 + $0x298] sm:$0xff]
    %v193 = vld [vmem:[#allocation2 + $0x2a0] sm:$0xff]
    %v194 = vld [vmem:[#allocation2 + $0x2a8] sm:$0xff]
    %v195 = vld [vmem:[#allocation2 + $0x2b0] sm:$0xff]
    %v196 = vld [vmem:[#allocation2 + $0x2b8] sm:$0xff]
    %v197 = vld [vmem:[#allocation2 + $0x2c0] sm:$0xff]
    %v198 = vld [vmem:[#allocation2 + $0x2c8] sm:$0xff]
    %v199 = vld [vmem:[#allocation2 + $0x2d0] sm:$0xff]
    %v200 = vld [vmem:[#allocation2 + $0x2d8] sm:$0xff]
    %v201 = vld [vmem:[#allocation2 + $0x2e0] sm:$0xff]
    %v202 = vld [vmem:[#allocation2 + $0x2e8] sm:$0xff]
    %v203 = vld [vmem:[#allocation2 + $0x2f0] sm:$0xff]
    %v204 = vld [vmem:[#allocation2 + $0x2f8] sm:$0xff]
    %v205 = vld [vmem:[#allocation2 + $0x300] sm:$0xff]
    %v206 = vld [vmem:[#allocation2 + $0x308] sm:$0xff]
    %v207 = vld [vmem:[#allocation2 + $0x310] sm:$0xff]
    %v208 = vld [vmem:[#allocation2 + $0x318] sm:$0xff]
    %v209 = vld [vmem:[#allocation2 + $0x320] sm:$0xff]
    %v210 = vld [vmem:[#allocation2 + $0x328] sm:$0xff]
    %v211 = vld [vmem:[#allocation2 + $0x330] sm:$0xff]
    %v212 = vld [vmem:[#allocation2 + $0x338] sm:$0xff]
    %v213 = vld [vmem:[#allocation2 + $0x340] sm:$0xff]
    %v214 = vld [vmem:[#allocation2 + $0x348] sm:$0xff]
    %v215 = vld [vmem:[#allocation2 + $0x350] sm:$0xff]
    %v216 = vld [vmem:[#allocation2 + $0x358] sm:$0xff]
    %v217 = vld [vmem:[#allocation2 + $0x360] sm:$0xff]
    %v218 = vld [vmem:[#allocation2 + $0x368] sm:$0xff]
    %v219 = vld [vmem:[#allocation2 + $0x370] sm:$0xff]
    %v220 = vld [vmem:[#allocation2 + $0x378] sm:$0xff]
    %v221 = vld [vmem:[#allocation2 + $0x380] sm:$0xff]
    %v222 = vld [vmem:[#allocation2 + $0x388] sm:$0xff]
    %v223 = vld [vmem:[#allocation2 + $0x390] sm:$0xff]
    %v224 = vld [vmem:[#allocation2 + $0x398] sm:$0xff]
    %v225 = vld [vmem:[#allocation2 + $0x3a0] sm:$0xff]
    %v226 = vld [vmem:[#allocation2 + $0x3a8] sm:$0xff]
    %v227 = vld [vmem:[#allocation2 + $0x3b0] sm:$0xff]
    %v228 = vld [vmem:[#allocation2 + $0x3b8] sm:$0xff]
    %v229 = vld [vmem:[#allocation2 + $0x3c0] sm:$0xff]
    %v230 = vld [vmem:[#allocation2 + $0x3c8] sm:$0xff]
    %v231 = vld [vmem:[#allocation2 + $0x3d0] sm:$0xff]
    %v232 = vld [vmem:[#allocation2 + $0x3d8] sm:$0xff]
    %v233 = vld [vmem:[#allocation2 + $0x3e0] sm:$0xff]
    %v234 = vld [vmem:[#allocation2 + $0x3e8] sm:$0xff]
    %v235 = vld [vmem:[#allocation2 + $0x3f0] sm:$0xff]
    %v236 = vld [vmem:[#allocation2 + $0x3f8] sm:$0xff]
    %238 = vst [vmem:[#allocation1] ss:$9 sm:$0xff] %v108
    %v239 = vld [vmem:[#allocation1] sm:$0xff]
    %v240 = vld [vmem:[#allocation1 + $0x9] sm:$0xff]
    %v371 = vunpack.c.l.b16 %v109
    %v372 = vunpack.c.h.b16 %v109
    %v373 = vunpack.c.l.b16 %v110
    %v374 = vunpack.c.h.b16 %v110
    %v375 = vunpack.c.l.b16 %v111
    %v376 = vunpack.c.h.b16 %v111
    %v377 = vunpack.c.l.b16 %v112
    %v378 = vunpack.c.h.b16 %v112
    %v379 = vunpack.c.l.b16 %v113
    %v380 = vunpack.c.h.b16 %v113
    %v381 = vunpack.c.l.b16 %v114
    %v382 = vunpack.c.h.b16 %v114
    %v383 = vunpack.c.l.b16 %v115
    %v384 = vunpack.c.h.b16 %v115
    %v385 = vunpack.c.l.b16 %v116
    %v386 = vunpack.c.h.b16 %v116
    %v387 = vunpack.c.l.b16 %v117
    %v388 = vunpack.c.h.b16 %v117
    %v389 = vunpack.c.l.b16 %v118
    %v390 = vunpack.c.h.b16 %v118
    %v391 = vunpack.c.l.b16 %v119
    %v392 = vunpack.c.h.b16 %v119
    %v393 = vunpack.c.l.b16 %v120
    %v394 = vunpack.c.h.b16 %v120
    %v395 = vunpack.c.l.b16 %v121
    %v396 = vunpack.c.h.b16 %v121
    %v397 = vunpack.c.l.b16 %v122
    %v398 = vunpack.c.h.b16 %v122
    %v399 = vunpack.c.l.b16 %v123
    %v400 = vunpack.c.h.b16 %v123
    %v401 = vunpack.c.l.b16 %v124
    %v402 = vunpack.c.h.b16 %v124
    %v403 = vunpack.c.l.b16 %v125
    %v404 = vunpack.c.h.b16 %v125
    %v405 = vunpack.c.l.b16 %v126
    %v406 = vunpack.c.h.b16 %v126
    %v407 = vunpack.c.l.b16 %v127
    %v408 = vunpack.c.h.b16 %v127
    %v409 = vunpack.c.l.b16 %v128
    %v410 = vunpack.c.h.b16 %v128
    %v411 = vunpack.c.l.b16 %v129
    %v412 = vunpack.c.h.b16 %v129
    %v413 = vunpack.c.l.b16 %v130
    %v414 = vunpack.c.h.b16 %v130
    %v415 = vunpack.c.l.b16 %v131
    %v416 = vunpack.c.h.b16 %v131
    %v417 = vunpack.c.l.b16 %v132
    %v418 = vunpack.c.h.b16 %v132
    %v419 = vunpack.c.l.b16 %v133
    %v420 = vunpack.c.h.b16 %v133
    %v421 = vunpack.c.l.b16 %v134
    %v422 = vunpack.c.h.b16 %v134
    %v423 = vunpack.c.l.b16 %v135
    %v424 = vunpack.c.h.b16 %v135
    %v425 = vunpack.c.l.b16 %v136
    %v426 = vunpack.c.h.b16 %v136
    %v427 = vunpack.c.l.b16 %v137
    %v428 = vunpack.c.h.b16 %v137
    %v429 = vunpack.c.l.b16 %v138
    %v430 = vunpack.c.h.b16 %v138
    %v431 = vunpack.c.l.b16 %v139
    %v432 = vunpack.c.h.b16 %v139
    %v433 = vunpack.c.l.b16 %v140
    %v434 = vunpack.c.h.b16 %v140
    %v435 = vunpack.c.l.b16 %v141
    %v436 = vunpack.c.h.b16 %v141
    %v437 = vunpack.c.l.b16 %v142
    %v438 = vunpack.c.h.b16 %v142
    %v439 = vunpack.c.l.b16 %v143
    %v440 = vunpack.c.h.b16 %v143
    %v441 = vunpack.c.l.b16 %v144
    %v442 = vunpack.c.h.b16 %v144
    %v443 = vunpack.c.l.b16 %v145
    %v444 = vunpack.c.h.b16 %v145
    %v445 = vunpack.c.l.b16 %v146
    %v446 = vunpack.c.h.b16 %v146
    %v447 = vunpack.c.l.b16 %v147
    %v448 = vunpack.c.h.b16 %v147
    %v449 = vunpack.c.l.b16 %v148
    %v450 = vunpack.c.h.b16 %v148
    %v451 = vunpack.c.l.b16 %v149
    %v452 = vunpack.c.h.b16 %v149
    %v453 = vunpack.c.l.b16 %v150
    %v454 = vunpack.c.h.b16 %v150
    %v455 = vunpack.c.l.b16 %v151
    %v456 = vunpack.c.h.b16 %v151
    %v457 = vunpack.c.l.b16 %v152
    %v458 = vunpack.c.h.b16 %v152
    %v459 = vunpack.c.l.b16 %v153
    %v460 = vunpack.c.h.b16 %v153
    %v461 = vunpack.c.l.b16 %v154
    %v462 = vunpack.c.h.b16 %v154
    %v463 = vunpack.c.l.b16 %v155
    %v464 = vunpack.c.h.b16 %v155
    %v465 = vunpack.c.l.b16 %v156
    %v466 = vunpack.c.h.b16 %v156
    %v467 = vunpack.c.l.b16 %v157
    %v468 = vunpack.c.h.b16 %v157
    %v469 = vunpack.c.l.b16 %v158
    %v470 = vunpack.c.h.b16 %v158
    %v471 = vunpack.c.l.b16 %v159
    %v472 = vunpack.c.h.b16 %v159
    %v473 = vunpack.c.l.b16 %v160
    %v474 = vunpack.c.h.b16 %v160
    %v475 = vunpack.c.l.b16 %v161
    %v476 = vunpack.c.h.b16 %v161
    %v477 = vunpack.c.l.b16 %v162
    %v478 = vunpack.c.h.b16 %v162
    %v479 = vunpack.c.l.b16 %v163
    %v480 = vunpack.c.h.b16 %v163
    %v481 = vunpack.c.l.b16 %v164
    %v482 = vunpack.c.h.b16 %v164
    %v483 = vunpack.c.l.b16 %v165
    %v484 = vunpack.c.h.b16 %v165
    %v485 = vunpack.c.l.b16 %v166
    %v486 = vunpack.c.h.b16 %v166
    %v487 = vunpack.c.l.b16 %v167
    %v488 = vunpack.c.h.b16 %v167
    %v489 = vunpack.c.l.b16 %v168
    %v490 = vunpack.c.h.b16 %v168
    %v491 = vunpack.c.l.b16 %v169
    %v492 = vunpack.c.h.b16 %v169
    %v493 = vunpack.c.l.b16 %v170
    %v494 = vunpack.c.h.b16 %v170
    %v495 = vunpack.c.l.b16 %v171
    %v496 = vunpack.c.h.b16 %v171
    %v497 = vunpack.c.l.b16 %v172
    %v498 = vunpack.c.h.b16 %v172
    %v499 = vunpack.c.l.b16 %v173
    %v500 = vunpack.c.h.b16 %v173
    %v501 = vunpack.c.l.b16 %v174
    %v502 = vunpack.c.h.b16 %v174
    %v503 = vunpack.c.l.b16 %v175
    %v504 = vunpack.c.h.b16 %v175
    %v505 = vunpack.c.l.b16 %v176
    %v506 = vunpack.c.h.b16 %v176
    %v507 = vunpack.c.l.b16 %v177
    %v508 = vunpack.c.h.b16 %v177
    %v509 = vunpack.c.l.b16 %v178
    %v510 = vunpack.c.h.b16 %v178
    %v511 = vunpack.c.l.b16 %v179
    %v512 = vunpack.c.h.b16 %v179
    %v513 = vunpack.c.l.b16 %v180
    %v514 = vunpack.c.h.b16 %v180
    %v515 = vunpack.c.l.b16 %v181
    %v516 = vunpack.c.h.b16 %v181
    %v517 = vunpack.c.l.b16 %v182
    %v518 = vunpack.c.h.b16 %v182
    %v519 = vunpack.c.l.b16 %v183
    %v520 = vunpack.c.h.b16 %v183
    %v521 = vunpack.c.l.b16 %v184
    %v522 = vunpack.c.h.b16 %v184
    %v523 = vunpack.c.l.b16 %v185
    %v524 = vunpack.c.h.b16 %v185
    %v525 = vunpack.c.l.b16 %v186
    %v526 = vunpack.c.h.b16 %v186
    %v527 = vunpack.c.l.b16 %v187
    %v528 = vunpack.c.h.b16 %v187
    %v529 = vunpack.c.l.b16 %v188
    %v530 = vunpack.c.h.b16 %v188
    %v531 = vunpack.c.l.b16 %v189
    %v532 = vunpack.c.h.b16 %v189
    %v533 = vunpack.c.l.b16 %v190
    %v534 = vunpack.c.h.b16 %v190
    %v535 = vunpack.c.l.b16 %v191
    %v536 = vunpack.c.h.b16 %v191
    %v537 = vunpack.c.l.b16 %v192
    %v538 = vunpack.c.h.b16 %v192
    %v539 = vunpack.c.l.b16 %v193
    %v540 = vunpack.c.h.b16 %v193
    %v541 = vunpack.c.l.b16 %v194
    %v542 = vunpack.c.h.b16 %v194
    %v543 = vunpack.c.l.b16 %v195
    %v544 = vunpack.c.h.b16 %v195
    %v545 = vunpack.c.l.b16 %v196
    %v546 = vunpack.c.h.b16 %v196
    %v547 = vunpack.c.l.b16 %v197
    %v548 = vunpack.c.h.b16 %v197
    %v549 = vunpack.c.l.b16 %v198
    %v550 = vunpack.c.h.b16 %v198
    %v551 = vunpack.c.l.b16 %v199
    %v552 = vunpack.c.h.b16 %v199
    %v553 = vunpack.c.l.b16 %v200
    %v554 = vunpack.c.h.b16 %v200
    %v555 = vunpack.c.l.b16 %v201
    %v556 = vunpack.c.h.b16 %v201
    %v557 = vunpack.c.l.b16 %v202
    %v558 = vunpack.c.h.b16 %v202
    %v559 = vunpack.c.l.b16 %v203
    %v560 = vunpack.c.h.b16 %v203
    %v561 = vunpack.c.l.b16 %v204
    %v562 = vunpack.c.h.b16 %v204
    %v563 = vunpack.c.l.b16 %v205
    %v564 = vunpack.c.h.b16 %v205
    %v565 = vunpack.c.l.b16 %v206
    %v566 = vunpack.c.h.b16 %v206
    %v567 = vunpack.c.l.b16 %v207
    %v568 = vunpack.c.h.b16 %v207
    %v569 = vunpack.c.l.b16 %v208
    %v570 = vunpack.c.h.b16 %v208
    %v571 = vunpack.c.l.b16 %v209
    %v572 = vunpack.c.h.b16 %v209
    %v573 = vunpack.c.l.b16 %v210
    %v574 = vunpack.c.h.b16 %v210
    %v575 = vunpack.c.l.b16 %v211
    %v576 = vunpack.c.h.b16 %v211
    %v577 = vunpack.c.l.b16 %v212
    %v578 = vunpack.c.h.b16 %v212
    %v579 = vunpack.c.l.b16 %v213
    %v580 = vunpack.c.h.b16 %v213
    %v581 = vunpack.c.l.b16 %v214
    %v582 = vunpack.c.h.b16 %v214
    %v583 = vunpack.c.l.b16 %v215
    %v584 = vunpack.c.h.b16 %v215
    %v585 = vunpack.c.l.b16 %v216
    %v586 = vunpack.c.h.b16 %v216
    %v587 = vunpack.c.l.b16 %v217
    %v588 = vunpack.c.h.b16 %v217
    %v589 = vunpack.c.l.b16 %v218
    %v590 = vunpack.c.h.b16 %v218
    %v591 = vunpack.c.l.b16 %v219
    %v592 = vunpack.c.h.b16 %v219
    %v593 = vunpack.c.l.b16 %v220
    %v594 = vunpack.c.h.b16 %v220
    %v595 = vunpack.c.l.b16 %v221
    %v596 = vunpack.c.h.b16 %v221
    %v597 = vunpack.c.l.b16 %v222
    %v598 = vunpack.c.h.b16 %v222
    %v599 = vunpack.c.l.b16 %v223
    %v600 = vunpack.c.h.b16 %v223
    %v601 = vunpack.c.l.b16 %v224
    %v602 = vunpack.c.h.b16 %v224
    %v603 = vunpack.c.l.b16 %v225
    %v604 = vunpack.c.h.b16 %v225
    %v605 = vunpack.c.l.b16 %v226
    %v606 = vunpack.c.h.b16 %v226
    %v607 = vunpack.c.l.b16 %v227
    %v608 = vunpack.c.h.b16 %v227
    %v609 = vunpack.c.l.b16 %v228
    %v610 = vunpack.c.h.b16 %v228
    %v611 = vunpack.c.l.b16 %v229
    %v612 = vunpack.c.h.b16 %v229
    %v613 = vunpack.c.l.b16 %v230
    %v614 = vunpack.c.h.b16 %v230
    %v615 = vunpack.c.l.b16 %v231
    %v616 = vunpack.c.h.b16 %v231
    %v617 = vunpack.c.l.b16 %v232
    %v618 = vunpack.c.h.b16 %v232
    %v619 = vunpack.c.l.b16 %v233
    %v620 = vunpack.c.h.b16 %v233
    %v621 = vunpack.c.l.b16 %v234
    %v622 = vunpack.c.h.b16 %v234
    %v623 = vunpack.c.l.b16 %v235
    %v624 = vunpack.c.h.b16 %v235
    %v625 = vunpack.c.l.b16 %v236
    %v626 = vunpack.c.h.b16 %v236
    %v627 = vpack.c.b16 %v379, %v371
    %v628 = vpack.c.b16 %v380, %v372
    %v629 = vpack.c.b16 %v381, %v373
    %v630 = vpack.c.b16 %v382, %v374
    %v631 = vpack.c.b16 %v383, %v375
    %v632 = vpack.c.b16 %v384, %v376
    %v633 = vpack.c.b16 %v385, %v377
    %v634 = vpack.c.b16 %v386, %v378
    %v635 = vpack.c.b16 %v395, %v387
    %v636 = vpack.c.b16 %v396, %v388
    %v637 = vpack.c.b16 %v397, %v389
    %v638 = vpack.c.b16 %v398, %v390
    %v639 = vpack.c.b16 %v399, %v391
    %v640 = vpack.c.b16 %v400, %v392
    %v641 = vpack.c.b16 %v401, %v393
    %v642 = vpack.c.b16 %v402, %v394
    %v643 = vpack.c.b16 %v411, %v403
    %v644 = vpack.c.b16 %v412, %v404
    %v645 = vpack.c.b16 %v413, %v405
    %v646 = vpack.c.b16 %v414, %v406
    %v647 = vpack.c.b16 %v415, %v407
    %v648 = vpack.c.b16 %v416, %v408
    %v649 = vpack.c.b16 %v417, %v409
    %v650 = vpack.c.b16 %v418, %v410
    %v651 = vpack.c.b16 %v427, %v419
    %v652 = vpack.c.b16 %v428, %v420
    %v653 = vpack.c.b16 %v429, %v421
    %v654 = vpack.c.b16 %v430, %v422
    %v655 = vpack.c.b16 %v431, %v423
    %v656 = vpack.c.b16 %v432, %v424
    %v657 = vpack.c.b16 %v433, %v425
    %v658 = vpack.c.b16 %v434, %v426
    %v659 = vpack.c.b16 %v443, %v435
    %v660 = vpack.c.b16 %v444, %v436
    %v661 = vpack.c.b16 %v445, %v437
    %v662 = vpack.c.b16 %v446, %v438
    %v663 = vpack.c.b16 %v447, %v439
    %v664 = vpack.c.b16 %v448, %v440
    %v665 = vpack.c.b16 %v449, %v441
    %v666 = vpack.c.b16 %v450, %v442
    %v667 = vpack.c.b16 %v459, %v451
    %v668 = vpack.c.b16 %v460, %v452
    %v669 = vpack.c.b16 %v461, %v453
    %v670 = vpack.c.b16 %v462, %v454
    %v671 = vpack.c.b16 %v463, %v455
    %v672 = vpack.c.b16 %v464, %v456
    %v673 = vpack.c.b16 %v465, %v457
    %v674 = vpack.c.b16 %v466, %v458
    %v675 = vpack.c.b16 %v475, %v467
    %v676 = vpack.c.b16 %v476, %v468
    %v677 = vpack.c.b16 %v477, %v469
    %v678 = vpack.c.b16 %v478, %v470
    %v679 = vpack.c.b16 %v479, %v471
    %v680 = vpack.c.b16 %v480, %v472
    %v681 = vpack.c.b16 %v481, %v473
    %v682 = vpack.c.b16 %v482, %v474
    %v683 = vpack.c.b16 %v491, %v483
    %v684 = vpack.c.b16 %v492, %v484
    %v685 = vpack.c.b16 %v493, %v485
    %v686 = vpack.c.b16 %v494, %v486
    %v687 = vpack.c.b16 %v495, %v487
    %v688 = vpack.c.b16 %v496, %v488
    %v689 = vpack.c.b16 %v497, %v489
    %v690 = vpack.c.b16 %v498, %v490
    %v691 = vpack.c.b16 %v507, %v499
    %v692 = vpack.c.b16 %v508, %v500
    %v693 = vpack.c.b16 %v509, %v501
    %v694 = vpack.c.b16 %v510, %v502
    %v695 = vpack.c.b16 %v511, %v503
    %v696 = vpack.c.b16 %v512, %v504
    %v697 = vpack.c.b16 %v513, %v505
    %v698 = vpack.c.b16 %v514, %v506
    %v699 = vpack.c.b16 %v523, %v515
    %v700 = vpack.c.b16 %v524, %v516
    %v701 = vpack.c.b16 %v525, %v517
    %v702 = vpack.c.b16 %v526, %v518
    %v703 = vpack.c.b16 %v527, %v519
    %v704 = vpack.c.b16 %v528, %v520
    %v705 = vpack.c.b16 %v529, %v521
    %v706 = vpack.c.b16 %v530, %v522
    %v707 = vpack.c.b16 %v539, %v531
    %v708 = vpack.c.b16 %v540, %v532
    %v709 = vpack.c.b16 %v541, %v533
    %v710 = vpack.c.b16 %v542, %v534
    %v711 = vpack.c.b16 %v543, %v535
    %v712 = vpack.c.b16 %v544, %v536
    %v713 = vpack.c.b16 %v545, %v537
    %v714 = vpack.c.b16 %v546, %v538
    %v715 = vpack.c.b16 %v555, %v547
    %v716 = vpack.c.b16 %v556, %v548
    %v717 = vpack.c.b16 %v557, %v549
    %v718 = vpack.c.b16 %v558, %v550
    %v719 = vpack.c.b16 %v559, %v551
    %v720 = vpack.c.b16 %v560, %v552
    %v721 = vpack.c.b16 %v561, %v553
    %v722 = vpack.c.b16 %v562, %v554
    %v723 = vpack.c.b16 %v571, %v563
    %v724 = vpack.c.b16 %v572, %v564
    %v725 = vpack.c.b16 %v573, %v565
    %v726 = vpack.c.b16 %v574, %v566
    %v727 = vpack.c.b16 %v575, %v567
    %v728 = vpack.c.b16 %v576, %v568
    %v729 = vpack.c.b16 %v577, %v569
    %v730 = vpack.c.b16 %v578, %v570
    %v731 = vpack.c.b16 %v587, %v579
    %v732 = vpack.c.b16 %v588, %v580
    %v733 = vpack.c.b16 %v589, %v581
    %v734 = vpack.c.b16 %v590, %v582
    %v735 = vpack.c.b16 %v591, %v583
    %v736 = vpack.c.b16 %v592, %v584
    %v737 = vpack.c.b16 %v593, %v585
    %v738 = vpack.c.b16 %v594, %v586
    %v739 = vpack.c.b16 %v603, %v595
    %v740 = vpack.c.b16 %v604, %v596
    %v741 = vpack.c.b16 %v605, %v597
    %v742 = vpack.c.b16 %v606, %v598
    %v743 = vpack.c.b16 %v607, %v599
    %v744 = vpack.c.b16 %v608, %v600
    %v745 = vpack.c.b16 %v609, %v601
    %v746 = vpack.c.b16 %v610, %v602
    %v747 = vpack.c.b16 %v619, %v611
    %v748 = vpack.c.b16 %v620, %v612
    %v749 = vpack.c.b16 %v621, %v613
    %v750 = vpack.c.b16 %v622, %v614
    %v751 = vpack.c.b16 %v623, %v615
    %v752 = vpack.c.b16 %v624, %v616
    %v753 = vpack.c.b16 %v625, %v617
    %v754 = vpack.c.b16 %v626, %v618
    %883 = vmatpush.bf16.msra.mxu0 %v683
    %884 = vmatpush.bf16.msra.mxu0 %v675
    %885 = vmatpush.bf16.msra.mxu0 %v667
    %886 = vmatpush.bf16.msra.mxu0 %v659
    %887 = vmatpush.bf16.msra.mxu0 %v651
    %888 = vmatpush.bf16.msra.mxu0 %v643
    %889 = vmatpush.bf16.msra.mxu0 %v635
    %890 = vmatpush.bf16.msra.mxu0 %v627
    %891 = vmatmul.bf16.gmra.mxu0 %v239
    %v892 = vpop.f32.mrf.mxu0
    %v893 = vadd.f32 0.0, %v892
    %v894 = vpop.f32.mrf.mxu0
    %895 = vdwg.mxu0
    %896 = vmatpush.bf16.msra.mxu0 %v747
    %897 = vmatpush.bf16.msra.mxu0 %v739
    %898 = vmatpush.bf16.msra.mxu0 %v731
    %899 = vmatpush.bf16.msra.mxu0 %v723
    %900 = vmatpush.bf16.msra.mxu0 %v715
    %901 = vmatpush.bf16.msra.mxu0 %v707
    %902 = vmatpush.bf16.msra.mxu0 %v699
    %903 = vmatpush.bf16.msra.mxu0 %v691
    %904 = vmatmul.bf16.gmra.mxu0 %v240
    %v905 = vpop.f32.mrf.mxu0
    %v906 = vadd.f32 %v893, %v905
    %v907 = vpop.f32.mrf.mxu0
    %908 = vdwg.mxu0
    %909 = vmatpush.bf16.msra.mxu0 %v684
    %910 = vmatpush.bf16.msra.mxu0 %v676
    %911 = vmatpush.bf16.msra.mxu0 %v668
    %912 = vmatpush.bf16.msra.mxu0 %v660
    %913 = vmatpush.bf16.msra.mxu0 %v652
    %914 = vmatpush.bf16.msra.mxu0 %v644
    %915 = vmatpush.bf16.msra.mxu0 %v636
    %916 = vmatpush.bf16.msra.mxu0 %v628
    %917 = vmatmul.bf16.gmra.mxu0 %v239
    %v918 = vpop.f32.mrf.mxu0
    %v919 = vadd.f32 0.0, %v918
    %v920 = vpop.f32.mrf.mxu0
    %921 = vdwg.mxu0
    %922 = vmatpush.bf16.msra.mxu0 %v748
    %923 = vmatpush.bf16.msra.mxu0 %v740
    %924 = vmatpush.bf16.msra.mxu0 %v732
    %925 = vmatpush.bf16.msra.mxu0 %v724
    %926 = vmatpush.bf16.msra.mxu0 %v716
    %927 = vmatpush.bf16.msra.mxu0 %v708
    %928 = vmatpush.bf16.msra.mxu0 %v700
    %929 = vmatpush.bf16.msra.mxu0 %v692
    %930 = vmatmul.bf16.gmra.mxu0 %v240
    %v931 = vpop.f32.mrf.mxu0
    %v932 = vadd.f32 %v919, %v931
    %v933 = vpop.f32.mrf.mxu0
    %934 = vdwg.mxu0
    %935 = vmatpush.bf16.msra.mxu0 %v685
    %936 = vmatpush.bf16.msra.mxu0 %v677
    %937 = vmatpush.bf16.msra.mxu0 %v669
    %938 = vmatpush.bf16.msra.mxu0 %v661
    %939 = vmatpush.bf16.msra.mxu0 %v653
    %940 = vmatpush.bf16.msra.mxu0 %v645
    %941 = vmatpush.bf16.msra.mxu0 %v637
    %942 = vmatpush.bf16.msra.mxu0 %v629
    %943 = vmatmul.bf16.gmra.mxu0 %v239
    %v944 = vpop.f32.mrf.mxu0
    %v945 = vadd.f32 0.0, %v944
    %v946 = vpop.f32.mrf.mxu0
    %947 = vdwg.mxu0
    %948 = vmatpush.bf16.msra.mxu0 %v749
    %949 = vmatpush.bf16.msra.mxu0 %v741
    %950 = vmatpush.bf16.msra.mxu0 %v733
    %951 = vmatpush.bf16.msra.mxu0 %v725
    %952 = vmatpush.bf16.msra.mxu0 %v717
    %953 = vmatpush.bf16.msra.mxu0 %v709
    %954 = vmatpush.bf16.msra.mxu0 %v701
    %955 = vmatpush.bf16.msra.mxu0 %v693
    %956 = vmatmul.bf16.gmra.mxu0 %v240
    %v957 = vpop.f32.mrf.mxu0
    %v958 = vadd.f32 %v945, %v957
    %v959 = vpop.f32.mrf.mxu0
    %960 = vdwg.mxu0
    %961 = vmatpush.bf16.msra.mxu0 %v686
    %962 = vmatpush.bf16.msra.mxu0 %v678
    %963 = vmatpush.bf16.msra.mxu0 %v670
    %964 = vmatpush.bf16.msra.mxu0 %v662
    %965 = vmatpush.bf16.msra.mxu0 %v654
    %966 = vmatpush.bf16.msra.mxu0 %v646
    %967 = vmatpush.bf16.msra.mxu0 %v638
    %968 = vmatpush.bf16.msra.mxu0 %v630
    %969 = vmatmul.bf16.gmra.mxu0 %v239
    %v970 = vpop.f32.mrf.mxu0
    %v971 = vadd.f32 0.0, %v970
    %v972 = vpop.f32.mrf.mxu0
    %973 = vdwg.mxu0
    %974 = vmatpush.bf16.msra.mxu0 %v750
    %975 = vmatpush.bf16.msra.mxu0 %v742
    %976 = vmatpush.bf16.msra.mxu0 %v734
    %977 = vmatpush.bf16.msra.mxu0 %v726
    %978 = vmatpush.bf16.msra.mxu0 %v718
    %979 = vmatpush.bf16.msra.mxu0 %v710
    %980 = vmatpush.bf16.msra.mxu0 %v702
    %981 = vmatpush.bf16.msra.mxu0 %v694
    %982 = vmatmul.bf16.gmra.mxu0 %v240
    %v983 = vpop.f32.mrf.mxu0
    %v984 = vadd.f32 %v971, %v983
    %v985 = vpop.f32.mrf.mxu0
    %986 = vdwg.mxu0
    %987 = vmatpush.bf16.msra.mxu0 %v687
    %988 = vmatpush.bf16.msra.mxu0 %v679
    %989 = vmatpush.bf16.msra.mxu0 %v671
    %990 = vmatpush.bf16.msra.mxu0 %v663
    %991 = vmatpush.bf16.msra.mxu0 %v655
    %992 = vmatpush.bf16.msra.mxu0 %v647
    %993 = vmatpush.bf16.msra.mxu0 %v639
    %994 = vmatpush.bf16.msra.mxu0 %v631
    %995 = vmatmul.bf16.gmra.mxu0 %v239
    %v996 = vpop.f32.mrf.mxu0
    %v997 = vadd.f32 0.0, %v996
    %v998 = vpop.f32.mrf.mxu0
    %999 = vdwg.mxu0
    %1000 = vmatpush.bf16.msra.mxu0 %v751
    %1001 = vmatpush.bf16.msra.mxu0 %v743
    %1002 = vmatpush.bf16.msra.mxu0 %v735
    %1003 = vmatpush.bf16.msra.mxu0 %v727
    %1004 = vmatpush.bf16.msra.mxu0 %v719
    %1005 = vmatpush.bf16.msra.mxu0 %v711
    %1006 = vmatpush.bf16.msra.mxu0 %v703
    %1007 = vmatpush.bf16.msra.mxu0 %v695
    %1008 = vmatmul.bf16.gmra.mxu0 %v240
    %v1009 = vpop.f32.mrf.mxu0
    %v1010 = vadd.f32 %v997, %v1009
    %v1011 = vpop.f32.mrf.mxu0
    %1012 = vdwg.mxu0
    %1013 = vmatpush.bf16.msra.mxu0 %v688
    %1014 = vmatpush.bf16.msra.mxu0 %v680
    %1015 = vmatpush.bf16.msra.mxu0 %v672
    %1016 = vmatpush.bf16.msra.mxu0 %v664
    %1017 = vmatpush.bf16.msra.mxu0 %v656
    %1018 = vmatpush.bf16.msra.mxu0 %v648
    %1019 = vmatpush.bf16.msra.mxu0 %v640
    %1020 = vmatpush.bf16.msra.mxu0 %v632
    %1021 = vmatmul.bf16.gmra.mxu0 %v239
    %v1022 = vpop.f32.mrf.mxu0
    %v1023 = vadd.f32 0.0, %v1022
    %v1024 = vpop.f32.mrf.mxu0
    %1025 = vdwg.mxu0
    %1026 = vmatpush.bf16.msra.mxu0 %v752
    %1027 = vmatpush.bf16.msra.mxu0 %v744
    %1028 = vmatpush.bf16.msra.mxu0 %v736
    %1029 = vmatpush.bf16.msra.mxu0 %v728
    %1030 = vmatpush.bf16.msra.mxu0 %v720
    %1031 = vmatpush.bf16.msra.mxu0 %v712
    %1032 = vmatpush.bf16.msra.mxu0 %v704
    %1033 = vmatpush.bf16.msra.mxu0 %v696
    %1034 = vmatmul.bf16.gmra.mxu0 %v240
    %v1035 = vpop.f32.mrf.mxu0
    %v1036 = vadd.f32 %v1023, %v1035
    %v1037 = vpop.f32.mrf.mxu0
    %1038 = vdwg.mxu0
    %1039 = vmatpush.bf16.msra.mxu0 %v689
    %1040 = vmatpush.bf16.msra.mxu0 %v681
    %1041 = vmatpush.bf16.msra.mxu0 %v673
    %1042 = vmatpush.bf16.msra.mxu0 %v665
    %1043 = vmatpush.bf16.msra.mxu0 %v657
    %1044 = vmatpush.bf16.msra.mxu0 %v649
    %1045 = vmatpush.bf16.msra.mxu0 %v641
    %1046 = vmatpush.bf16.msra.mxu0 %v633
    %1047 = vmatmul.bf16.gmra.mxu0 %v239
    %v1048 = vpop.f32.mrf.mxu0
    %v1049 = vadd.f32 0.0, %v1048
    %v1050 = vpop.f32.mrf.mxu0
    %1051 = vdwg.mxu0
    %1052 = vmatpush.bf16.msra.mxu0 %v753
    %1053 = vmatpush.bf16.msra.mxu0 %v745
    %1054 = vmatpush.bf16.msra.mxu0 %v737
    %1055 = vmatpush.bf16.msra.mxu0 %v729
    %1056 = vmatpush.bf16.msra.mxu0 %v721
    %1057 = vmatpush.bf16.msra.mxu0 %v713
    %1058 = vmatpush.bf16.msra.mxu0 %v705
    %1059 = vmatpush.bf16.msra.mxu0 %v697
    %1060 = vmatmul.bf16.gmra.mxu0 %v240
    %v1061 = vpop.f32.mrf.mxu0
    %v1062 = vadd.f32 %v1049, %v1061
    %v1063 = vpop.f32.mrf.mxu0
    %1064 = vdwg.mxu0
    %1065 = vmatpush.bf16.msra.mxu0 %v690
    %1066 = vmatpush.bf16.msra.mxu0 %v682
    %1067 = vmatpush.bf16.msra.mxu0 %v674
    %1068 = vmatpush.bf16.msra.mxu0 %v666
    %1069 = vmatpush.bf16.msra.mxu0 %v658
    %1070 = vmatpush.bf16.msra.mxu0 %v650
    %1071 = vmatpush.bf16.msra.mxu0 %v642
    %1072 = vmatpush.bf16.msra.mxu0 %v634
    %1073 = vmatmul.bf16.gmra.mxu0 %v239
    %v1074 = vpop.f32.mrf.mxu0
    %v1075 = vadd.f32 0.0, %v1074
    %v1076 = vpop.f32.mrf.mxu0
    %1077 = vdwg.mxu0
    %1078 = vmatpush.bf16.msra.mxu0 %v754
    %1079 = vmatpush.bf16.msra.mxu0 %v746
    %1080 = vmatpush.bf16.msra.mxu0 %v738
    %1081 = vmatpush.bf16.msra.mxu0 %v730
    %1082 = vmatpush.bf16.msra.mxu0 %v722
    %1083 = vmatpush.bf16.msra.mxu0 %v714
    %1084 = vmatpush.bf16.msra.mxu0 %v706
    %1085 = vmatpush.bf16.msra.mxu0 %v698
    %1086 = vmatmul.bf16.gmra.mxu0 %v240
    %v1087 = vpop.f32.mrf.mxu0
    %v1088 = vadd.f32 %v1075, %v1087
    %v1089 = vpop.f32.mrf.mxu0
    %1090 = vdwg.mxu0
    %v1091 = vld [vmem:[%s2] sm:$0x77]
    %v1092 = vld [vmem:[%s2 + $0x8] sm:$0x77]
    %v1095 = vperm.slane %v1091, 0
    %v1096 = vperm.slane %v1091, 4
    %v1097 = vperm.slane %v1092, 0
    %v1098 = vperm.slane %v1092, 4
    %v1103 = vperm.slane %v1095, 0
    %v1104 = vperm.slane %v1096, 0
    %v1105 = vperm.slane %v1097, 0
    %v1106 = vperm.slane %v1098, 0
    %v1107 = vadd.f32 %v906, %v1103
    %v1108 = vadd.f32 %v932, %v1104
    %v1109 = vadd.f32 %v958, %v1105
    %v1110 = vadd.f32 %v984, %v1106
    %v1111 = vmax.f32 %v1107, 0.0
    %v1112 = vmax.f32 %v1108, 0.0
    %v1113 = vmax.f32 %v1109, 0.0
    %v1114 = vmax.f32 %v1110, 0.0
    %v1115 = vadd.f32 %v1010, %v1103
    %v1116 = vadd.f32 %v1036, %v1104
    %v1117 = vadd.f32 %v1062, %v1105
    %v1118 = vadd.f32 %v1088, %v1106
    %v1119 = vmax.f32 %v1115, 0.0
    %v1120 = vmax.f32 %v1116, 0.0
    %v1121 = vmax.f32 %v1117, 0.0
    %v1122 = vmax.f32 %v1118, 0.0
    %v1123 = vadd.f32 %v1111, %v1119
    %v1124 = vadd.f32 %v1112, %v1120
    %v1125 = vadd.f32 %v1113, %v1121
    %v1126 = vadd.f32 %v1114, %v1122
    %v1127 = vmul.f32 %v1123, 0.5
    %v1128 = vmul.f32 %v1124, 0.5
    %v1129 = vmul.f32 %v1125, 0.5
    %v1130 = vmul.f32 %v1126, 0.5
    %v1131 = vld [vmem:[#allocation4] sm:$0xff]
    %v1132 = vld [vmem:[#allocation4 + $0x8] sm:$0xff]
    %v1133 = vld [vmem:[#allocation4 + $0x10] sm:$0xff]
    %v1134 = vld [vmem:[#allocation4 + $0x18] sm:$0xff]
    %v1135 = vld [vmem:[#allocation4 + $0x20] sm:$0xff]
    %v1136 = vld [vmem:[#allocation4 + $0x28] sm:$0xff]
    %v1137 = vld [vmem:[#allocation4 + $0x30] sm:$0xff]
    %v1138 = vld [vmem:[#allocation4 + $0x38] sm:$0xff]
    %v1139 = vld [vmem:[#allocation4 + $0x40] sm:$0xff]
    %v1140 = vld [vmem:[#allocation4 + $0x48] sm:$0xff]
    %v1141 = vld [vmem:[#allocation4 + $0x50] sm:$0xff]
    %v1142 = vld [vmem:[#allocation4 + $0x58] sm:$0xff]
    %v1143 = vld [vmem:[#allocation4 + $0x60] sm:$0xff]
    %v1144 = vld [vmem:[#allocation4 + $0x68] sm:$0xff]
    %v1145 = vld [vmem:[#allocation4 + $0x70] sm:$0xff]
    %v1146 = vld [vmem:[#allocation4 + $0x78] sm:$0xff]
    %v1147 = vld [vmem:[#allocation4 + $0x80] sm:$0xff]
    %v1148 = vld [vmem:[#allocation4 + $0x88] sm:$0xff]
    %v1149 = vld [vmem:[#allocation4 + $0x90] sm:$0xff]
    %v1150 = vld [vmem:[#allocation4 + $0x98] sm:$0xff]
    %v1151 = vld [vmem:[#allocation4 + $0xa0] sm:$0xff]
    %v1152 = vld [vmem:[#allocation4 + $0xa8] sm:$0xff]
    %v1153 = vld [vmem:[#allocation4 + $0xb0] sm:$0xff]
    %v1154 = vld [vmem:[#allocation4 + $0xb8] sm:$0xff]
    %v1155 = vld [vmem:[#allocation4 + $0xc0] sm:$0xff]
    %v1156 = vld [vmem:[#allocation4 + $0xc8] sm:$0xff]
    %v1157 = vld [vmem:[#allocation4 + $0xd0] sm:$0xff]
    %v1158 = vld [vmem:[#allocation4 + $0xd8] sm:$0xff]
    %v1159 = vld [vmem:[#allocation4 + $0xe0] sm:$0xff]
    %v1160 = vld [vmem:[#allocation4 + $0xe8] sm:$0xff]
    %v1161 = vld [vmem:[#allocation4 + $0xf0] sm:$0xff]
    %v1162 = vld [vmem:[#allocation4 + $0xf8] sm:$0xff]
    %v1163 = vld [vmem:[#allocation4 + $0x100] sm:$0xff]
    %v1164 = vld [vmem:[#allocation4 + $0x108] sm:$0xff]
    %v1165 = vld [vmem:[#allocation4 + $0x110] sm:$0xff]
    %v1166 = vld [vmem:[#allocation4 + $0x118] sm:$0xff]
    %v1167 = vld [vmem:[#allocation4 + $0x120] sm:$0xff]
    %v1168 = vld [vmem:[#allocation4 + $0x128] sm:$0xff]
    %v1169 = vld [vmem:[#allocation4 + $0x130] sm:$0xff]
    %v1170 = vld [vmem:[#allocation4 + $0x138] sm:$0xff]
    %v1171 = vld [vmem:[#allocation4 + $0x140] sm:$0xff]
    %v1172 = vld [vmem:[#allocation4 + $0x148] sm:$0xff]
    %v1173 = vld [vmem:[#allocation4 + $0x150] sm:$0xff]
    %v1174 = vld [vmem:[#allocation4 + $0x158] sm:$0xff]
    %v1175 = vld [vmem:[#allocation4 + $0x160] sm:$0xff]
    %v1176 = vld [vmem:[#allocation4 + $0x168] sm:$0xff]
    %v1177 = vld [vmem:[#allocation4 + $0x170] sm:$0xff]
    %v1178 = vld [vmem:[#allocation4 + $0x178] sm:$0xff]
    %v1179 = vld [vmem:[#allocation4 + $0x180] sm:$0xff]
    %v1180 = vld [vmem:[#allocation4 + $0x188] sm:$0xff]
    %v1181 = vld [vmem:[#allocation4 + $0x190] sm:$0xff]
    %v1182 = vld [vmem:[#allocation4 + $0x198] sm:$0xff]
    %v1183 = vld [vmem:[#allocation4 + $0x1a0] sm:$0xff]
    %v1184 = vld [vmem:[#allocation4 + $0x1a8] sm:$0xff]
    %v1185 = vld [vmem:[#allocation4 + $0x1b0] sm:$0xff]
    %v1186 = vld [vmem:[#allocation4 + $0x1b8] sm:$0xff]
    %v1187 = vld [vmem:[#allocation4 + $0x1c0] sm:$0xff]
    %v1188 = vld [vmem:[#allocation4 + $0x1c8] sm:$0xff]
    %v1189 = vld [vmem:[#allocation4 + $0x1d0] sm:$0xff]
    %v1190 = vld [vmem:[#allocation4 + $0x1d8] sm:$0xff]
    %v1191 = vld [vmem:[#allocation4 + $0x1e0] sm:$0xff]
    %v1192 = vld [vmem:[#allocation4 + $0x1e8] sm:$0xff]
    %v1193 = vld [vmem:[#allocation4 + $0x1f0] sm:$0xff]
    %v1194 = vld [vmem:[#allocation4 + $0x1f8] sm:$0xff]
    %v1195 = vld [vmem:[#allocation4 + $0x200] sm:$0xff]
    %v1196 = vld [vmem:[#allocation4 + $0x208] sm:$0xff]
    %v1197 = vld [vmem:[#allocation4 + $0x210] sm:$0xff]
    %v1198 = vld [vmem:[#allocation4 + $0x218] sm:$0xff]
    %v1199 = vld [vmem:[#allocation4 + $0x220] sm:$0xff]
    %v1200 = vld [vmem:[#allocation4 + $0x228] sm:$0xff]
    %v1201 = vld [vmem:[#allocation4 + $0x230] sm:$0xff]
    %v1202 = vld [vmem:[#allocation4 + $0x238] sm:$0xff]
    %v1203 = vld [vmem:[#allocation4 + $0x240] sm:$0xff]
    %v1204 = vld [vmem:[#allocation4 + $0x248] sm:$0xff]
    %v1205 = vld [vmem:[#allocation4 + $0x250] sm:$0xff]
    %v1206 = vld [vmem:[#allocation4 + $0x258] sm:$0xff]
    %v1207 = vld [vmem:[#allocation4 + $0x260] sm:$0xff]
    %v1208 = vld [vmem:[#allocation4 + $0x268] sm:$0xff]
    %v1209 = vld [vmem:[#allocation4 + $0x270] sm:$0xff]
    %v1210 = vld [vmem:[#allocation4 + $0x278] sm:$0xff]
    %v1211 = vld [vmem:[#allocation4 + $0x280] sm:$0xff]
    %v1212 = vld [vmem:[#allocation4 + $0x288] sm:$0xff]
    %v1213 = vld [vmem:[#allocation4 + $0x290] sm:$0xff]
    %v1214 = vld [vmem:[#allocation4 + $0x298] sm:$0xff]
    %v1215 = vld [vmem:[#allocation4 + $0x2a0] sm:$0xff]
    %v1216 = vld [vmem:[#allocation4 + $0x2a8] sm:$0xff]
    %v1217 = vld [vmem:[#allocation4 + $0x2b0] sm:$0xff]
    %v1218 = vld [vmem:[#allocation4 + $0x2b8] sm:$0xff]
    %v1219 = vld [vmem:[#allocation4 + $0x2c0] sm:$0xff]
    %v1220 = vld [vmem:[#allocation4 + $0x2c8] sm:$0xff]
    %v1221 = vld [vmem:[#allocation4 + $0x2d0] sm:$0xff]
    %v1222 = vld [vmem:[#allocation4 + $0x2d8] sm:$0xff]
    %v1223 = vld [vmem:[#allocation4 + $0x2e0] sm:$0xff]
    %v1224 = vld [vmem:[#allocation4 + $0x2e8] sm:$0xff]
    %v1225 = vld [vmem:[#allocation4 + $0x2f0] sm:$0xff]
    %v1226 = vld [vmem:[#allocation4 + $0x2f8] sm:$0xff]
    %v1227 = vld [vmem:[#allocation4 + $0x300] sm:$0xff]
    %v1228 = vld [vmem:[#allocation4 + $0x308] sm:$0xff]
    %v1229 = vld [vmem:[#allocation4 + $0x310] sm:$0xff]
    %v1230 = vld [vmem:[#allocation4 + $0x318] sm:$0xff]
    %v1231 = vld [vmem:[#allocation4 + $0x320] sm:$0xff]
    %v1232 = vld [vmem:[#allocation4 + $0x328] sm:$0xff]
    %v1233 = vld [vmem:[#allocation4 + $0x330] sm:$0xff]
    %v1234 = vld [vmem:[#allocation4 + $0x338] sm:$0xff]
    %v1235 = vld [vmem:[#allocation4 + $0x340] sm:$0xff]
    %v1236 = vld [vmem:[#allocation4 + $0x348] sm:$0xff]
    %v1237 = vld [vmem:[#allocation4 + $0x350] sm:$0xff]
    %v1238 = vld [vmem:[#allocation4 + $0x358] sm:$0xff]
    %v1239 = vld [vmem:[#allocation4 + $0x360] sm:$0xff]
    %v1240 = vld [vmem:[#allocation4 + $0x368] sm:$0xff]
    %v1241 = vld [vmem:[#allocation4 + $0x370] sm:$0xff]
    %v1242 = vld [vmem:[#allocation4 + $0x378] sm:$0xff]
    %v1243 = vld [vmem:[#allocation4 + $0x380] sm:$0xff]
    %v1244 = vld [vmem:[#allocation4 + $0x388] sm:$0xff]
    %v1245 = vld [vmem:[#allocation4 + $0x390] sm:$0xff]
    %v1246 = vld [vmem:[#allocation4 + $0x398] sm:$0xff]
    %v1247 = vld [vmem:[#allocation4 + $0x3a0] sm:$0xff]
    %v1248 = vld [vmem:[#allocation4 + $0x3a8] sm:$0xff]
    %v1249 = vld [vmem:[#allocation4 + $0x3b0] sm:$0xff]
    %v1250 = vld [vmem:[#allocation4 + $0x3b8] sm:$0xff]
    %v1251 = vld [vmem:[#allocation4 + $0x3c0] sm:$0xff]
    %v1252 = vld [vmem:[#allocation4 + $0x3c8] sm:$0xff]
    %v1253 = vld [vmem:[#allocation4 + $0x3d0] sm:$0xff]
    %v1254 = vld [vmem:[#allocation4 + $0x3d8] sm:$0xff]
    %v1255 = vld [vmem:[#allocation4 + $0x3e0] sm:$0xff]
    %v1256 = vld [vmem:[#allocation4 + $0x3e8] sm:$0xff]
    %v1257 = vld [vmem:[#allocation4 + $0x3f0] sm:$0xff]
    %v1258 = vld [vmem:[#allocation4 + $0x3f8] sm:$0xff]
    %v1259 = vld [vmem:[#allocation4 + $0x400] sm:$0xff]
    %v1260 = vld [vmem:[#allocation4 + $0x408] sm:$0xff]
    %v1261 = vld [vmem:[#allocation4 + $0x410] sm:$0xff]
    %v1262 = vld [vmem:[#allocation4 + $0x418] sm:$0xff]
    %v1263 = vld [vmem:[#allocation4 + $0x420] sm:$0xff]
    %v1264 = vld [vmem:[#allocation4 + $0x428] sm:$0xff]
    %v1265 = vld [vmem:[#allocation4 + $0x430] sm:$0xff]
    %v1266 = vld [vmem:[#allocation4 + $0x438] sm:$0xff]
    %v1267 = vld [vmem:[#allocation4 + $0x440] sm:$0xff]
    %v1268 = vld [vmem:[#allocation4 + $0x448] sm:$0xff]
    %v1269 = vld [vmem:[#allocation4 + $0x450] sm:$0xff]
    %v1270 = vld [vmem:[#allocation4 + $0x458] sm:$0xff]
    %v1271 = vld [vmem:[#allocation4 + $0x460] sm:$0xff]
    %v1272 = vld [vmem:[#allocation4 + $0x468] sm:$0xff]
    %v1273 = vld [vmem:[#allocation4 + $0x470] sm:$0xff]
    %v1274 = vld [vmem:[#allocation4 + $0x478] sm:$0xff]
    %v1275 = vld [vmem:[#allocation4 + $0x480] sm:$0xff]
    %v1276 = vld [vmem:[#allocation4 + $0x488] sm:$0xff]
    %v1277 = vld [vmem:[#allocation4 + $0x490] sm:$0xff]
    %v1278 = vld [vmem:[#allocation4 + $0x498] sm:$0xff]
    %v1279 = vld [vmem:[#allocation4 + $0x4a0] sm:$0xff]
    %v1280 = vld [vmem:[#allocation4 + $0x4a8] sm:$0xff]
    %v1281 = vld [vmem:[#allocation4 + $0x4b0] sm:$0xff]
    %v1282 = vld [vmem:[#allocation4 + $0x4b8] sm:$0xff]
    %v1283 = vld [vmem:[#allocation4 + $0x4c0] sm:$0xff]
    %v1284 = vld [vmem:[#allocation4 + $0x4c8] sm:$0xff]
    %v1285 = vld [vmem:[#allocation4 + $0x4d0] sm:$0xff]
    %v1286 = vld [vmem:[#allocation4 + $0x4d8] sm:$0xff]
    %v1287 = vld [vmem:[#allocation4 + $0x4e0] sm:$0xff]
    %v1288 = vld [vmem:[#allocation4 + $0x4e8] sm:$0xff]
    %v1289 = vld [vmem:[#allocation4 + $0x4f0] sm:$0xff]
    %v1290 = vld [vmem:[#allocation4 + $0x4f8] sm:$0xff]
    %v1291 = vld [vmem:[#allocation4 + $0x500] sm:$0xff]
    %v1292 = vld [vmem:[#allocation4 + $0x508] sm:$0xff]
    %v1293 = vld [vmem:[#allocation4 + $0x510] sm:$0xff]
    %v1294 = vld [vmem:[#allocation4 + $0x518] sm:$0xff]
    %v1295 = vld [vmem:[#allocation4 + $0x520] sm:$0xff]
    %v1296 = vld [vmem:[#allocation4 + $0x528] sm:$0xff]
    %v1297 = vld [vmem:[#allocation4 + $0x530] sm:$0xff]
    %v1298 = vld [vmem:[#allocation4 + $0x538] sm:$0xff]
    %v1299 = vld [vmem:[#allocation4 + $0x540] sm:$0xff]
    %v1300 = vld [vmem:[#allocation4 + $0x548] sm:$0xff]
    %v1301 = vld [vmem:[#allocation4 + $0x550] sm:$0xff]
    %v1302 = vld [vmem:[#allocation4 + $0x558] sm:$0xff]
    %v1303 = vld [vmem:[#allocation4 + $0x560] sm:$0xff]
    %v1304 = vld [vmem:[#allocation4 + $0x568] sm:$0xff]
    %v1305 = vld [vmem:[#allocation4 + $0x570] sm:$0xff]
    %v1306 = vld [vmem:[#allocation4 + $0x578] sm:$0xff]
    %v1307 = vld [vmem:[#allocation4 + $0x580] sm:$0xff]
    %v1308 = vld [vmem:[#allocation4 + $0x588] sm:$0xff]
    %v1309 = vld [vmem:[#allocation4 + $0x590] sm:$0xff]
    %v1310 = vld [vmem:[#allocation4 + $0x598] sm:$0xff]
    %v1311 = vld [vmem:[#allocation4 + $0x5a0] sm:$0xff]
    %v1312 = vld [vmem:[#allocation4 + $0x5a8] sm:$0xff]
    %v1313 = vld [vmem:[#allocation4 + $0x5b0] sm:$0xff]
    %v1314 = vld [vmem:[#allocation4 + $0x5b8] sm:$0xff]
    %v1315 = vld [vmem:[#allocation4 + $0x5c0] sm:$0xff]
    %v1316 = vld [vmem:[#allocation4 + $0x5c8] sm:$0xff]
    %v1317 = vld [vmem:[#allocation4 + $0x5d0] sm:$0xff]
    %v1318 = vld [vmem:[#allocation4 + $0x5d8] sm:$0xff]
    %v1319 = vld [vmem:[#allocation4 + $0x5e0] sm:$0xff]
    %v1320 = vld [vmem:[#allocation4 + $0x5e8] sm:$0xff]
    %v1321 = vld [vmem:[#allocation4 + $0x5f0] sm:$0xff]
    %v1322 = vld [vmem:[#allocation4 + $0x5f8] sm:$0xff]
    %v1323 = vld [vmem:[#allocation4 + $0x600] sm:$0xff]
    %v1324 = vld [vmem:[#allocation4 + $0x608] sm:$0xff]
    %v1325 = vld [vmem:[#allocation4 + $0x610] sm:$0xff]
    %v1326 = vld [vmem:[#allocation4 + $0x618] sm:$0xff]
    %v1327 = vld [vmem:[#allocation4 + $0x620] sm:$0xff]
    %v1328 = vld [vmem:[#allocation4 + $0x628] sm:$0xff]
    %v1329 = vld [vmem:[#allocation4 + $0x630] sm:$0xff]
    %v1330 = vld [vmem:[#allocation4 + $0x638] sm:$0xff]
    %v1331 = vld [vmem:[#allocation4 + $0x640] sm:$0xff]
    %v1332 = vld [vmem:[#allocation4 + $0x648] sm:$0xff]
    %v1333 = vld [vmem:[#allocation4 + $0x650] sm:$0xff]
    %v1334 = vld [vmem:[#allocation4 + $0x658] sm:$0xff]
    %v1335 = vld [vmem:[#allocation4 + $0x660] sm:$0xff]
    %v1336 = vld [vmem:[#allocation4 + $0x668] sm:$0xff]
    %v1337 = vld [vmem:[#allocation4 + $0x670] sm:$0xff]
    %v1338 = vld [vmem:[#allocation4 + $0x678] sm:$0xff]
    %v1339 = vld [vmem:[#allocation4 + $0x680] sm:$0xff]
    %v1340 = vld [vmem:[#allocation4 + $0x688] sm:$0xff]
    %v1341 = vld [vmem:[#allocation4 + $0x690] sm:$0xff]
    %v1342 = vld [vmem:[#allocation4 + $0x698] sm:$0xff]
    %v1343 = vld [vmem:[#allocation4 + $0x6a0] sm:$0xff]
    %v1344 = vld [vmem:[#allocation4 + $0x6a8] sm:$0xff]
    %v1345 = vld [vmem:[#allocation4 + $0x6b0] sm:$0xff]
    %v1346 = vld [vmem:[#allocation4 + $0x6b8] sm:$0xff]
    %v1347 = vld [vmem:[#allocation4 + $0x6c0] sm:$0xff]
    %v1348 = vld [vmem:[#allocation4 + $0x6c8] sm:$0xff]
    %v1349 = vld [vmem:[#allocation4 + $0x6d0] sm:$0xff]
    %v1350 = vld [vmem:[#allocation4 + $0x6d8] sm:$0xff]
    %v1351 = vld [vmem:[#allocation4 + $0x6e0] sm:$0xff]
    %v1352 = vld [vmem:[#allocation4 + $0x6e8] sm:$0xff]
    %v1353 = vld [vmem:[#allocation4 + $0x6f0] sm:$0xff]
    %v1354 = vld [vmem:[#allocation4 + $0x6f8] sm:$0xff]
    %v1355 = vld [vmem:[#allocation4 + $0x700] sm:$0xff]
    %v1356 = vld [vmem:[#allocation4 + $0x708] sm:$0xff]
    %v1357 = vld [vmem:[#allocation4 + $0x710] sm:$0xff]
    %v1358 = vld [vmem:[#allocation4 + $0x718] sm:$0xff]
    %v1359 = vld [vmem:[#allocation4 + $0x720] sm:$0xff]
    %v1360 = vld [vmem:[#allocation4 + $0x728] sm:$0xff]
    %v1361 = vld [vmem:[#allocation4 + $0x730] sm:$0xff]
    %v1362 = vld [vmem:[#allocation4 + $0x738] sm:$0xff]
    %v1363 = vld [vmem:[#allocation4 + $0x740] sm:$0xff]
    %v1364 = vld [vmem:[#allocation4 + $0x748] sm:$0xff]
    %v1365 = vld [vmem:[#allocation4 + $0x750] sm:$0xff]
    %v1366 = vld [vmem:[#allocation4 + $0x758] sm:$0xff]
    %v1367 = vld [vmem:[#allocation4 + $0x760] sm:$0xff]
    %v1368 = vld [vmem:[#allocation4 + $0x768] sm:$0xff]
    %v1369 = vld [vmem:[#allocation4 + $0x770] sm:$0xff]
    %v1370 = vld [vmem:[#allocation4 + $0x778] sm:$0xff]
    %v1371 = vld [vmem:[#allocation4 + $0x780] sm:$0xff]
    %v1372 = vld [vmem:[#allocation4 + $0x788] sm:$0xff]
    %v1373 = vld [vmem:[#allocation4 + $0x790] sm:$0xff]
    %v1374 = vld [vmem:[#allocation4 + $0x798] sm:$0xff]
    %v1375 = vld [vmem:[#allocation4 + $0x7a0] sm:$0xff]
    %v1376 = vld [vmem:[#allocation4 + $0x7a8] sm:$0xff]
    %v1377 = vld [vmem:[#allocation4 + $0x7b0] sm:$0xff]
    %v1378 = vld [vmem:[#allocation4 + $0x7b8] sm:$0xff]
    %v1379 = vld [vmem:[#allocation4 + $0x7c0] sm:$0xff]
    %v1380 = vld [vmem:[#allocation4 + $0x7c8] sm:$0xff]
    %v1381 = vld [vmem:[#allocation4 + $0x7d0] sm:$0xff]
    %v1382 = vld [vmem:[#allocation4 + $0x7d8] sm:$0xff]
    %v1383 = vld [vmem:[#allocation4 + $0x7e0] sm:$0xff]
    %v1384 = vld [vmem:[#allocation4 + $0x7e8] sm:$0xff]
    %v1385 = vld [vmem:[#allocation4 + $0x7f0] sm:$0xff]
    %v1386 = vld [vmem:[#allocation4 + $0x7f8] sm:$0xff]
    %vm1387 = vcmask 1041408
    %v1388 = vsel %vm1387, %v1127, 0.0
    %v1389 = vrot.slane %v1388, 4
    %v1390 = vadd.f32 %v1388, %v1389
    %v1391 = vrot.slane %v1390, 2
    %v1392 = vadd.f32 %v1390, %v1391
    %v1393 = vrot.slane %v1392, 1
    %v1394 = vadd.f32 %v1392, %v1393
    %v1395 = vsel %vm1387, %v1128, 0.0
    %v1396 = vrot.slane %v1395, 4
    %v1397 = vadd.f32 %v1395, %v1396
    %v1398 = vrot.slane %v1397, 2
    %v1399 = vadd.f32 %v1397, %v1398
    %v1400 = vrot.slane %v1399, 1
    %v1401 = vadd.f32 %v1399, %v1400
    %v1402 = vsel %vm1387, %v1129, 0.0
    %v1403 = vrot.slane %v1402, 4
    %v1404 = vadd.f32 %v1402, %v1403
    %v1405 = vrot.slane %v1404, 2
    %v1406 = vadd.f32 %v1404, %v1405
    %v1407 = vrot.slane %v1406, 1
    %v1408 = vadd.f32 %v1406, %v1407
    %v1409 = vsel %vm1387, %v1130, 0.0
    %v1410 = vrot.slane %v1409, 4
    %v1411 = vadd.f32 %v1409, %v1410
    %v1412 = vrot.slane %v1411, 2
    %v1413 = vadd.f32 %v1411, %v1412
    %v1414 = vrot.slane %v1413, 1
    %v1415 = vadd.f32 %v1413, %v1414
    %1416 = vmatpush.msra.mxu0 %v1191
    %1417 = vmatpush.msra.mxu0 %v1187
    %1418 = vmatpush.msra.mxu0 %v1183
    %1419 = vmatpush.msra.mxu0 %v1179
    %1420 = vmatpush.msra.mxu0 %v1175
    %1421 = vmatpush.msra.mxu0 %v1171
    %1422 = vmatpush.msra.mxu0 %v1167
    %1423 = vmatpush.msra.mxu0 %v1163
    %1424 = vmatpush.msra.mxu0 %v1159
    %1425 = vmatpush.msra.mxu0 %v1155
    %1426 = vmatpush.msra.mxu0 %v1151
    %1427 = vmatpush.msra.mxu0 %v1147
    %1428 = vmatpush.msra.mxu0 %v1143
    %1429 = vmatpush.msra.mxu0 %v1139
    %1430 = vmatpush.msra.mxu0 %v1135
    %1431 = vmatpush.msra.mxu0 %v1131
    %1432 = vmatmul.f32.gmra.mxu0 %v1394
    %v1433 = vpop.f32.mrf.mxu0
    %v1434 = vadd.f32 0.0, %v1433
    %1435 = vdwg.mxu0
    %1436 = vmatpush.msra.mxu0 %v1255
    %1437 = vmatpush.msra.mxu0 %v1251
    %1438 = vmatpush.msra.mxu0 %v1247
    %1439 = vmatpush.msra.mxu0 %v1243
    %1440 = vmatpush.msra.mxu0 %v1239
    %1441 = vmatpush.msra.mxu0 %v1235
    %1442 = vmatpush.msra.mxu0 %v1231
    %1443 = vmatpush.msra.mxu0 %v1227
    %1444 = vmatpush.msra.mxu0 %v1223
    %1445 = vmatpush.msra.mxu0 %v1219
    %1446 = vmatpush.msra.mxu0 %v1215
    %1447 = vmatpush.msra.mxu0 %v1211
    %1448 = vmatpush.msra.mxu0 %v1207
    %1449 = vmatpush.msra.mxu0 %v1203
    %1450 = vmatpush.msra.mxu0 %v1199
    %1451 = vmatpush.msra.mxu0 %v1195
    %1452 = vmatmul.f32.gmra.mxu0 %v1401
    %v1453 = vpop.f32.mrf.mxu0
    %v1454 = vadd.f32 %v1434, %v1453
    %1455 = vdwg.mxu0
    %1456 = vmatpush.msra.mxu0 %v1319
    %1457 = vmatpush.msra.mxu0 %v1315
    %1458 = vmatpush.msra.mxu0 %v1311
    %1459 = vmatpush.msra.mxu0 %v1307
    %1460 = vmatpush.msra.mxu0 %v1303
    %1461 = vmatpush.msra.mxu0 %v1299
    %1462 = vmatpush.msra.mxu0 %v1295
    %1463 = vmatpush.msra.mxu0 %v1291
    %1464 = vmatpush.msra.mxu0 %v1287
    %1465 = vmatpush.msra.mxu0 %v1283
    %1466 = vmatpush.msra.mxu0 %v1279
    %1467 = vmatpush.msra.mxu0 %v1275
    %1468 = vmatpush.msra.mxu0 %v1271
    %1469 = vmatpush.msra.mxu0 %v1267
    %1470 = vmatpush.msra.mxu0 %v1263
    %1471 = vmatpush.msra.mxu0 %v1259
    %1472 = vmatmul.f32.gmra.mxu0 %v1408
    %v1473 = vpop.f32.mrf.mxu0
    %v1474 = vadd.f32 %v1454, %v1473
    %1475 = vdwg.mxu0
    %1476 = vmatpush.msra.mxu0 %v1383
    %1477 = vmatpush.msra.mxu0 %v1379
    %1478 = vmatpush.msra.mxu0 %v1375
    %1479 = vmatpush.msra.mxu0 %v1371
    %1480 = vmatpush.msra.mxu0 %v1367
    %1481 = vmatpush.msra.mxu0 %v1363
    %1482 = vmatpush.msra.mxu0 %v1359
    %1483 = vmatpush.msra.mxu0 %v1355
    %1484 = vmatpush.msra.mxu0 %v1351
    %1485 = vmatpush.msra.mxu0 %v1347
    %1486 = vmatpush.msra.mxu0 %v1343
    %1487 = vmatpush.msra.mxu0 %v1339
    %1488 = vmatpush.msra.mxu0 %v1335
    %1489 = vmatpush.msra.mxu0 %v1331
    %1490 = vmatpush.msra.mxu0 %v1327
    %1491 = vmatpush.msra.mxu0 %v1323
    %1492 = vmatmul.f32.gmra.mxu0 %v1415
    %v1493 = vpop.f32.mrf.mxu0
    %v1494 = vadd.f32 %v1474, %v1493
    %1495 = vdwg.mxu0
    %1496 = vmatpush.msra.mxu0 %v1192
    %1497 = vmatpush.msra.mxu0 %v1188
    %1498 = vmatpush.msra.mxu0 %v1184
    %1499 = vmatpush.msra.mxu0 %v1180
    %1500 = vmatpush.msra.mxu0 %v1176
    %1501 = vmatpush.msra.mxu0 %v1172
    %1502 = vmatpush.msra.mxu0 %v1168
    %1503 = vmatpush.msra.mxu0 %v1164
    %1504 = vmatpush.msra.mxu0 %v1160
    %1505 = vmatpush.msra.mxu0 %v1156
    %1506 = vmatpush.msra.mxu0 %v1152
    %1507 = vmatpush.msra.mxu0 %v1148
    %1508 = vmatpush.msra.mxu0 %v1144
    %1509 = vmatpush.msra.mxu0 %v1140
    %1510 = vmatpush.msra.mxu0 %v1136
    %1511 = vmatpush.msra.mxu0 %v1132
    %1512 = vmatmul.f32.gmra.mxu0 %v1394
    %v1513 = vpop.f32.mrf.mxu0
    %v1514 = vadd.f32 0.0, %v1513
    %1515 = vdwg.mxu0
    %1516 = vmatpush.msra.mxu0 %v1256
    %1517 = vmatpush.msra.mxu0 %v1252
    %1518 = vmatpush.msra.mxu0 %v1248
    %1519 = vmatpush.msra.mxu0 %v1244
    %1520 = vmatpush.msra.mxu0 %v1240
    %1521 = vmatpush.msra.mxu0 %v1236
    %1522 = vmatpush.msra.mxu0 %v1232
    %1523 = vmatpush.msra.mxu0 %v1228
    %1524 = vmatpush.msra.mxu0 %v1224
    %1525 = vmatpush.msra.mxu0 %v1220
    %1526 = vmatpush.msra.mxu0 %v1216
    %1527 = vmatpush.msra.mxu0 %v1212
    %1528 = vmatpush.msra.mxu0 %v1208
    %1529 = vmatpush.msra.mxu0 %v1204
    %1530 = vmatpush.msra.mxu0 %v1200
    %1531 = vmatpush.msra.mxu0 %v1196
    %1532 = vmatmul.f32.gmra.mxu0 %v1401
    %v1533 = vpop.f32.mrf.mxu0
    %v1534 = vadd.f32 %v1514, %v1533
    %1535 = vdwg.mxu0
    %1536 = vmatpush.msra.mxu0 %v1320
    %1537 = vmatpush.msra.mxu0 %v1316
    %1538 = vmatpush.msra.mxu0 %v1312
    %1539 = vmatpush.msra.mxu0 %v1308
    %1540 = vmatpush.msra.mxu0 %v1304
    %1541 = vmatpush.msra.mxu0 %v1300
    %1542 = vmatpush.msra.mxu0 %v1296
    %1543 = vmatpush.msra.mxu0 %v1292
    %1544 = vmatpush.msra.mxu0 %v1288
    %1545 = vmatpush.msra.mxu0 %v1284
    %1546 = vmatpush.msra.mxu0 %v1280
    %1547 = vmatpush.msra.mxu0 %v1276
    %1548 = vmatpush.msra.mxu0 %v1272
    %1549 = vmatpush.msra.mxu0 %v1268
    %1550 = vmatpush.msra.mxu0 %v1264
    %1551 = vmatpush.msra.mxu0 %v1260
    %1552 = vmatmul.f32.gmra.mxu0 %v1408
    %v1553 = vpop.f32.mrf.mxu0
    %v1554 = vadd.f32 %v1534, %v1553
    %1555 = vdwg.mxu0
    %1556 = vmatpush.msra.mxu0 %v1384
    %1557 = vmatpush.msra.mxu0 %v1380
    %1558 = vmatpush.msra.mxu0 %v1376
    %1559 = vmatpush.msra.mxu0 %v1372
    %1560 = vmatpush.msra.mxu0 %v1368
    %1561 = vmatpush.msra.mxu0 %v1364
    %1562 = vmatpush.msra.mxu0 %v1360
    %1563 = vmatpush.msra.mxu0 %v1356
    %1564 = vmatpush.msra.mxu0 %v1352
    %1565 = vmatpush.msra.mxu0 %v1348
    %1566 = vmatpush.msra.mxu0 %v1344
    %1567 = vmatpush.msra.mxu0 %v1340
    %1568 = vmatpush.msra.mxu0 %v1336
    %1569 = vmatpush.msra.mxu0 %v1332
    %1570 = vmatpush.msra.mxu0 %v1328
    %1571 = vmatpush.msra.mxu0 %v1324
    %1572 = vmatmul.f32.gmra.mxu0 %v1415
    %v1573 = vpop.f32.mrf.mxu0
    %v1574 = vadd.f32 %v1554, %v1573
    %1575 = vdwg.mxu0
    %1576 = vmatpush.msra.mxu0 %v1193
    %1577 = vmatpush.msra.mxu0 %v1189
    %1578 = vmatpush.msra.mxu0 %v1185
    %1579 = vmatpush.msra.mxu0 %v1181
    %1580 = vmatpush.msra.mxu0 %v1177
    %1581 = vmatpush.msra.mxu0 %v1173
    %1582 = vmatpush.msra.mxu0 %v1169
    %1583 = vmatpush.msra.mxu0 %v1165
    %1584 = vmatpush.msra.mxu0 %v1161
    %1585 = vmatpush.msra.mxu0 %v1157
    %1586 = vmatpush.msra.mxu0 %v1153
    %1587 = vmatpush.msra.mxu0 %v1149
    %1588 = vmatpush.msra.mxu0 %v1145
    %1589 = vmatpush.msra.mxu0 %v1141
    %1590 = vmatpush.msra.mxu0 %v1137
    %1591 = vmatpush.msra.mxu0 %v1133
    %1592 = vmatmul.f32.gmra.mxu0 %v1394
    %v1593 = vpop.f32.mrf.mxu0
    %v1594 = vadd.f32 0.0, %v1593
    %1595 = vdwg.mxu0
    %1596 = vmatpush.msra.mxu0 %v1257
    %1597 = vmatpush.msra.mxu0 %v1253
    %1598 = vmatpush.msra.mxu0 %v1249
    %1599 = vmatpush.msra.mxu0 %v1245
    %1600 = vmatpush.msra.mxu0 %v1241
    %1601 = vmatpush.msra.mxu0 %v1237
    %1602 = vmatpush.msra.mxu0 %v1233
    %1603 = vmatpush.msra.mxu0 %v1229
    %1604 = vmatpush.msra.mxu0 %v1225
    %1605 = vmatpush.msra.mxu0 %v1221
    %1606 = vmatpush.msra.mxu0 %v1217
    %1607 = vmatpush.msra.mxu0 %v1213
    %1608 = vmatpush.msra.mxu0 %v1209
    %1609 = vmatpush.msra.mxu0 %v1205
    %1610 = vmatpush.msra.mxu0 %v1201
    %1611 = vmatpush.msra.mxu0 %v1197
    %1612 = vmatmul.f32.gmra.mxu0 %v1401
    %v1613 = vpop.f32.mrf.mxu0
    %v1614 = vadd.f32 %v1594, %v1613
    %1615 = vdwg.mxu0
    %1616 = vmatpush.msra.mxu0 %v1321
    %1617 = vmatpush.msra.mxu0 %v1317
    %1618 = vmatpush.msra.mxu0 %v1313
    %1619 = vmatpush.msra.mxu0 %v1309
    %1620 = vmatpush.msra.mxu0 %v1305
    %1621 = vmatpush.msra.mxu0 %v1301
    %1622 = vmatpush.msra.mxu0 %v1297
    %1623 = vmatpush.msra.mxu0 %v1293
    %1624 = vmatpush.msra.mxu0 %v1289
    %1625 = vmatpush.msra.mxu0 %v1285
    %1626 = vmatpush.msra.mxu0 %v1281
    %1627 = vmatpush.msra.mxu0 %v1277
    %1628 = vmatpush.msra.mxu0 %v1273
    %1629 = vmatpush.msra.mxu0 %v1269
    %1630 = vmatpush.msra.mxu0 %v1265
    %1631 = vmatpush.msra.mxu0 %v1261
    %1632 = vmatmul.f32.gmra.mxu0 %v1408
    %v1633 = vpop.f32.mrf.mxu0
    %v1634 = vadd.f32 %v1614, %v1633
    %1635 = vdwg.mxu0
    %1636 = vmatpush.msra.mxu0 %v1385
    %1637 = vmatpush.msra.mxu0 %v1381
    %1638 = vmatpush.msra.mxu0 %v1377
    %1639 = vmatpush.msra.mxu0 %v1373
    %1640 = vmatpush.msra.mxu0 %v1369
    %1641 = vmatpush.msra.mxu0 %v1365
    %1642 = vmatpush.msra.mxu0 %v1361
    %1643 = vmatpush.msra.mxu0 %v1357
    %1644 = vmatpush.msra.mxu0 %v1353
    %1645 = vmatpush.msra.mxu0 %v1349
    %1646 = vmatpush.msra.mxu0 %v1345
    %1647 = vmatpush.msra.mxu0 %v1341
    %1648 = vmatpush.msra.mxu0 %v1337
    %1649 = vmatpush.msra.mxu0 %v1333
    %1650 = vmatpush.msra.mxu0 %v1329
    %1651 = vmatpush.msra.mxu0 %v1325
    %1652 = vmatmul.f32.gmra.mxu0 %v1415
    %v1653 = vpop.f32.mrf.mxu0
    %v1654 = vadd.f32 %v1634, %v1653
    %1655 = vdwg.mxu0
    %1656 = vmatpush.msra.mxu0 %v1194
    %1657 = vmatpush.msra.mxu0 %v1190
    %1658 = vmatpush.msra.mxu0 %v1186
    %1659 = vmatpush.msra.mxu0 %v1182
    %1660 = vmatpush.msra.mxu0 %v1178
    %1661 = vmatpush.msra.mxu0 %v1174
    %1662 = vmatpush.msra.mxu0 %v1170
    %1663 = vmatpush.msra.mxu0 %v1166
    %1664 = vmatpush.msra.mxu0 %v1162
    %1665 = vmatpush.msra.mxu0 %v1158
    %1666 = vmatpush.msra.mxu0 %v1154
    %1667 = vmatpush.msra.mxu0 %v1150
    %1668 = vmatpush.msra.mxu0 %v1146
    %1669 = vmatpush.msra.mxu0 %v1142
    %1670 = vmatpush.msra.mxu0 %v1138
    %1671 = vmatpush.msra.mxu0 %v1134
    %1672 = vmatmul.f32.gmra.mxu0 %v1394
    %v1673 = vpop.f32.mrf.mxu0
    %v1674 = vadd.f32 0.0, %v1673
    %1675 = vdwg.mxu0
    %1676 = vmatpush.msra.mxu0 %v1258
    %1677 = vmatpush.msra.mxu0 %v1254
    %1678 = vmatpush.msra.mxu0 %v1250
    %1679 = vmatpush.msra.mxu0 %v1246
    %1680 = vmatpush.msra.mxu0 %v1242
    %1681 = vmatpush.msra.mxu0 %v1238
    %1682 = vmatpush.msra.mxu0 %v1234
    %1683 = vmatpush.msra.mxu0 %v1230
    %1684 = vmatpush.msra.mxu0 %v1226
    %1685 = vmatpush.msra.mxu0 %v1222
    %1686 = vmatpush.msra.mxu0 %v1218
    %1687 = vmatpush.msra.mxu0 %v1214
    %1688 = vmatpush.msra.mxu0 %v1210
    %1689 = vmatpush.msra.mxu0 %v1206
    %1690 = vmatpush.msra.mxu0 %v1202
    %1691 = vmatpush.msra.mxu0 %v1198
    %1692 = vmatmul.f32.gmra.mxu0 %v1401
    %v1693 = vpop.f32.mrf.mxu0
    %v1694 = vadd.f32 %v1674, %v1693
    %1695 = vdwg.mxu0
    %1696 = vmatpush.msra.mxu0 %v1322
    %1697 = vmatpush.msra.mxu0 %v1318
    %1698 = vmatpush.msra.mxu0 %v1314
    %1699 = vmatpush.msra.mxu0 %v1310
    %1700 = vmatpush.msra.mxu0 %v1306
    %1701 = vmatpush.msra.mxu0 %v1302
    %1702 = vmatpush.msra.mxu0 %v1298
    %1703 = vmatpush.msra.mxu0 %v1294
    %1704 = vmatpush.msra.mxu0 %v1290
    %1705 = vmatpush.msra.mxu0 %v1286
    %1706 = vmatpush.msra.mxu0 %v1282
    %1707 = vmatpush.msra.mxu0 %v1278
    %1708 = vmatpush.msra.mxu0 %v1274
    %1709 = vmatpush.msra.mxu0 %v1270
    %1710 = vmatpush.msra.mxu0 %v1266
    %1711 = vmatpush.msra.mxu0 %v1262
    %1712 = vmatmul.f32.gmra.mxu0 %v1408
    %v1713 = vpop.f32.mrf.mxu0
    %v1714 = vadd.f32 %v1694, %v1713
    %1715 = vdwg.mxu0
    %1716 = vmatpush.msra.mxu0 %v1386
    %1717 = vmatpush.msra.mxu0 %v1382
    %1718 = vmatpush.msra.mxu0 %v1378
    %1719 = vmatpush.msra.mxu0 %v1374
    %1720 = vmatpush.msra.mxu0 %v1370
    %1721 = vmatpush.msra.mxu0 %v1366
    %1722 = vmatpush.msra.mxu0 %v1362
    %1723 = vmatpush.msra.mxu0 %v1358
    %1724 = vmatpush.msra.mxu0 %v1354
    %1725 = vmatpush.msra.mxu0 %v1350
    %1726 = vmatpush.msra.mxu0 %v1346
    %1727 = vmatpush.msra.mxu0 %v1342
    %1728 = vmatpush.msra.mxu0 %v1338
    %1729 = vmatpush.msra.mxu0 %v1334
    %1730 = vmatpush.msra.mxu0 %v1330
    %1731 = vmatpush.msra.mxu0 %v1326
    %1732 = vmatmul.f32.gmra.mxu0 %v1415
    %v1733 = vpop.f32.mrf.mxu0
    %v1734 = vadd.f32 %v1714, %v1733
    %1735 = vdwg.mxu0
    %v1736 = vmul.f32 %v1494, 0.5
    %v1737 = vmul.f32 %v1574, 0.5
    %v1738 = vmul.f32 %v1654, 0.5
    %v1739 = vmul.f32 %v1734, 0.5
    %v1740 = vperm.slane %v1736, 0
    %v1741 = vperm.slane %v1737, 0
    %v1742 = vperm.slane %v1738, 0
    %v1743 = vperm.slane %v1739, 0
    %v1744 = vsub.f32 %v1127, %v1740
    %v1745 = vsub.f32 %v1128, %v1741
    %v1746 = vsub.f32 %v1129, %v1742
    %v1747 = vsub.f32 %v1130, %v1743
    %v1748 = vmul.f32 %v1744, %v1744
    %v1749 = vmul.f32 %v1745, %v1745
    %v1750 = vmul.f32 %v1746, %v1746
    %v1751 = vmul.f32 %v1747, %v1747
    %v1752 = vsel %vm1387, %v1748, 0.0
    %v1753 = vrot.slane %v1752, 4
    %v1754 = vadd.f32 %v1752, %v1753
    %v1755 = vrot.slane %v1754, 2
    %v1756 = vadd.f32 %v1754, %v1755
    %v1757 = vrot.slane %v1756, 1
    %v1758 = vadd.f32 %v1756, %v1757
    %v1759 = vsel %vm1387, %v1749, 0.0
    %v1760 = vrot.slane %v1759, 4
    %v1761 = vadd.f32 %v1759, %v1760
    %v1762 = vrot.slane %v1761, 2
    %v1763 = vadd.f32 %v1761, %v1762
    %v1764 = vrot.slane %v1763, 1
    %v1765 = vadd.f32 %v1763, %v1764
    %v1766 = vsel %vm1387, %v1750, 0.0
    %v1767 = vrot.slane %v1766, 4
    %v1768 = vadd.f32 %v1766, %v1767
    %v1769 = vrot.slane %v1768, 2
    %v1770 = vadd.f32 %v1768, %v1769
    %v1771 = vrot.slane %v1770, 1
    %v1772 = vadd.f32 %v1770, %v1771
    %v1773 = vsel %vm1387, %v1751, 0.0
    %v1774 = vrot.slane %v1773, 4
    %v1775 = vadd.f32 %v1773, %v1774
    %v1776 = vrot.slane %v1775, 2
    %v1777 = vadd.f32 %v1775, %v1776
    %v1778 = vrot.slane %v1777, 1
    %v1779 = vadd.f32 %v1777, %v1778
    %1780 = vmatpush.msra.mxu0 %v1191
    %1781 = vmatpush.msra.mxu0 %v1187
    %1782 = vmatpush.msra.mxu0 %v1183
    %1783 = vmatpush.msra.mxu0 %v1179
    %1784 = vmatpush.msra.mxu0 %v1175
    %1785 = vmatpush.msra.mxu0 %v1171
    %1786 = vmatpush.msra.mxu0 %v1167
    %1787 = vmatpush.msra.mxu0 %v1163
    %1788 = vmatpush.msra.mxu0 %v1159
    %1789 = vmatpush.msra.mxu0 %v1155
    %1790 = vmatpush.msra.mxu0 %v1151
    %1791 = vmatpush.msra.mxu0 %v1147
    %1792 = vmatpush.msra.mxu0 %v1143
    %1793 = vmatpush.msra.mxu0 %v1139
    %1794 = vmatpush.msra.mxu0 %v1135
    %1795 = vmatpush.msra.mxu0 %v1131
    %1796 = vmatmul.f32.gmra.mxu0 %v1758
    %v1797 = vpop.f32.mrf.mxu0
    %v1798 = vadd.f32 0.0, %v1797
    %1799 = vdwg.mxu0
    %1800 = vmatpush.msra.mxu0 %v1255
    %1801 = vmatpush.msra.mxu0 %v1251
    %1802 = vmatpush.msra.mxu0 %v1247
    %1803 = vmatpush.msra.mxu0 %v1243
    %1804 = vmatpush.msra.mxu0 %v1239
    %1805 = vmatpush.msra.mxu0 %v1235
    %1806 = vmatpush.msra.mxu0 %v1231
    %1807 = vmatpush.msra.mxu0 %v1227
    %1808 = vmatpush.msra.mxu0 %v1223
    %1809 = vmatpush.msra.mxu0 %v1219
    %1810 = vmatpush.msra.mxu0 %v1215
    %1811 = vmatpush.msra.mxu0 %v1211
    %1812 = vmatpush.msra.mxu0 %v1207
    %1813 = vmatpush.msra.mxu0 %v1203
    %1814 = vmatpush.msra.mxu0 %v1199
    %1815 = vmatpush.msra.mxu0 %v1195
    %1816 = vmatmul.f32.gmra.mxu0 %v1765
    %v1817 = vpop.f32.mrf.mxu0
    %v1818 = vadd.f32 %v1798, %v1817
    %1819 = vdwg.mxu0
    %1820 = vmatpush.msra.mxu0 %v1319
    %1821 = vmatpush.msra.mxu0 %v1315
    %1822 = vmatpush.msra.mxu0 %v1311
    %1823 = vmatpush.msra.mxu0 %v1307
    %1824 = vmatpush.msra.mxu0 %v1303
    %1825 = vmatpush.msra.mxu0 %v1299
    %1826 = vmatpush.msra.mxu0 %v1295
    %1827 = vmatpush.msra.mxu0 %v1291
    %1828 = vmatpush.msra.mxu0 %v1287
    %1829 = vmatpush.msra.mxu0 %v1283
    %1830 = vmatpush.msra.mxu0 %v1279
    %1831 = vmatpush.msra.mxu0 %v1275
    %1832 = vmatpush.msra.mxu0 %v1271
    %1833 = vmatpush.msra.mxu0 %v1267
    %1834 = vmatpush.msra.mxu0 %v1263
    %1835 = vmatpush.msra.mxu0 %v1259
    %1836 = vmatmul.f32.gmra.mxu0 %v1772
    %v1837 = vpop.f32.mrf.mxu0
    %v1838 = vadd.f32 %v1818, %v1837
    %1839 = vdwg.mxu0
    %1840 = vmatpush.msra.mxu0 %v1383
    %1841 = vmatpush.msra.mxu0 %v1379
    %1842 = vmatpush.msra.mxu0 %v1375
    %1843 = vmatpush.msra.mxu0 %v1371
    %1844 = vmatpush.msra.mxu0 %v1367
    %1845 = vmatpush.msra.mxu0 %v1363
    %1846 = vmatpush.msra.mxu0 %v1359
    %1847 = vmatpush.msra.mxu0 %v1355
    %1848 = vmatpush.msra.mxu0 %v1351
    %1849 = vmatpush.msra.mxu0 %v1347
    %1850 = vmatpush.msra.mxu0 %v1343
    %1851 = vmatpush.msra.mxu0 %v1339
    %1852 = vmatpush.msra.mxu0 %v1335
    %1853 = vmatpush.msra.mxu0 %v1331
    %1854 = vmatpush.msra.mxu0 %v1327
    %1855 = vmatpush.msra.mxu0 %v1323
    %1856 = vmatmul.f32.gmra.mxu0 %v1779
    %v1857 = vpop.f32.mrf.mxu0
    %v1858 = vadd.f32 %v1838, %v1857
    %1859 = vdwg.mxu0
    %1860 = vmatpush.msra.mxu0 %v1192
    %1861 = vmatpush.msra.mxu0 %v1188
    %1862 = vmatpush.msra.mxu0 %v1184
    %1863 = vmatpush.msra.mxu0 %v1180
    %1864 = vmatpush.msra.mxu0 %v1176
    %1865 = vmatpush.msra.mxu0 %v1172
    %1866 = vmatpush.msra.mxu0 %v1168
    %1867 = vmatpush.msra.mxu0 %v1164
    %1868 = vmatpush.msra.mxu0 %v1160
    %1869 = vmatpush.msra.mxu0 %v1156
    %1870 = vmatpush.msra.mxu0 %v1152
    %1871 = vmatpush.msra.mxu0 %v1148
    %1872 = vmatpush.msra.mxu0 %v1144
    %1873 = vmatpush.msra.mxu0 %v1140
    %1874 = vmatpush.msra.mxu0 %v1136
    %1875 = vmatpush.msra.mxu0 %v1132
    %1876 = vmatmul.f32.gmra.mxu0 %v1758
    %v1877 = vpop.f32.mrf.mxu0
    %v1878 = vadd.f32 0.0, %v1877
    %1879 = vdwg.mxu0
    %1880 = vmatpush.msra.mxu0 %v1256
    %1881 = vmatpush.msra.mxu0 %v1252
    %1882 = vmatpush.msra.mxu0 %v1248
    %1883 = vmatpush.msra.mxu0 %v1244
    %1884 = vmatpush.msra.mxu0 %v1240
    %1885 = vmatpush.msra.mxu0 %v1236
    %1886 = vmatpush.msra.mxu0 %v1232
    %1887 = vmatpush.msra.mxu0 %v1228
    %1888 = vmatpush.msra.mxu0 %v1224
    %1889 = vmatpush.msra.mxu0 %v1220
    %1890 = vmatpush.msra.mxu0 %v1216
    %1891 = vmatpush.msra.mxu0 %v1212
    %1892 = vmatpush.msra.mxu0 %v1208
    %1893 = vmatpush.msra.mxu0 %v1204
    %1894 = vmatpush.msra.mxu0 %v1200
    %1895 = vmatpush.msra.mxu0 %v1196
    %1896 = vmatmul.f32.gmra.mxu0 %v1765
    %v1897 = vpop.f32.mrf.mxu0
    %v1898 = vadd.f32 %v1878, %v1897
    %1899 = vdwg.mxu0
    %1900 = vmatpush.msra.mxu0 %v1320
    %1901 = vmatpush.msra.mxu0 %v1316
    %1902 = vmatpush.msra.mxu0 %v1312
    %1903 = vmatpush.msra.mxu0 %v1308
    %1904 = vmatpush.msra.mxu0 %v1304
    %1905 = vmatpush.msra.mxu0 %v1300
    %1906 = vmatpush.msra.mxu0 %v1296
    %1907 = vmatpush.msra.mxu0 %v1292
    %1908 = vmatpush.msra.mxu0 %v1288
    %1909 = vmatpush.msra.mxu0 %v1284
    %1910 = vmatpush.msra.mxu0 %v1280
    %1911 = vmatpush.msra.mxu0 %v1276
    %1912 = vmatpush.msra.mxu0 %v1272
    %1913 = vmatpush.msra.mxu0 %v1268
    %1914 = vmatpush.msra.mxu0 %v1264
    %1915 = vmatpush.msra.mxu0 %v1260
    %1916 = vmatmul.f32.gmra.mxu0 %v1772
    %v1917 = vpop.f32.mrf.mxu0
    %v1918 = vadd.f32 %v1898, %v1917
    %1919 = vdwg.mxu0
    %1920 = vmatpush.msra.mxu0 %v1384
    %1921 = vmatpush.msra.mxu0 %v1380
    %1922 = vmatpush.msra.mxu0 %v1376
    %1923 = vmatpush.msra.mxu0 %v1372
    %1924 = vmatpush.msra.mxu0 %v1368
    %1925 = vmatpush.msra.mxu0 %v1364
    %1926 = vmatpush.msra.mxu0 %v1360
    %1927 = vmatpush.msra.mxu0 %v1356
    %1928 = vmatpush.msra.mxu0 %v1352
    %1929 = vmatpush.msra.mxu0 %v1348
    %1930 = vmatpush.msra.mxu0 %v1344
    %1931 = vmatpush.msra.mxu0 %v1340
    %1932 = vmatpush.msra.mxu0 %v1336
    %1933 = vmatpush.msra.mxu0 %v1332
    %1934 = vmatpush.msra.mxu0 %v1328
    %1935 = vmatpush.msra.mxu0 %v1324
    %1936 = vmatmul.f32.gmra.mxu0 %v1779
    %v1937 = vpop.f32.mrf.mxu0
    %v1938 = vadd.f32 %v1918, %v1937
    %1939 = vdwg.mxu0
    %1940 = vmatpush.msra.mxu0 %v1193
    %1941 = vmatpush.msra.mxu0 %v1189
    %1942 = vmatpush.msra.mxu0 %v1185
    %1943 = vmatpush.msra.mxu0 %v1181
    %1944 = vmatpush.msra.mxu0 %v1177
    %1945 = vmatpush.msra.mxu0 %v1173
    %1946 = vmatpush.msra.mxu0 %v1169
    %1947 = vmatpush.msra.mxu0 %v1165
    %1948 = vmatpush.msra.mxu0 %v1161
    %1949 = vmatpush.msra.mxu0 %v1157
    %1950 = vmatpush.msra.mxu0 %v1153
    %1951 = vmatpush.msra.mxu0 %v1149
    %1952 = vmatpush.msra.mxu0 %v1145
    %1953 = vmatpush.msra.mxu0 %v1141
    %1954 = vmatpush.msra.mxu0 %v1137
    %1955 = vmatpush.msra.mxu0 %v1133
    %1956 = vmatmul.f32.gmra.mxu0 %v1758
    %v1957 = vpop.f32.mrf.mxu0
    %v1958 = vadd.f32 0.0, %v1957
    %1959 = vdwg.mxu0
    %1960 = vmatpush.msra.mxu0 %v1257
    %1961 = vmatpush.msra.mxu0 %v1253
    %1962 = vmatpush.msra.mxu0 %v1249
    %1963 = vmatpush.msra.mxu0 %v1245
    %1964 = vmatpush.msra.mxu0 %v1241
    %1965 = vmatpush.msra.mxu0 %v1237
    %1966 = vmatpush.msra.mxu0 %v1233
    %1967 = vmatpush.msra.mxu0 %v1229
    %1968 = vmatpush.msra.mxu0 %v1225
    %1969 = vmatpush.msra.mxu0 %v1221
    %1970 = vmatpush.msra.mxu0 %v1217
    %1971 = vmatpush.msra.mxu0 %v1213
    %1972 = vmatpush.msra.mxu0 %v1209
    %1973 = vmatpush.msra.mxu0 %v1205
    %1974 = vmatpush.msra.mxu0 %v1201
    %1975 = vmatpush.msra.mxu0 %v1197
    %1976 = vmatmul.f32.gmra.mxu0 %v1765
    %v1977 = vpop.f32.mrf.mxu0
    %v1978 = vadd.f32 %v1958, %v1977
    %1979 = vdwg.mxu0
    %1980 = vmatpush.msra.mxu0 %v1321
    %1981 = vmatpush.msra.mxu0 %v1317
    %1982 = vmatpush.msra.mxu0 %v1313
    %1983 = vmatpush.msra.mxu0 %v1309
    %1984 = vmatpush.msra.mxu0 %v1305
    %1985 = vmatpush.msra.mxu0 %v1301
    %1986 = vmatpush.msra.mxu0 %v1297
    %1987 = vmatpush.msra.mxu0 %v1293
    %1988 = vmatpush.msra.mxu0 %v1289
    %1989 = vmatpush.msra.mxu0 %v1285
    %1990 = vmatpush.msra.mxu0 %v1281
    %1991 = vmatpush.msra.mxu0 %v1277
    %1992 = vmatpush.msra.mxu0 %v1273
    %1993 = vmatpush.msra.mxu0 %v1269
    %1994 = vmatpush.msra.mxu0 %v1265
    %1995 = vmatpush.msra.mxu0 %v1261
    %1996 = vmatmul.f32.gmra.mxu0 %v1772
    %v1997 = vpop.f32.mrf.mxu0
    %v1998 = vadd.f32 %v1978, %v1997
    %1999 = vdwg.mxu0
    %2000 = vmatpush.msra.mxu0 %v1385
    %2001 = vmatpush.msra.mxu0 %v1381
    %2002 = vmatpush.msra.mxu0 %v1377
    %2003 = vmatpush.msra.mxu0 %v1373
    %2004 = vmatpush.msra.mxu0 %v1369
    %2005 = vmatpush.msra.mxu0 %v1365
    %2006 = vmatpush.msra.mxu0 %v1361
    %2007 = vmatpush.msra.mxu0 %v1357
    %2008 = vmatpush.msra.mxu0 %v1353
    %2009 = vmatpush.msra.mxu0 %v1349
    %2010 = vmatpush.msra.mxu0 %v1345
    %2011 = vmatpush.msra.mxu0 %v1341
    %2012 = vmatpush.msra.mxu0 %v1337
    %2013 = vmatpush.msra.mxu0 %v1333
    %2014 = vmatpush.msra.mxu0 %v1329
    %2015 = vmatpush.msra.mxu0 %v1325
    %2016 = vmatmul.f32.gmra.mxu0 %v1779
    %v2017 = vpop.f32.mrf.mxu0
    %v2018 = vadd.f32 %v1998, %v2017
    %2019 = vdwg.mxu0
    %2020 = vmatpush.msra.mxu0 %v1194
    %2021 = vmatpush.msra.mxu0 %v1190
    %2022 = vmatpush.msra.mxu0 %v1186
    %2023 = vmatpush.msra.mxu0 %v1182
    %2024 = vmatpush.msra.mxu0 %v1178
    %2025 = vmatpush.msra.mxu0 %v1174
    %2026 = vmatpush.msra.mxu0 %v1170
    %2027 = vmatpush.msra.mxu0 %v1166
    %2028 = vmatpush.msra.mxu0 %v1162
    %2029 = vmatpush.msra.mxu0 %v1158
    %2030 = vmatpush.msra.mxu0 %v1154
    %2031 = vmatpush.msra.mxu0 %v1150
    %2032 = vmatpush.msra.mxu0 %v1146
    %2033 = vmatpush.msra.mxu0 %v1142
    %2034 = vmatpush.msra.mxu0 %v1138
    %2035 = vmatpush.msra.mxu0 %v1134
    %2036 = vmatmul.f32.gmra.mxu0 %v1758
    %v2037 = vpop.f32.mrf.mxu0
    %v2038 = vadd.f32 0.0, %v2037
    %2039 = vdwg.mxu0
    %2040 = vmatpush.msra.mxu0 %v1258
    %2041 = vmatpush.msra.mxu0 %v1254
    %2042 = vmatpush.msra.mxu0 %v1250
    %2043 = vmatpush.msra.mxu0 %v1246
    %2044 = vmatpush.msra.mxu0 %v1242
    %2045 = vmatpush.msra.mxu0 %v1238
    %2046 = vmatpush.msra.mxu0 %v1234
    %2047 = vmatpush.msra.mxu0 %v1230
    %2048 = vmatpush.msra.mxu0 %v1226
    %2049 = vmatpush.msra.mxu0 %v1222
    %2050 = vmatpush.msra.mxu0 %v1218
    %2051 = vmatpush.msra.mxu0 %v1214
    %2052 = vmatpush.msra.mxu0 %v1210
    %2053 = vmatpush.msra.mxu0 %v1206
    %2054 = vmatpush.msra.mxu0 %v1202
    %2055 = vmatpush.msra.mxu0 %v1198
    %2056 = vmatmul.f32.gmra.mxu0 %v1765
    %v2057 = vpop.f32.mrf.mxu0
    %v2058 = vadd.f32 %v2038, %v2057
    %2059 = vdwg.mxu0
    %2060 = vmatpush.msra.mxu0 %v1322
    %2061 = vmatpush.msra.mxu0 %v1318
    %2062 = vmatpush.msra.mxu0 %v1314
    %2063 = vmatpush.msra.mxu0 %v1310
    %2064 = vmatpush.msra.mxu0 %v1306
    %2065 = vmatpush.msra.mxu0 %v1302
    %2066 = vmatpush.msra.mxu0 %v1298
    %2067 = vmatpush.msra.mxu0 %v1294
    %2068 = vmatpush.msra.mxu0 %v1290
    %2069 = vmatpush.msra.mxu0 %v1286
    %2070 = vmatpush.msra.mxu0 %v1282
    %2071 = vmatpush.msra.mxu0 %v1278
    %2072 = vmatpush.msra.mxu0 %v1274
    %2073 = vmatpush.msra.mxu0 %v1270
    %2074 = vmatpush.msra.mxu0 %v1266
    %2075 = vmatpush.msra.mxu0 %v1262
    %2076 = vmatmul.f32.gmra.mxu0 %v1772
    %v2077 = vpop.f32.mrf.mxu0
    %v2078 = vadd.f32 %v2058, %v2077
    %2079 = vdwg.mxu0
    %2080 = vmatpush.msra.mxu0 %v1386
    %2081 = vmatpush.msra.mxu0 %v1382
    %2082 = vmatpush.msra.mxu0 %v1378
    %2083 = vmatpush.msra.mxu0 %v1374
    %2084 = vmatpush.msra.mxu0 %v1370
    %2085 = vmatpush.msra.mxu0 %v1366
    %2086 = vmatpush.msra.mxu0 %v1362
    %2087 = vmatpush.msra.mxu0 %v1358
    %2088 = vmatpush.msra.mxu0 %v1354
    %2089 = vmatpush.msra.mxu0 %v1350
    %2090 = vmatpush.msra.mxu0 %v1346
    %2091 = vmatpush.msra.mxu0 %v1342
    %2092 = vmatpush.msra.mxu0 %v1338
    %2093 = vmatpush.msra.mxu0 %v1334
    %2094 = vmatpush.msra.mxu0 %v1330
    %2095 = vmatpush.msra.mxu0 %v1326
    %2096 = vmatmul.f32.gmra.mxu0 %v1779
    %v2097 = vpop.f32.mrf.mxu0
    %v2098 = vadd.f32 %v2078, %v2097
    %2099 = vdwg.mxu0
    %v2100 = vmul.f32 %v1858, 0.5
    %v2101 = vmul.f32 %v1938, 0.5
    %v2102 = vmul.f32 %v2018, 0.5
    %v2103 = vmul.f32 %v2098, 0.5
    %v2104 = vadd.f32 %v2100, 1e-05
    %v2105 = vadd.f32 %v2101, 1e-05
    %v2106 = vadd.f32 %v2102, 1e-05
    %v2107 = vadd.f32 %v2103, 1e-05
    %v2108 = vrsqrt.pop %v2104
    %v2109 = vmul.f32 %v2108, %v2104
    %v2110 = vmul.f32 %v2109, %v2108
    %v2111 = vmul.f32 0.5, %v2110
    %v2112 = vsub.f32 1.5, %v2111
    %v2113 = vmul.f32 %v2108, %v2112
    %vm2114 = vweird.f32 %v2104
    %vm2115 = vweird.f32 %v2108
    %vm2116 = vmor %vm2114, %vm2115
    %v2117 = vsel %vm2116, %v2108, %v2113
    %v2118 = vrsqrt.pop %v2105
    %v2119 = vmul.f32 %v2118, %v2105
    %v2120 = vmul.f32 %v2119, %v2118
    %v2121 = vmul.f32 0.5, %v2120
    %v2122 = vsub.f32 1.5, %v2121
    %v2123 = vmul.f32 %v2118, %v2122
    %vm2124 = vweird.f32 %v2105
    %vm2125 = vweird.f32 %v2118
    %vm2126 = vmor %vm2124, %vm2125
    %v2127 = vsel %vm2126, %v2118, %v2123
    %v2128 = vrsqrt.pop %v2106
    %v2129 = vmul.f32 %v2128, %v2106
    %v2130 = vmul.f32 %v2129, %v2128
    %v2131 = vmul.f32 0.5, %v2130
    %v2132 = vsub.f32 1.5, %v2131
    %v2133 = vmul.f32 %v2128, %v2132
    %vm2134 = vweird.f32 %v2106
    %vm2135 = vweird.f32 %v2128
    %vm2136 = vmor %vm2134, %vm2135
    %v2137 = vsel %vm2136, %v2128, %v2133
    %v2138 = vrsqrt.pop %v2107
    %v2139 = vmul.f32 %v2138, %v2107
    %v2140 = vmul.f32 %v2139, %v2138
    %v2141 = vmul.f32 0.5, %v2140
    %v2142 = vsub.f32 1.5, %v2141
    %v2143 = vmul.f32 %v2138, %v2142
    %vm2144 = vweird.f32 %v2107
    %vm2145 = vweird.f32 %v2138
    %vm2146 = vmor %vm2144, %vm2145
    %v2147 = vsel %vm2146, %v2138, %v2143
    %v2148 = vperm.slane %v2117, 0
    %v2149 = vperm.slane %v2127, 0
    %v2150 = vperm.slane %v2137, 0
    %v2151 = vperm.slane %v2147, 0
    %v2152 = vmul.f32 %v1744, %v2148
    %v2153 = vmul.f32 %v1745, %v2149
    %v2154 = vmul.f32 %v1746, %v2150
    %v2155 = vmul.f32 %v1747, %v2151
    %v2156 = vperm.slane %v1091, 1
    %v2157 = vperm.slane %v1091, 5
    %v2158 = vperm.slane %v1092, 1
    %v2159 = vperm.slane %v1092, 5
    %v2164 = vperm.slane %v2156, 1
    %v2165 = vperm.slane %v2157, 1
    %v2166 = vperm.slane %v2158, 1
    %v2167 = vperm.slane %v2159, 1
    %v2168 = vmul.f32 %v2152, %v2164
    %v2169 = vmul.f32 %v2153, %v2165
    %v2170 = vmul.f32 %v2154, %v2166
    %v2171 = vmul.f32 %v2155, %v2167
    %v2172 = vperm.slane %v1091, 2
    %v2173 = vperm.slane %v1091, 6
    %v2174 = vperm.slane %v1092, 2
    %v2175 = vperm.slane %v1092, 6
    %v2180 = vperm.slane %v2172, 2
    %v2181 = vperm.slane %v2173, 2
    %v2182 = vperm.slane %v2174, 2
    %v2183 = vperm.slane %v2175, 2
    %v2184 = vadd.f32 %v2168, %v2180
    %v2185 = vadd.f32 %v2169, %v2181
    %v2186 = vadd.f32 %v2170, %v2182
    %v2187 = vadd.f32 %v2171, %v2183
    %v2188 = vpack.c.bf16 %v2184, %v2184
    %v2189 = vpack.c.bf16 %v2185, %v2185
    %v2190 = vpack.c.bf16 %v2186, %v2186
    %v2191 = vpack.c.bf16 %v2187, %v2187
    %v2192 = vld [vmem:[#allocation6] sm:$0xff]
    %v2193 = vld [vmem:[#allocation6 + $0x8] sm:$0xff]
    %v2194 = vld [vmem:[#allocation6 + $0x10] sm:$0xff]
    %v2195 = vld [vmem:[#allocation6 + $0x18] sm:$0xff]
    %v2196 = vld [vmem:[#allocation6 + $0x20] sm:$0xff]
    %v2197 = vld [vmem:[#allocation6 + $0x28] sm:$0xff]
    %v2198 = vld [vmem:[#allocation6 + $0x30] sm:$0xff]
    %v2199 = vld [vmem:[#allocation6 + $0x38] sm:$0xff]
    %v2200 = vld [vmem:[#allocation6 + $0x40] sm:$0xff]
    %v2201 = vld [vmem:[#allocation6 + $0x48] sm:$0xff]
    %v2202 = vld [vmem:[#allocation6 + $0x50] sm:$0xff]
    %v2203 = vld [vmem:[#allocation6 + $0x58] sm:$0xff]
    %v2204 = vld [vmem:[#allocation6 + $0x60] sm:$0xff]
    %v2205 = vld [vmem:[#allocation6 + $0x68] sm:$0xff]
    %v2206 = vld [vmem:[#allocation6 + $0x70] sm:$0xff]
    %v2207 = vld [vmem:[#allocation6 + $0x78] sm:$0xff]
    %v2208 = vld [vmem:[#allocation6 + $0x80] sm:$0xff]
    %v2209 = vld [vmem:[#allocation6 + $0x88] sm:$0xff]
    %v2210 = vld [vmem:[#allocation6 + $0x90] sm:$0xff]
    %v2211 = vld [vmem:[#allocation6 + $0x98] sm:$0xff]
    %v2212 = vld [vmem:[#allocation6 + $0xa0] sm:$0xff]
    %v2213 = vld [vmem:[#allocation6 + $0xa8] sm:$0xff]
    %v2214 = vld [vmem:[#allocation6 + $0xb0] sm:$0xff]
    %v2215 = vld [vmem:[#allocation6 + $0xb8] sm:$0xff]
    %v2216 = vld [vmem:[#allocation6 + $0xc0] sm:$0xff]
    %v2217 = vld [vmem:[#allocation6 + $0xc8] sm:$0xff]
    %v2218 = vld [vmem:[#allocation6 + $0xd0] sm:$0xff]
    %v2219 = vld [vmem:[#allocation6 + $0xd8] sm:$0xff]
    %v2220 = vld [vmem:[#allocation6 + $0xe0] sm:$0xff]
    %v2221 = vld [vmem:[#allocation6 + $0xe8] sm:$0xff]
    %v2222 = vld [vmem:[#allocation6 + $0xf0] sm:$0xff]
    %v2223 = vld [vmem:[#allocation6 + $0xf8] sm:$0xff]
    %v2224 = vld [vmem:[#allocation6 + $0x100] sm:$0xff]
    %v2225 = vld [vmem:[#allocation6 + $0x108] sm:$0xff]
    %v2226 = vld [vmem:[#allocation6 + $0x110] sm:$0xff]
    %v2227 = vld [vmem:[#allocation6 + $0x118] sm:$0xff]
    %v2228 = vld [vmem:[#allocation6 + $0x120] sm:$0xff]
    %v2229 = vld [vmem:[#allocation6 + $0x128] sm:$0xff]
    %v2230 = vld [vmem:[#allocation6 + $0x130] sm:$0xff]
    %v2231 = vld [vmem:[#allocation6 + $0x138] sm:$0xff]
    %v2232 = vld [vmem:[#allocation6 + $0x140] sm:$0xff]
    %v2233 = vld [vmem:[#allocation6 + $0x148] sm:$0xff]
    %v2234 = vld [vmem:[#allocation6 + $0x150] sm:$0xff]
    %v2235 = vld [vmem:[#allocation6 + $0x158] sm:$0xff]
    %v2236 = vld [vmem:[#allocation6 + $0x160] sm:$0xff]
    %v2237 = vld [vmem:[#allocation6 + $0x168] sm:$0xff]
    %v2238 = vld [vmem:[#allocation6 + $0x170] sm:$0xff]
    %v2239 = vld [vmem:[#allocation6 + $0x178] sm:$0xff]
    %v2240 = vld [vmem:[#allocation6 + $0x180] sm:$0xff]
    %v2241 = vld [vmem:[#allocation6 + $0x188] sm:$0xff]
    %v2242 = vld [vmem:[#allocation6 + $0x190] sm:$0xff]
    %v2243 = vld [vmem:[#allocation6 + $0x198] sm:$0xff]
    %v2244 = vld [vmem:[#allocation6 + $0x1a0] sm:$0xff]
    %v2245 = vld [vmem:[#allocation6 + $0x1a8] sm:$0xff]
    %v2246 = vld [vmem:[#allocation6 + $0x1b0] sm:$0xff]
    %v2247 = vld [vmem:[#allocation6 + $0x1b8] sm:$0xff]
    %v2248 = vld [vmem:[#allocation6 + $0x1c0] sm:$0xff]
    %v2249 = vld [vmem:[#allocation6 + $0x1c8] sm:$0xff]
    %v2250 = vld [vmem:[#allocation6 + $0x1d0] sm:$0xff]
    %v2251 = vld [vmem:[#allocation6 + $0x1d8] sm:$0xff]
    %v2252 = vld [vmem:[#allocation6 + $0x1e0] sm:$0xff]
    %v2253 = vld [vmem:[#allocation6 + $0x1e8] sm:$0xff]
    %v2254 = vld [vmem:[#allocation6 + $0x1f0] sm:$0xff]
    %v2255 = vld [vmem:[#allocation6 + $0x1f8] sm:$0xff]
    %v2256 = vld [vmem:[#allocation6 + $0x200] sm:$0xff]
    %v2257 = vld [vmem:[#allocation6 + $0x208] sm:$0xff]
    %v2258 = vld [vmem:[#allocation6 + $0x210] sm:$0xff]
    %v2259 = vld [vmem:[#allocation6 + $0x218] sm:$0xff]
    %v2260 = vld [vmem:[#allocation6 + $0x220] sm:$0xff]
    %v2261 = vld [vmem:[#allocation6 + $0x228] sm:$0xff]
    %v2262 = vld [vmem:[#allocation6 + $0x230] sm:$0xff]
    %v2263 = vld [vmem:[#allocation6 + $0x238] sm:$0xff]
    %v2264 = vld [vmem:[#allocation6 + $0x240] sm:$0xff]
    %v2265 = vld [vmem:[#allocation6 + $0x248] sm:$0xff]
    %v2266 = vld [vmem:[#allocation6 + $0x250] sm:$0xff]
    %v2267 = vld [vmem:[#allocation6 + $0x258] sm:$0xff]
    %v2268 = vld [vmem:[#allocation6 + $0x260] sm:$0xff]
    %v2269 = vld [vmem:[#allocation6 + $0x268] sm:$0xff]
    %v2270 = vld [vmem:[#allocation6 + $0x270] sm:$0xff]
    %v2271 = vld [vmem:[#allocation6 + $0x278] sm:$0xff]
    %v2272 = vld [vmem:[#allocation6 + $0x280] sm:$0xff]
    %v2273 = vld [vmem:[#allocation6 + $0x288] sm:$0xff]
    %v2274 = vld [vmem:[#allocation6 + $0x290] sm:$0xff]
    %v2275 = vld [vmem:[#allocation6 + $0x298] sm:$0xff]
    %v2276 = vld [vmem:[#allocation6 + $0x2a0] sm:$0xff]
    %v2277 = vld [vmem:[#allocation6 + $0x2a8] sm:$0xff]
    %v2278 = vld [vmem:[#allocation6 + $0x2b0] sm:$0xff]
    %v2279 = vld [vmem:[#allocation6 + $0x2b8] sm:$0xff]
    %v2280 = vld [vmem:[#allocation6 + $0x2c0] sm:$0xff]
    %v2281 = vld [vmem:[#allocation6 + $0x2c8] sm:$0xff]
    %v2282 = vld [vmem:[#allocation6 + $0x2d0] sm:$0xff]
    %v2283 = vld [vmem:[#allocation6 + $0x2d8] sm:$0xff]
    %v2284 = vld [vmem:[#allocation6 + $0x2e0] sm:$0xff]
    %v2285 = vld [vmem:[#allocation6 + $0x2e8] sm:$0xff]
    %v2286 = vld [vmem:[#allocation6 + $0x2f0] sm:$0xff]
    %v2287 = vld [vmem:[#allocation6 + $0x2f8] sm:$0xff]
    %v2288 = vld [vmem:[#allocation6 + $0x300] sm:$0xff]
    %v2289 = vld [vmem:[#allocation6 + $0x308] sm:$0xff]
    %v2290 = vld [vmem:[#allocation6 + $0x310] sm:$0xff]
    %v2291 = vld [vmem:[#allocation6 + $0x318] sm:$0xff]
    %v2292 = vld [vmem:[#allocation6 + $0x320] sm:$0xff]
    %v2293 = vld [vmem:[#allocation6 + $0x328] sm:$0xff]
    %v2294 = vld [vmem:[#allocation6 + $0x330] sm:$0xff]
    %v2295 = vld [vmem:[#allocation6 + $0x338] sm:$0xff]
    %v2296 = vld [vmem:[#allocation6 + $0x340] sm:$0xff]
    %v2297 = vld [vmem:[#allocation6 + $0x348] sm:$0xff]
    %v2298 = vld [vmem:[#allocation6 + $0x350] sm:$0xff]
    %v2299 = vld [vmem:[#allocation6 + $0x358] sm:$0xff]
    %v2300 = vld [vmem:[#allocation6 + $0x360] sm:$0xff]
    %v2301 = vld [vmem:[#allocation6 + $0x368] sm:$0xff]
    %v2302 = vld [vmem:[#allocation6 + $0x370] sm:$0xff]
    %v2303 = vld [vmem:[#allocation6 + $0x378] sm:$0xff]
    %v2304 = vld [vmem:[#allocation6 + $0x380] sm:$0xff]
    %v2305 = vld [vmem:[#allocation6 + $0x388] sm:$0xff]
    %v2306 = vld [vmem:[#allocation6 + $0x390] sm:$0xff]
    %v2307 = vld [vmem:[#allocation6 + $0x398] sm:$0xff]
    %v2308 = vld [vmem:[#allocation6 + $0x3a0] sm:$0xff]
    %v2309 = vld [vmem:[#allocation6 + $0x3a8] sm:$0xff]
    %v2310 = vld [vmem:[#allocation6 + $0x3b0] sm:$0xff]
    %v2311 = vld [vmem:[#allocation6 + $0x3b8] sm:$0xff]
    %v2312 = vld [vmem:[#allocation6 + $0x3c0] sm:$0xff]
    %v2313 = vld [vmem:[#allocation6 + $0x3c8] sm:$0xff]
    %v2314 = vld [vmem:[#allocation6 + $0x3d0] sm:$0xff]
    %v2315 = vld [vmem:[#allocation6 + $0x3d8] sm:$0xff]
    %v2316 = vld [vmem:[#allocation6 + $0x3e0] sm:$0xff]
    %v2317 = vld [vmem:[#allocation6 + $0x3e8] sm:$0xff]
    %v2318 = vld [vmem:[#allocation6 + $0x3f0] sm:$0xff]
    %v2319 = vld [vmem:[#allocation6 + $0x3f8] sm:$0xff]
    %v2320 = vld [vmem:[#allocation6 + $0x400] sm:$0xff]
    %v2321 = vld [vmem:[#allocation6 + $0x408] sm:$0xff]
    %v2322 = vld [vmem:[#allocation6 + $0x410] sm:$0xff]
    %v2323 = vld [vmem:[#allocation6 + $0x418] sm:$0xff]
    %v2324 = vld [vmem:[#allocation6 + $0x420] sm:$0xff]
    %v2325 = vld [vmem:[#allocation6 + $0x428] sm:$0xff]
    %v2326 = vld [vmem:[#allocation6 + $0x430] sm:$0xff]
    %v2327 = vld [vmem:[#allocation6 + $0x438] sm:$0xff]
    %v2328 = vld [vmem:[#allocation6 + $0x440] sm:$0xff]
    %v2329 = vld [vmem:[#allocation6 + $0x448] sm:$0xff]
    %v2330 = vld [vmem:[#allocation6 + $0x450] sm:$0xff]
    %v2331 = vld [vmem:[#allocation6 + $0x458] sm:$0xff]
    %v2332 = vld [vmem:[#allocation6 + $0x460] sm:$0xff]
    %v2333 = vld [vmem:[#allocation6 + $0x468] sm:$0xff]
    %v2334 = vld [vmem:[#allocation6 + $0x470] sm:$0xff]
    %v2335 = vld [vmem:[#allocation6 + $0x478] sm:$0xff]
    %v2336 = vld [vmem:[#allocation6 + $0x480] sm:$0xff]
    %v2337 = vld [vmem:[#allocation6 + $0x488] sm:$0xff]
    %v2338 = vld [vmem:[#allocation6 + $0x490] sm:$0xff]
    %v2339 = vld [vmem:[#allocation6 + $0x498] sm:$0xff]
    %v2340 = vld [vmem:[#allocation6 + $0x4a0] sm:$0xff]
    %v2341 = vld [vmem:[#allocation6 + $0x4a8] sm:$0xff]
    %v2342 = vld [vmem:[#allocation6 + $0x4b0] sm:$0xff]
    %v2343 = vld [vmem:[#allocation6 + $0x4b8] sm:$0xff]
    %v2344 = vld [vmem:[#allocation6 + $0x4c0] sm:$0xff]
    %v2345 = vld [vmem:[#allocation6 + $0x4c8] sm:$0xff]
    %v2346 = vld [vmem:[#allocation6 + $0x4d0] sm:$0xff]
    %v2347 = vld [vmem:[#allocation6 + $0x4d8] sm:$0xff]
    %v2348 = vld [vmem:[#allocation6 + $0x4e0] sm:$0xff]
    %v2349 = vld [vmem:[#allocation6 + $0x4e8] sm:$0xff]
    %v2350 = vld [vmem:[#allocation6 + $0x4f0] sm:$0xff]
    %v2351 = vld [vmem:[#allocation6 + $0x4f8] sm:$0xff]
    %v2352 = vld [vmem:[#allocation6 + $0x500] sm:$0xff]
    %v2353 = vld [vmem:[#allocation6 + $0x508] sm:$0xff]
    %v2354 = vld [vmem:[#allocation6 + $0x510] sm:$0xff]
    %v2355 = vld [vmem:[#allocation6 + $0x518] sm:$0xff]
    %v2356 = vld [vmem:[#allocation6 + $0x520] sm:$0xff]
    %v2357 = vld [vmem:[#allocation6 + $0x528] sm:$0xff]
    %v2358 = vld [vmem:[#allocation6 + $0x530] sm:$0xff]
    %v2359 = vld [vmem:[#allocation6 + $0x538] sm:$0xff]
    %v2360 = vld [vmem:[#allocation6 + $0x540] sm:$0xff]
    %v2361 = vld [vmem:[#allocation6 + $0x548] sm:$0xff]
    %v2362 = vld [vmem:[#allocation6 + $0x550] sm:$0xff]
    %v2363 = vld [vmem:[#allocation6 + $0x558] sm:$0xff]
    %v2364 = vld [vmem:[#allocation6 + $0x560] sm:$0xff]
    %v2365 = vld [vmem:[#allocation6 + $0x568] sm:$0xff]
    %v2366 = vld [vmem:[#allocation6 + $0x570] sm:$0xff]
    %v2367 = vld [vmem:[#allocation6 + $0x578] sm:$0xff]
    %v2368 = vld [vmem:[#allocation6 + $0x580] sm:$0xff]
    %v2369 = vld [vmem:[#allocation6 + $0x588] sm:$0xff]
    %v2370 = vld [vmem:[#allocation6 + $0x590] sm:$0xff]
    %v2371 = vld [vmem:[#allocation6 + $0x598] sm:$0xff]
    %v2372 = vld [vmem:[#allocation6 + $0x5a0] sm:$0xff]
    %v2373 = vld [vmem:[#allocation6 + $0x5a8] sm:$0xff]
    %v2374 = vld [vmem:[#allocation6 + $0x5b0] sm:$0xff]
    %v2375 = vld [vmem:[#allocation6 + $0x5b8] sm:$0xff]
    %v2376 = vld [vmem:[#allocation6 + $0x5c0] sm:$0xff]
    %v2377 = vld [vmem:[#allocation6 + $0x5c8] sm:$0xff]
    %v2378 = vld [vmem:[#allocation6 + $0x5d0] sm:$0xff]
    %v2379 = vld [vmem:[#allocation6 + $0x5d8] sm:$0xff]
    %v2380 = vld [vmem:[#allocation6 + $0x5e0] sm:$0xff]
    %v2381 = vld [vmem:[#allocation6 + $0x5e8] sm:$0xff]
    %v2382 = vld [vmem:[#allocation6 + $0x5f0] sm:$0xff]
    %v2383 = vld [vmem:[#allocation6 + $0x5f8] sm:$0xff]
    %v2384 = vld [vmem:[#allocation6 + $0x600] sm:$0xff]
    %v2385 = vld [vmem:[#allocation6 + $0x608] sm:$0xff]
    %v2386 = vld [vmem:[#allocation6 + $0x610] sm:$0xff]
    %v2387 = vld [vmem:[#allocation6 + $0x618] sm:$0xff]
    %v2388 = vld [vmem:[#allocation6 + $0x620] sm:$0xff]
    %v2389 = vld [vmem:[#allocation6 + $0x628] sm:$0xff]
    %v2390 = vld [vmem:[#allocation6 + $0x630] sm:$0xff]
    %v2391 = vld [vmem:[#allocation6 + $0x638] sm:$0xff]
    %v2392 = vld [vmem:[#allocation6 + $0x640] sm:$0xff]
    %v2393 = vld [vmem:[#allocation6 + $0x648] sm:$0xff]
    %v2394 = vld [vmem:[#allocation6 + $0x650] sm:$0xff]
    %v2395 = vld [vmem:[#allocation6 + $0x658] sm:$0xff]
    %v2396 = vld [vmem:[#allocation6 + $0x660] sm:$0xff]
    %v2397 = vld [vmem:[#allocation6 + $0x668] sm:$0xff]
    %v2398 = vld [vmem:[#allocation6 + $0x670] sm:$0xff]
    %v2399 = vld [vmem:[#allocation6 + $0x678] sm:$0xff]
    %v2400 = vld [vmem:[#allocation6 + $0x680] sm:$0xff]
    %v2401 = vld [vmem:[#allocation6 + $0x688] sm:$0xff]
    %v2402 = vld [vmem:[#allocation6 + $0x690] sm:$0xff]
    %v2403 = vld [vmem:[#allocation6 + $0x698] sm:$0xff]
    %v2404 = vld [vmem:[#allocation6 + $0x6a0] sm:$0xff]
    %v2405 = vld [vmem:[#allocation6 + $0x6a8] sm:$0xff]
    %v2406 = vld [vmem:[#allocation6 + $0x6b0] sm:$0xff]
    %v2407 = vld [vmem:[#allocation6 + $0x6b8] sm:$0xff]
    %v2408 = vld [vmem:[#allocation6 + $0x6c0] sm:$0xff]
    %v2409 = vld [vmem:[#allocation6 + $0x6c8] sm:$0xff]
    %v2410 = vld [vmem:[#allocation6 + $0x6d0] sm:$0xff]
    %v2411 = vld [vmem:[#allocation6 + $0x6d8] sm:$0xff]
    %v2412 = vld [vmem:[#allocation6 + $0x6e0] sm:$0xff]
    %v2413 = vld [vmem:[#allocation6 + $0x6e8] sm:$0xff]
    %v2414 = vld [vmem:[#allocation6 + $0x6f0] sm:$0xff]
    %v2415 = vld [vmem:[#allocation6 + $0x6f8] sm:$0xff]
    %v2416 = vld [vmem:[#allocation6 + $0x700] sm:$0xff]
    %v2417 = vld [vmem:[#allocation6 + $0x708] sm:$0xff]
    %v2418 = vld [vmem:[#allocation6 + $0x710] sm:$0xff]
    %v2419 = vld [vmem:[#allocation6 + $0x718] sm:$0xff]
    %v2420 = vld [vmem:[#allocation6 + $0x720] sm:$0xff]
    %v2421 = vld [vmem:[#allocation6 + $0x728] sm:$0xff]
    %v2422 = vld [vmem:[#allocation6 + $0x730] sm:$0xff]
    %v2423 = vld [vmem:[#allocation6 + $0x738] sm:$0xff]
    %v2424 = vld [vmem:[#allocation6 + $0x740] sm:$0xff]
    %v2425 = vld [vmem:[#allocation6 + $0x748] sm:$0xff]
    %v2426 = vld [vmem:[#allocation6 + $0x750] sm:$0xff]
    %v2427 = vld [vmem:[#allocation6 + $0x758] sm:$0xff]
    %v2428 = vld [vmem:[#allocation6 + $0x760] sm:$0xff]
    %v2429 = vld [vmem:[#allocation6 + $0x768] sm:$0xff]
    %v2430 = vld [vmem:[#allocation6 + $0x770] sm:$0xff]
    %v2431 = vld [vmem:[#allocation6 + $0x778] sm:$0xff]
    %v2432 = vld [vmem:[#allocation6 + $0x780] sm:$0xff]
    %v2433 = vld [vmem:[#allocation6 + $0x788] sm:$0xff]
    %v2434 = vld [vmem:[#allocation6 + $0x790] sm:$0xff]
    %v2435 = vld [vmem:[#allocation6 + $0x798] sm:$0xff]
    %v2436 = vld [vmem:[#allocation6 + $0x7a0] sm:$0xff]
    %v2437 = vld [vmem:[#allocation6 + $0x7a8] sm:$0xff]
    %v2438 = vld [vmem:[#allocation6 + $0x7b0] sm:$0xff]
    %v2439 = vld [vmem:[#allocation6 + $0x7b8] sm:$0xff]
    %v2440 = vld [vmem:[#allocation6 + $0x7c0] sm:$0xff]
    %v2441 = vld [vmem:[#allocation6 + $0x7c8] sm:$0xff]
    %v2442 = vld [vmem:[#allocation6 + $0x7d0] sm:$0xff]
    %v2443 = vld [vmem:[#allocation6 + $0x7d8] sm:$0xff]
    %v2444 = vld [vmem:[#allocation6 + $0x7e0] sm:$0xff]
    %v2445 = vld [vmem:[#allocation6 + $0x7e8] sm:$0xff]
    %v2446 = vld [vmem:[#allocation6 + $0x7f0] sm:$0xff]
    %v2447 = vld [vmem:[#allocation6 + $0x7f8] sm:$0xff]
    %v2704 = vunpack.c.l.b16 %v2192
    %v2705 = vunpack.c.h.b16 %v2192
    %v2706 = vunpack.c.l.b16 %v2193
    %v2707 = vunpack.c.h.b16 %v2193
    %v2708 = vunpack.c.l.b16 %v2194
    %v2709 = vunpack.c.h.b16 %v2194
    %v2710 = vunpack.c.l.b16 %v2195
    %v2711 = vunpack.c.h.b16 %v2195
    %v2712 = vunpack.c.l.b16 %v2196
    %v2713 = vunpack.c.h.b16 %v2196
    %v2714 = vunpack.c.l.b16 %v2197
    %v2715 = vunpack.c.h.b16 %v2197
    %v2716 = vunpack.c.l.b16 %v2198
    %v2717 = vunpack.c.h.b16 %v2198
    %v2718 = vunpack.c.l.b16 %v2199
    %v2719 = vunpack.c.h.b16 %v2199
    %v2720 = vunpack.c.l.b16 %v2200
    %v2721 = vunpack.c.h.b16 %v2200
    %v2722 = vunpack.c.l.b16 %v2201
    %v2723 = vunpack.c.h.b16 %v2201
    %v2724 = vunpack.c.l.b16 %v2202
    %v2725 = vunpack.c.h.b16 %v2202
    %v2726 = vunpack.c.l.b16 %v2203
    %v2727 = vunpack.c.h.b16 %v2203
    %v2728 = vunpack.c.l.b16 %v2204
    %v2729 = vunpack.c.h.b16 %v2204
    %v2730 = vunpack.c.l.b16 %v2205
    %v2731 = vunpack.c.h.b16 %v2205
    %v2732 = vunpack.c.l.b16 %v2206
    %v2733 = vunpack.c.h.b16 %v2206
    %v2734 = vunpack.c.l.b16 %v2207
    %v2735 = vunpack.c.h.b16 %v2207
    %v2736 = vunpack.c.l.b16 %v2208
    %v2737 = vunpack.c.h.b16 %v2208
    %v2738 = vunpack.c.l.b16 %v2209
    %v2739 = vunpack.c.h.b16 %v2209
    %v2740 = vunpack.c.l.b16 %v2210
    %v2741 = vunpack.c.h.b16 %v2210
    %v2742 = vunpack.c.l.b16 %v2211
    %v2743 = vunpack.c.h.b16 %v2211
    %v2744 = vunpack.c.l.b16 %v2212
    %v2745 = vunpack.c.h.b16 %v2212
    %v2746 = vunpack.c.l.b16 %v2213
    %v2747 = vunpack.c.h.b16 %v2213
    %v2748 = vunpack.c.l.b16 %v2214
    %v2749 = vunpack.c.h.b16 %v2214
    %v2750 = vunpack.c.l.b16 %v2215
    %v2751 = vunpack.c.h.b16 %v2215
    %v2752 = vunpack.c.l.b16 %v2216
    %v2753 = vunpack.c.h.b16 %v2216
    %v2754 = vunpack.c.l.b16 %v2217
    %v2755 = vunpack.c.h.b16 %v2217
    %v2756 = vunpack.c.l.b16 %v2218
    %v2757 = vunpack.c.h.b16 %v2218
    %v2758 = vunpack.c.l.b16 %v2219
    %v2759 = vunpack.c.h.b16 %v2219
    %v2760 = vunpack.c.l.b16 %v2220
    %v2761 = vunpack.c.h.b16 %v2220
    %v2762 = vunpack.c.l.b16 %v2221
    %v2763 = vunpack.c.h.b16 %v2221
    %v2764 = vunpack.c.l.b16 %v2222
    %v2765 = vunpack.c.h.b16 %v2222
    %v2766 = vunpack.c.l.b16 %v2223
    %v2767 = vunpack.c.h.b16 %v2223
    %v2768 = vunpack.c.l.b16 %v2224
    %v2769 = vunpack.c.h.b16 %v2224
    %v2770 = vunpack.c.l.b16 %v2225
    %v2771 = vunpack.c.h.b16 %v2225
    %v2772 = vunpack.c.l.b16 %v2226
    %v2773 = vunpack.c.h.b16 %v2226
    %v2774 = vunpack.c.l.b16 %v2227
    %v2775 = vunpack.c.h.b16 %v2227
    %v2776 = vunpack.c.l.b16 %v2228
    %v2777 = vunpack.c.h.b16 %v2228
    %v2778 = vunpack.c.l.b16 %v2229
    %v2779 = vunpack.c.h.b16 %v2229
    %v2780 = vunpack.c.l.b16 %v2230
    %v2781 = vunpack.c.h.b16 %v2230
    %v2782 = vunpack.c.l.b16 %v2231
    %v2783 = vunpack.c.h.b16 %v2231
    %v2784 = vunpack.c.l.b16 %v2232
    %v2785 = vunpack.c.h.b16 %v2232
    %v2786 = vunpack.c.l.b16 %v2233
    %v2787 = vunpack.c.h.b16 %v2233
    %v2788 = vunpack.c.l.b16 %v2234
    %v2789 = vunpack.c.h.b16 %v2234
    %v2790 = vunpack.c.l.b16 %v2235
    %v2791 = vunpack.c.h.b16 %v2235
    %v2792 = vunpack.c.l.b16 %v2236
    %v2793 = vunpack.c.h.b16 %v2236
    %v2794 = vunpack.c.l.b16 %v2237
    %v2795 = vunpack.c.h.b16 %v2237
    %v2796 = vunpack.c.l.b16 %v2238
    %v2797 = vunpack.c.h.b16 %v2238
    %v2798 = vunpack.c.l.b16 %v2239
    %v2799 = vunpack.c.h.b16 %v2239
    %v2800 = vunpack.c.l.b16 %v2240
    %v2801 = vunpack.c.h.b16 %v2240
    %v2802 = vunpack.c.l.b16 %v2241
    %v2803 = vunpack.c.h.b16 %v2241
    %v2804 = vunpack.c.l.b16 %v2242
    %v2805 = vunpack.c.h.b16 %v2242
    %v2806 = vunpack.c.l.b16 %v2243
    %v2807 = vunpack.c.h.b16 %v2243
    %v2808 = vunpack.c.l.b16 %v2244
    %v2809 = vunpack.c.h.b16 %v2244
    %v2810 = vunpack.c.l.b16 %v2245
    %v2811 = vunpack.c.h.b16 %v2245
    %v2812 = vunpack.c.l.b16 %v2246
    %v2813 = vunpack.c.h.b16 %v2246
    %v2814 = vunpack.c.l.b16 %v2247
    %v2815 = vunpack.c.h.b16 %v2247
    %v2816 = vunpack.c.l.b16 %v2248
    %v2817 = vunpack.c.h.b16 %v2248
    %v2818 = vunpack.c.l.b16 %v2249
    %v2819 = vunpack.c.h.b16 %v2249
    %v2820 = vunpack.c.l.b16 %v2250
    %v2821 = vunpack.c.h.b16 %v2250
    %v2822 = vunpack.c.l.b16 %v2251
    %v2823 = vunpack.c.h.b16 %v2251
    %v2824 = vunpack.c.l.b16 %v2252
    %v2825 = vunpack.c.h.b16 %v2252
    %v2826 = vunpack.c.l.b16 %v2253
    %v2827 = vunpack.c.h.b16 %v2253
    %v2828 = vunpack.c.l.b16 %v2254
    %v2829 = vunpack.c.h.b16 %v2254
    %v2830 = vunpack.c.l.b16 %v2255
    %v2831 = vunpack.c.h.b16 %v2255
    %v2832 = vunpack.c.l.b16 %v2256
    %v2833 = vunpack.c.h.b16 %v2256
    %v2834 = vunpack.c.l.b16 %v2257
    %v2835 = vunpack.c.h.b16 %v2257
    %v2836 = vunpack.c.l.b16 %v2258
    %v2837 = vunpack.c.h.b16 %v2258
    %v2838 = vunpack.c.l.b16 %v2259
    %v2839 = vunpack.c.h.b16 %v2259
    %v2840 = vunpack.c.l.b16 %v2260
    %v2841 = vunpack.c.h.b16 %v2260
    %v2842 = vunpack.c.l.b16 %v2261
    %v2843 = vunpack.c.h.b16 %v2261
    %v2844 = vunpack.c.l.b16 %v2262
    %v2845 = vunpack.c.h.b16 %v2262
    %v2846 = vunpack.c.l.b16 %v2263
    %v2847 = vunpack.c.h.b16 %v2263
    %v2848 = vunpack.c.l.b16 %v2264
    %v2849 = vunpack.c.h.b16 %v2264
    %v2850 = vunpack.c.l.b16 %v2265
    %v2851 = vunpack.c.h.b16 %v2265
    %v2852 = vunpack.c.l.b16 %v2266
    %v2853 = vunpack.c.h.b16 %v2266
    %v2854 = vunpack.c.l.b16 %v2267
    %v2855 = vunpack.c.h.b16 %v2267
    %v2856 = vunpack.c.l.b16 %v2268
    %v2857 = vunpack.c.h.b16 %v2268
    %v2858 = vunpack.c.l.b16 %v2269
    %v2859 = vunpack.c.h.b16 %v2269
    %v2860 = vunpack.c.l.b16 %v2270
    %v2861 = vunpack.c.h.b16 %v2270
    %v2862 = vunpack.c.l.b16 %v2271
    %v2863 = vunpack.c.h.b16 %v2271
    %v2864 = vunpack.c.l.b16 %v2272
    %v2865 = vunpack.c.h.b16 %v2272
    %v2866 = vunpack.c.l.b16 %v2273
    %v2867 = vunpack.c.h.b16 %v2273
    %v2868 = vunpack.c.l.b16 %v2274
    %v2869 = vunpack.c.h.b16 %v2274
    %v2870 = vunpack.c.l.b16 %v2275
    %v2871 = vunpack.c.h.b16 %v2275
    %v2872 = vunpack.c.l.b16 %v2276
    %v2873 = vunpack.c.h.b16 %v2276
    %v2874 = vunpack.c.l.b16 %v2277
    %v2875 = vunpack.c.h.b16 %v2277
    %v2876 = vunpack.c.l.b16 %v2278
    %v2877 = vunpack.c.h.b16 %v2278
    %v2878 = vunpack.c.l.b16 %v2279
    %v2879 = vunpack.c.h.b16 %v2279
    %v2880 = vunpack.c.l.b16 %v2280
    %v2881 = vunpack.c.h.b16 %v2280
    %v2882 = vunpack.c.l.b16 %v2281
    %v2883 = vunpack.c.h.b16 %v2281
    %v2884 = vunpack.c.l.b16 %v2282
    %v2885 = vunpack.c.h.b16 %v2282
    %v2886 = vunpack.c.l.b16 %v2283
    %v2887 = vunpack.c.h.b16 %v2283
    %v2888 = vunpack.c.l.b16 %v2284
    %v2889 = vunpack.c.h.b16 %v2284
    %v2890 = vunpack.c.l.b16 %v2285
    %v2891 = vunpack.c.h.b16 %v2285
    %v2892 = vunpack.c.l.b16 %v2286
    %v2893 = vunpack.c.h.b16 %v2286
    %v2894 = vunpack.c.l.b16 %v2287
    %v2895 = vunpack.c.h.b16 %v2287
    %v2896 = vunpack.c.l.b16 %v2288
    %v2897 = vunpack.c.h.b16 %v2288
    %v2898 = vunpack.c.l.b16 %v2289
    %v2899 = vunpack.c.h.b16 %v2289
    %v2900 = vunpack.c.l.b16 %v2290
    %v2901 = vunpack.c.h.b16 %v2290
    %v2902 = vunpack.c.l.b16 %v2291
    %v2903 = vunpack.c.h.b16 %v2291
    %v2904 = vunpack.c.l.b16 %v2292
    %v2905 = vunpack.c.h.b16 %v2292
    %v2906 = vunpack.c.l.b16 %v2293
    %v2907 = vunpack.c.h.b16 %v2293
    %v2908 = vunpack.c.l.b16 %v2294
    %v2909 = vunpack.c.h.b16 %v2294
    %v2910 = vunpack.c.l.b16 %v2295
    %v2911 = vunpack.c.h.b16 %v2295
    %v2912 = vunpack.c.l.b16 %v2296
    %v2913 = vunpack.c.h.b16 %v2296
    %v2914 = vunpack.c.l.b16 %v2297
    %v2915 = vunpack.c.h.b16 %v2297
    %v2916 = vunpack.c.l.b16 %v2298
    %v2917 = vunpack.c.h.b16 %v2298
    %v2918 = vunpack.c.l.b16 %v2299
    %v2919 = vunpack.c.h.b16 %v2299
    %v2920 = vunpack.c.l.b16 %v2300
    %v2921 = vunpack.c.h.b16 %v2300
    %v2922 = vunpack.c.l.b16 %v2301
    %v2923 = vunpack.c.h.b16 %v2301
    %v2924 = vunpack.c.l.b16 %v2302
    %v2925 = vunpack.c.h.b16 %v2302
    %v2926 = vunpack.c.l.b16 %v2303
    %v2927 = vunpack.c.h.b16 %v2303
    %v2928 = vunpack.c.l.b16 %v2304
    %v2929 = vunpack.c.h.b16 %v2304
    %v2930 = vunpack.c.l.b16 %v2305
    %v2931 = vunpack.c.h.b16 %v2305
    %v2932 = vunpack.c.l.b16 %v2306
    %v2933 = vunpack.c.h.b16 %v2306
    %v2934 = vunpack.c.l.b16 %v2307
    %v2935 = vunpack.c.h.b16 %v2307
    %v2936 = vunpack.c.l.b16 %v2308
    %v2937 = vunpack.c.h.b16 %v2308
    %v2938 = vunpack.c.l.b16 %v2309
    %v2939 = vunpack.c.h.b16 %v2309
    %v2940 = vunpack.c.l.b16 %v2310
    %v2941 = vunpack.c.h.b16 %v2310
    %v2942 = vunpack.c.l.b16 %v2311
    %v2943 = vunpack.c.h.b16 %v2311
    %v2944 = vunpack.c.l.b16 %v2312
    %v2945 = vunpack.c.h.b16 %v2312
    %v2946 = vunpack.c.l.b16 %v2313
    %v2947 = vunpack.c.h.b16 %v2313
    %v2948 = vunpack.c.l.b16 %v2314
    %v2949 = vunpack.c.h.b16 %v2314
    %v2950 = vunpack.c.l.b16 %v2315
    %v2951 = vunpack.c.h.b16 %v2315
    %v2952 = vunpack.c.l.b16 %v2316
    %v2953 = vunpack.c.h.b16 %v2316
    %v2954 = vunpack.c.l.b16 %v2317
    %v2955 = vunpack.c.h.b16 %v2317
    %v2956 = vunpack.c.l.b16 %v2318
    %v2957 = vunpack.c.h.b16 %v2318
    %v2958 = vunpack.c.l.b16 %v2319
    %v2959 = vunpack.c.h.b16 %v2319
    %v2960 = vunpack.c.l.b16 %v2320
    %v2961 = vunpack.c.h.b16 %v2320
    %v2962 = vunpack.c.l.b16 %v2321
    %v2963 = vunpack.c.h.b16 %v2321
    %v2964 = vunpack.c.l.b16 %v2322
    %v2965 = vunpack.c.h.b16 %v2322
    %v2966 = vunpack.c.l.b16 %v2323
    %v2967 = vunpack.c.h.b16 %v2323
    %v2968 = vunpack.c.l.b16 %v2324
    %v2969 = vunpack.c.h.b16 %v2324
    %v2970 = vunpack.c.l.b16 %v2325
    %v2971 = vunpack.c.h.b16 %v2325
    %v2972 = vunpack.c.l.b16 %v2326
    %v2973 = vunpack.c.h.b16 %v2326
    %v2974 = vunpack.c.l.b16 %v2327
    %v2975 = vunpack.c.h.b16 %v2327
    %v2976 = vunpack.c.l.b16 %v2328
    %v2977 = vunpack.c.h.b16 %v2328
    %v2978 = vunpack.c.l.b16 %v2329
    %v2979 = vunpack.c.h.b16 %v2329
    %v2980 = vunpack.c.l.b16 %v2330
    %v2981 = vunpack.c.h.b16 %v2330
    %v2982 = vunpack.c.l.b16 %v2331
    %v2983 = vunpack.c.h.b16 %v2331
    %v2984 = vunpack.c.l.b16 %v2332
    %v2985 = vunpack.c.h.b16 %v2332
    %v2986 = vunpack.c.l.b16 %v2333
    %v2987 = vunpack.c.h.b16 %v2333
    %v2988 = vunpack.c.l.b16 %v2334
    %v2989 = vunpack.c.h.b16 %v2334
    %v2990 = vunpack.c.l.b16 %v2335
    %v2991 = vunpack.c.h.b16 %v2335
    %v2992 = vunpack.c.l.b16 %v2336
    %v2993 = vunpack.c.h.b16 %v2336
    %v2994 = vunpack.c.l.b16 %v2337
    %v2995 = vunpack.c.h.b16 %v2337
    %v2996 = vunpack.c.l.b16 %v2338
    %v2997 = vunpack.c.h.b16 %v2338
    %v2998 = vunpack.c.l.b16 %v2339
    %v2999 = vunpack.c.h.b16 %v2339
    %v3000 = vunpack.c.l.b16 %v2340
    %v3001 = vunpack.c.h.b16 %v2340
    %v3002 = vunpack.c.l.b16 %v2341
    %v3003 = vunpack.c.h.b16 %v2341
    %v3004 = vunpack.c.l.b16 %v2342
    %v3005 = vunpack.c.h.b16 %v2342
    %v3006 = vunpack.c.l.b16 %v2343
    %v3007 = vunpack.c.h.b16 %v2343
    %v3008 = vunpack.c.l.b16 %v2344
    %v3009 = vunpack.c.h.b16 %v2344
    %v3010 = vunpack.c.l.b16 %v2345
    %v3011 = vunpack.c.h.b16 %v2345
    %v3012 = vunpack.c.l.b16 %v2346
    %v3013 = vunpack.c.h.b16 %v2346
    %v3014 = vunpack.c.l.b16 %v2347
    %v3015 = vunpack.c.h.b16 %v2347
    %v3016 = vunpack.c.l.b16 %v2348
    %v3017 = vunpack.c.h.b16 %v2348
    %v3018 = vunpack.c.l.b16 %v2349
    %v3019 = vunpack.c.h.b16 %v2349
    %v3020 = vunpack.c.l.b16 %v2350
    %v3021 = vunpack.c.h.b16 %v2350
    %v3022 = vunpack.c.l.b16 %v2351
    %v3023 = vunpack.c.h.b16 %v2351
    %v3024 = vunpack.c.l.b16 %v2352
    %v3025 = vunpack.c.h.b16 %v2352
    %v3026 = vunpack.c.l.b16 %v2353
    %v3027 = vunpack.c.h.b16 %v2353
    %v3028 = vunpack.c.l.b16 %v2354
    %v3029 = vunpack.c.h.b16 %v2354
    %v3030 = vunpack.c.l.b16 %v2355
    %v3031 = vunpack.c.h.b16 %v2355
    %v3032 = vunpack.c.l.b16 %v2356
    %v3033 = vunpack.c.h.b16 %v2356
    %v3034 = vunpack.c.l.b16 %v2357
    %v3035 = vunpack.c.h.b16 %v2357
    %v3036 = vunpack.c.l.b16 %v2358
    %v3037 = vunpack.c.h.b16 %v2358
    %v3038 = vunpack.c.l.b16 %v2359
    %v3039 = vunpack.c.h.b16 %v2359
    %v3040 = vunpack.c.l.b16 %v2360
    %v3041 = vunpack.c.h.b16 %v2360
    %v3042 = vunpack.c.l.b16 %v2361
    %v3043 = vunpack.c.h.b16 %v2361
    %v3044 = vunpack.c.l.b16 %v2362
    %v3045 = vunpack.c.h.b16 %v2362
    %v3046 = vunpack.c.l.b16 %v2363
    %v3047 = vunpack.c.h.b16 %v2363
    %v3048 = vunpack.c.l.b16 %v2364
    %v3049 = vunpack.c.h.b16 %v2364
    %v3050 = vunpack.c.l.b16 %v2365
    %v3051 = vunpack.c.h.b16 %v2365
    %v3052 = vunpack.c.l.b16 %v2366
    %v3053 = vunpack.c.h.b16 %v2366
    %v3054 = vunpack.c.l.b16 %v2367
    %v3055 = vunpack.c.h.b16 %v2367
    %v3056 = vunpack.c.l.b16 %v2368
    %v3057 = vunpack.c.h.b16 %v2368
    %v3058 = vunpack.c.l.b16 %v2369
    %v3059 = vunpack.c.h.b16 %v2369
    %v3060 = vunpack.c.l.b16 %v2370
    %v3061 = vunpack.c.h.b16 %v2370
    %v3062 = vunpack.c.l.b16 %v2371
    %v3063 = vunpack.c.h.b16 %v2371
    %v3064 = vunpack.c.l.b16 %v2372
    %v3065 = vunpack.c.h.b16 %v2372
    %v3066 = vunpack.c.l.b16 %v2373
    %v3067 = vunpack.c.h.b16 %v2373
    %v3068 = vunpack.c.l.b16 %v2374
    %v3069 = vunpack.c.h.b16 %v2374
    %v3070 = vunpack.c.l.b16 %v2375
    %v3071 = vunpack.c.h.b16 %v2375
    %v3072 = vunpack.c.l.b16 %v2376
    %v3073 = vunpack.c.h.b16 %v2376
    %v3074 = vunpack.c.l.b16 %v2377
    %v3075 = vunpack.c.h.b16 %v2377
    %v3076 = vunpack.c.l.b16 %v2378
    %v3077 = vunpack.c.h.b16 %v2378
    %v3078 = vunpack.c.l.b16 %v2379
    %v3079 = vunpack.c.h.b16 %v2379
    %v3080 = vunpack.c.l.b16 %v2380
    %v3081 = vunpack.c.h.b16 %v2380
    %v3082 = vunpack.c.l.b16 %v2381
    %v3083 = vunpack.c.h.b16 %v2381
    %v3084 = vunpack.c.l.b16 %v2382
    %v3085 = vunpack.c.h.b16 %v2382
    %v3086 = vunpack.c.l.b16 %v2383
    %v3087 = vunpack.c.h.b16 %v2383
    %v3088 = vunpack.c.l.b16 %v2384
    %v3089 = vunpack.c.h.b16 %v2384
    %v3090 = vunpack.c.l.b16 %v2385
    %v3091 = vunpack.c.h.b16 %v2385
    %v3092 = vunpack.c.l.b16 %v2386
    %v3093 = vunpack.c.h.b16 %v2386
    %v3094 = vunpack.c.l.b16 %v2387
    %v3095 = vunpack.c.h.b16 %v2387
    %v3096 = vunpack.c.l.b16 %v2388
    %v3097 = vunpack.c.h.b16 %v2388
    %v3098 = vunpack.c.l.b16 %v2389
    %v3099 = vunpack.c.h.b16 %v2389
    %v3100 = vunpack.c.l.b16 %v2390
    %v3101 = vunpack.c.h.b16 %v2390
    %v3102 = vunpack.c.l.b16 %v2391
    %v3103 = vunpack.c.h.b16 %v2391
    %v3104 = vunpack.c.l.b16 %v2392
    %v3105 = vunpack.c.h.b16 %v2392
    %v3106 = vunpack.c.l.b16 %v2393
    %v3107 = vunpack.c.h.b16 %v2393
    %v3108 = vunpack.c.l.b16 %v2394
    %v3109 = vunpack.c.h.b16 %v2394
    %v3110 = vunpack.c.l.b16 %v2395
    %v3111 = vunpack.c.h.b16 %v2395
    %v3112 = vunpack.c.l.b16 %v2396
    %v3113 = vunpack.c.h.b16 %v2396
    %v3114 = vunpack.c.l.b16 %v2397
    %v3115 = vunpack.c.h.b16 %v2397
    %v3116 = vunpack.c.l.b16 %v2398
    %v3117 = vunpack.c.h.b16 %v2398
    %v3118 = vunpack.c.l.b16 %v2399
    %v3119 = vunpack.c.h.b16 %v2399
    %v3120 = vunpack.c.l.b16 %v2400
    %v3121 = vunpack.c.h.b16 %v2400
    %v3122 = vunpack.c.l.b16 %v2401
    %v3123 = vunpack.c.h.b16 %v2401
    %v3124 = vunpack.c.l.b16 %v2402
    %v3125 = vunpack.c.h.b16 %v2402
    %v3126 = vunpack.c.l.b16 %v2403
    %v3127 = vunpack.c.h.b16 %v2403
    %v3128 = vunpack.c.l.b16 %v2404
    %v3129 = vunpack.c.h.b16 %v2404
    %v3130 = vunpack.c.l.b16 %v2405
    %v3131 = vunpack.c.h.b16 %v2405
    %v3132 = vunpack.c.l.b16 %v2406
    %v3133 = vunpack.c.h.b16 %v2406
    %v3134 = vunpack.c.l.b16 %v2407
    %v3135 = vunpack.c.h.b16 %v2407
    %v3136 = vunpack.c.l.b16 %v2408
    %v3137 = vunpack.c.h.b16 %v2408
    %v3138 = vunpack.c.l.b16 %v2409
    %v3139 = vunpack.c.h.b16 %v2409
    %v3140 = vunpack.c.l.b16 %v2410
    %v3141 = vunpack.c.h.b16 %v2410
    %v3142 = vunpack.c.l.b16 %v2411
    %v3143 = vunpack.c.h.b16 %v2411
    %v3144 = vunpack.c.l.b16 %v2412
    %v3145 = vunpack.c.h.b16 %v2412
    %v3146 = vunpack.c.l.b16 %v2413
    %v3147 = vunpack.c.h.b16 %v2413
    %v3148 = vunpack.c.l.b16 %v2414
    %v3149 = vunpack.c.h.b16 %v2414
    %v3150 = vunpack.c.l.b16 %v2415
    %v3151 = vunpack.c.h.b16 %v2415
    %v3152 = vunpack.c.l.b16 %v2416
    %v3153 = vunpack.c.h.b16 %v2416
    %v3154 = vunpack.c.l.b16 %v2417
    %v3155 = vunpack.c.h.b16 %v2417
    %v3156 = vunpack.c.l.b16 %v2418
    %v3157 = vunpack.c.h.b16 %v2418
    %v3158 = vunpack.c.l.b16 %v2419
    %v3159 = vunpack.c.h.b16 %v2419
    %v3160 = vunpack.c.l.b16 %v2420
    %v3161 = vunpack.c.h.b16 %v2420
    %v3162 = vunpack.c.l.b16 %v2421
    %v3163 = vunpack.c.h.b16 %v2421
    %v3164 = vunpack.c.l.b16 %v2422
    %v3165 = vunpack.c.h.b16 %v2422
    %v3166 = vunpack.c.l.b16 %v2423
    %v3167 = vunpack.c.h.b16 %v2423
    %v3168 = vunpack.c.l.b16 %v2424
    %v3169 = vunpack.c.h.b16 %v2424
    %v3170 = vunpack.c.l.b16 %v2425
    %v3171 = vunpack.c.h.b16 %v2425
    %v3172 = vunpack.c.l.b16 %v2426
    %v3173 = vunpack.c.h.b16 %v2426
    %v3174 = vunpack.c.l.b16 %v2427
    %v3175 = vunpack.c.h.b16 %v2427
    %v3176 = vunpack.c.l.b16 %v2428
    %v3177 = vunpack.c.h.b16 %v2428
    %v3178 = vunpack.c.l.b16 %v2429
    %v3179 = vunpack.c.h.b16 %v2429
    %v3180 = vunpack.c.l.b16 %v2430
    %v3181 = vunpack.c.h.b16 %v2430
    %v3182 = vunpack.c.l.b16 %v2431
    %v3183 = vunpack.c.h.b16 %v2431
    %v3184 = vunpack.c.l.b16 %v2432
    %v3185 = vunpack.c.h.b16 %v2432
    %v3186 = vunpack.c.l.b16 %v2433
    %v3187 = vunpack.c.h.b16 %v2433
    %v3188 = vunpack.c.l.b16 %v2434
    %v3189 = vunpack.c.h.b16 %v2434
    %v3190 = vunpack.c.l.b16 %v2435
    %v3191 = vunpack.c.h.b16 %v2435
    %v3192 = vunpack.c.l.b16 %v2436
    %v3193 = vunpack.c.h.b16 %v2436
    %v3194 = vunpack.c.l.b16 %v2437
    %v3195 = vunpack.c.h.b16 %v2437
    %v3196 = vunpack.c.l.b16 %v2438
    %v3197 = vunpack.c.h.b16 %v2438
    %v3198 = vunpack.c.l.b16 %v2439
    %v3199 = vunpack.c.h.b16 %v2439
    %v3200 = vunpack.c.l.b16 %v2440
    %v3201 = vunpack.c.h.b16 %v2440
    %v3202 = vunpack.c.l.b16 %v2441
    %v3203 = vunpack.c.h.b16 %v2441
    %v3204 = vunpack.c.l.b16 %v2442
    %v3205 = vunpack.c.h.b16 %v2442
    %v3206 = vunpack.c.l.b16 %v2443
    %v3207 = vunpack.c.h.b16 %v2443
    %v3208 = vunpack.c.l.b16 %v2444
    %v3209 = vunpack.c.h.b16 %v2444
    %v3210 = vunpack.c.l.b16 %v2445
    %v3211 = vunpack.c.h.b16 %v2445
    %v3212 = vunpack.c.l.b16 %v2446
    %v3213 = vunpack.c.h.b16 %v2446
    %v3214 = vunpack.c.l.b16 %v2447
    %v3215 = vunpack.c.h.b16 %v2447
    %v3216 = vpack.c.b16 %v2712, %v2704
    %v3217 = vpack.c.b16 %v2713, %v2705
    %v3218 = vpack.c.b16 %v2714, %v2706
    %v3219 = vpack.c.b16 %v2715, %v2707
    %v3220 = vpack.c.b16 %v2716, %v2708
    %v3221 = vpack.c.b16 %v2717, %v2709
    %v3222 = vpack.c.b16 %v2718, %v2710
    %v3223 = vpack.c.b16 %v2719, %v2711
    %v3224 = vpack.c.b16 %v2728, %v2720
    %v3225 = vpack.c.b16 %v2729, %v2721
    %v3226 = vpack.c.b16 %v2730, %v2722
    %v3227 = vpack.c.b16 %v2731, %v2723
    %v3228 = vpack.c.b16 %v2732, %v2724
    %v3229 = vpack.c.b16 %v2733, %v2725
    %v3230 = vpack.c.b16 %v2734, %v2726
    %v3231 = vpack.c.b16 %v2735, %v2727
    %v3232 = vpack.c.b16 %v2744, %v2736
    %v3233 = vpack.c.b16 %v2745, %v2737
    %v3234 = vpack.c.b16 %v2746, %v2738
    %v3235 = vpack.c.b16 %v2747, %v2739
    %v3236 = vpack.c.b16 %v2748, %v2740
    %v3237 = vpack.c.b16 %v2749, %v2741
    %v3238 = vpack.c.b16 %v2750, %v2742
    %v3239 = vpack.c.b16 %v2751, %v2743
    %v3240 = vpack.c.b16 %v2760, %v2752
    %v3241 = vpack.c.b16 %v2761, %v2753
    %v3242 = vpack.c.b16 %v2762, %v2754
    %v3243 = vpack.c.b16 %v2763, %v2755
    %v3244 = vpack.c.b16 %v2764, %v2756
    %v3245 = vpack.c.b16 %v2765, %v2757
    %v3246 = vpack.c.b16 %v2766, %v2758
    %v3247 = vpack.c.b16 %v2767, %v2759
    %v3248 = vpack.c.b16 %v2776, %v2768
    %v3249 = vpack.c.b16 %v2777, %v2769
    %v3250 = vpack.c.b16 %v2778, %v2770
    %v3251 = vpack.c.b16 %v2779, %v2771
    %v3252 = vpack.c.b16 %v2780, %v2772
    %v3253 = vpack.c.b16 %v2781, %v2773
    %v3254 = vpack.c.b16 %v2782, %v2774
    %v3255 = vpack.c.b16 %v2783, %v2775
    %v3256 = vpack.c.b16 %v2792, %v2784
    %v3257 = vpack.c.b16 %v2793, %v2785
    %v3258 = vpack.c.b16 %v2794, %v2786
    %v3259 = vpack.c.b16 %v2795, %v2787
    %v3260 = vpack.c.b16 %v2796, %v2788
    %v3261 = vpack.c.b16 %v2797, %v2789
    %v3262 = vpack.c.b16 %v2798, %v2790
    %v3263 = vpack.c.b16 %v2799, %v2791
    %v3264 = vpack.c.b16 %v2808, %v2800
    %v3265 = vpack.c.b16 %v2809, %v2801
    %v3266 = vpack.c.b16 %v2810, %v2802
    %v3267 = vpack.c.b16 %v2811, %v2803
    %v3268 = vpack.c.b16 %v2812, %v2804
    %v3269 = vpack.c.b16 %v2813, %v2805
    %v3270 = vpack.c.b16 %v2814, %v2806
    %v3271 = vpack.c.b16 %v2815, %v2807
    %v3272 = vpack.c.b16 %v2824, %v2816
    %v3273 = vpack.c.b16 %v2825, %v2817
    %v3274 = vpack.c.b16 %v2826, %v2818
    %v3275 = vpack.c.b16 %v2827, %v2819
    %v3276 = vpack.c.b16 %v2828, %v2820
    %v3277 = vpack.c.b16 %v2829, %v2821
    %v3278 = vpack.c.b16 %v2830, %v2822
    %v3279 = vpack.c.b16 %v2831, %v2823
    %v3280 = vpack.c.b16 %v2840, %v2832
    %v3281 = vpack.c.b16 %v2841, %v2833
    %v3282 = vpack.c.b16 %v2842, %v2834
    %v3283 = vpack.c.b16 %v2843, %v2835
    %v3284 = vpack.c.b16 %v2844, %v2836
    %v3285 = vpack.c.b16 %v2845, %v2837
    %v3286 = vpack.c.b16 %v2846, %v2838
    %v3287 = vpack.c.b16 %v2847, %v2839
    %v3288 = vpack.c.b16 %v2856, %v2848
    %v3289 = vpack.c.b16 %v2857, %v2849
    %v3290 = vpack.c.b16 %v2858, %v2850
    %v3291 = vpack.c.b16 %v2859, %v2851
    %v3292 = vpack.c.b16 %v2860, %v2852
    %v3293 = vpack.c.b16 %v2861, %v2853
    %v3294 = vpack.c.b16 %v2862, %v2854
    %v3295 = vpack.c.b16 %v2863, %v2855
    %v3296 = vpack.c.b16 %v2872, %v2864
    %v3297 = vpack.c.b16 %v2873, %v2865
    %v3298 = vpack.c.b16 %v2874, %v2866
    %v3299 = vpack.c.b16 %v2875, %v2867
    %v3300 = vpack.c.b16 %v2876, %v2868
    %v3301 = vpack.c.b16 %v2877, %v2869
    %v3302 = vpack.c.b16 %v2878, %v2870
    %v3303 = vpack.c.b16 %v2879, %v2871
    %v3304 = vpack.c.b16 %v2888, %v2880
    %v3305 = vpack.c.b16 %v2889, %v2881
    %v3306 = vpack.c.b16 %v2890, %v2882
    %v3307 = vpack.c.b16 %v2891, %v2883
    %v3308 = vpack.c.b16 %v2892, %v2884
    %v3309 = vpack.c.b16 %v2893, %v2885
    %v3310 = vpack.c.b16 %v2894, %v2886
    %v3311 = vpack.c.b16 %v2895, %v2887
    %v3312 = vpack.c.b16 %v2904, %v2896
    %v3313 = vpack.c.b16 %v2905, %v2897
    %v3314 = vpack.c.b16 %v2906, %v2898
    %v3315 = vpack.c.b16 %v2907, %v2899
    %v3316 = vpack.c.b16 %v2908, %v2900
    %v3317 = vpack.c.b16 %v2909, %v2901
    %v3318 = vpack.c.b16 %v2910, %v2902
    %v3319 = vpack.c.b16 %v2911, %v2903
    %v3320 = vpack.c.b16 %v2920, %v2912
    %v3321 = vpack.c.b16 %v2921, %v2913
    %v3322 = vpack.c.b16 %v2922, %v2914
    %v3323 = vpack.c.b16 %v2923, %v2915
    %v3324 = vpack.c.b16 %v2924, %v2916
    %v3325 = vpack.c.b16 %v2925, %v2917
    %v3326 = vpack.c.b16 %v2926, %v2918
    %v3327 = vpack.c.b16 %v2927, %v2919
    %v3328 = vpack.c.b16 %v2936, %v2928
    %v3329 = vpack.c.b16 %v2937, %v2929
    %v3330 = vpack.c.b16 %v2938, %v2930
    %v3331 = vpack.c.b16 %v2939, %v2931
    %v3332 = vpack.c.b16 %v2940, %v2932
    %v3333 = vpack.c.b16 %v2941, %v2933
    %v3334 = vpack.c.b16 %v2942, %v2934
    %v3335 = vpack.c.b16 %v2943, %v2935
    %v3336 = vpack.c.b16 %v2952, %v2944
    %v3337 = vpack.c.b16 %v2953, %v2945
    %v3338 = vpack.c.b16 %v2954, %v2946
    %v3339 = vpack.c.b16 %v2955, %v2947
    %v3340 = vpack.c.b16 %v2956, %v2948
    %v3341 = vpack.c.b16 %v2957, %v2949
    %v3342 = vpack.c.b16 %v2958, %v2950
    %v3343 = vpack.c.b16 %v2959, %v2951
    %v3344 = vpack.c.b16 %v2968, %v2960
    %v3345 = vpack.c.b16 %v2969, %v2961
    %v3346 = vpack.c.b16 %v2970, %v2962
    %v3347 = vpack.c.b16 %v2971, %v2963
    %v3348 = vpack.c.b16 %v2972, %v2964
    %v3349 = vpack.c.b16 %v2973, %v2965
    %v3350 = vpack.c.b16 %v2974, %v2966
    %v3351 = vpack.c.b16 %v2975, %v2967
    %v3352 = vpack.c.b16 %v2984, %v2976
    %v3353 = vpack.c.b16 %v2985, %v2977
    %v3354 = vpack.c.b16 %v2986, %v2978
    %v3355 = vpack.c.b16 %v2987, %v2979
    %v3356 = vpack.c.b16 %v2988, %v2980
    %v3357 = vpack.c.b16 %v2989, %v2981
    %v3358 = vpack.c.b16 %v2990, %v2982
    %v3359 = vpack.c.b16 %v2991, %v2983
    %v3360 = vpack.c.b16 %v3000, %v2992
    %v3361 = vpack.c.b16 %v3001, %v2993
    %v3362 = vpack.c.b16 %v3002, %v2994
    %v3363 = vpack.c.b16 %v3003, %v2995
    %v3364 = vpack.c.b16 %v3004, %v2996
    %v3365 = vpack.c.b16 %v3005, %v2997
    %v3366 = vpack.c.b16 %v3006, %v2998
    %v3367 = vpack.c.b16 %v3007, %v2999
    %v3368 = vpack.c.b16 %v3016, %v3008
    %v3369 = vpack.c.b16 %v3017, %v3009
    %v3370 = vpack.c.b16 %v3018, %v3010
    %v3371 = vpack.c.b16 %v3019, %v3011
    %v3372 = vpack.c.b16 %v3020, %v3012
    %v3373 = vpack.c.b16 %v3021, %v3013
    %v3374 = vpack.c.b16 %v3022, %v3014
    %v3375 = vpack.c.b16 %v3023, %v3015
    %v3376 = vpack.c.b16 %v3032, %v3024
    %v3377 = vpack.c.b16 %v3033, %v3025
    %v3378 = vpack.c.b16 %v3034, %v3026
    %v3379 = vpack.c.b16 %v3035, %v3027
    %v3380 = vpack.c.b16 %v3036, %v3028
    %v3381 = vpack.c.b16 %v3037, %v3029
    %v3382 = vpack.c.b16 %v3038, %v3030
    %v3383 = vpack.c.b16 %v3039, %v3031
    %v3384 = vpack.c.b16 %v3048, %v3040
    %v3385 = vpack.c.b16 %v3049, %v3041
    %v3386 = vpack.c.b16 %v3050, %v3042
    %v3387 = vpack.c.b16 %v3051, %v3043
    %v3388 = vpack.c.b16 %v3052, %v3044
    %v3389 = vpack.c.b16 %v3053, %v3045
    %v3390 = vpack.c.b16 %v3054, %v3046
    %v3391 = vpack.c.b16 %v3055, %v3047
    %v3392 = vpack.c.b16 %v3064, %v3056
    %v3393 = vpack.c.b16 %v3065, %v3057
    %v3394 = vpack.c.b16 %v3066, %v3058
    %v3395 = vpack.c.b16 %v3067, %v3059
    %v3396 = vpack.c.b16 %v3068, %v3060
    %v3397 = vpack.c.b16 %v3069, %v3061
    %v3398 = vpack.c.b16 %v3070, %v3062
    %v3399 = vpack.c.b16 %v3071, %v3063
    %v3400 = vpack.c.b16 %v3080, %v3072
    %v3401 = vpack.c.b16 %v3081, %v3073
    %v3402 = vpack.c.b16 %v3082, %v3074
    %v3403 = vpack.c.b16 %v3083, %v3075
    %v3404 = vpack.c.b16 %v3084, %v3076
    %v3405 = vpack.c.b16 %v3085, %v3077
    %v3406 = vpack.c.b16 %v3086, %v3078
    %v3407 = vpack.c.b16 %v3087, %v3079
    %v3408 = vpack.c.b16 %v3096, %v3088
    %v3409 = vpack.c.b16 %v3097, %v3089
    %v3410 = vpack.c.b16 %v3098, %v3090
    %v3411 = vpack.c.b16 %v3099, %v3091
    %v3412 = vpack.c.b16 %v3100, %v3092
    %v3413 = vpack.c.b16 %v3101, %v3093
    %v3414 = vpack.c.b16 %v3102, %v3094
    %v3415 = vpack.c.b16 %v3103, %v3095
    %v3416 = vpack.c.b16 %v3112, %v3104
    %v3417 = vpack.c.b16 %v3113, %v3105
    %v3418 = vpack.c.b16 %v3114, %v3106
    %v3419 = vpack.c.b16 %v3115, %v3107
    %v3420 = vpack.c.b16 %v3116, %v3108
    %v3421 = vpack.c.b16 %v3117, %v3109
    %v3422 = vpack.c.b16 %v3118, %v3110
    %v3423 = vpack.c.b16 %v3119, %v3111
    %v3424 = vpack.c.b16 %v3128, %v3120
    %v3425 = vpack.c.b16 %v3129, %v3121
    %v3426 = vpack.c.b16 %v3130, %v3122
    %v3427 = vpack.c.b16 %v3131, %v3123
    %v3428 = vpack.c.b16 %v3132, %v3124
    %v3429 = vpack.c.b16 %v3133, %v3125
    %v3430 = vpack.c.b16 %v3134, %v3126
    %v3431 = vpack.c.b16 %v3135, %v3127
    %v3432 = vpack.c.b16 %v3144, %v3136
    %v3433 = vpack.c.b16 %v3145, %v3137
    %v3434 = vpack.c.b16 %v3146, %v3138
    %v3435 = vpack.c.b16 %v3147, %v3139
    %v3436 = vpack.c.b16 %v3148, %v3140
    %v3437 = vpack.c.b16 %v3149, %v3141
    %v3438 = vpack.c.b16 %v3150, %v3142
    %v3439 = vpack.c.b16 %v3151, %v3143
    %v3440 = vpack.c.b16 %v3160, %v3152
    %v3441 = vpack.c.b16 %v3161, %v3153
    %v3442 = vpack.c.b16 %v3162, %v3154
    %v3443 = vpack.c.b16 %v3163, %v3155
    %v3444 = vpack.c.b16 %v3164, %v3156
    %v3445 = vpack.c.b16 %v3165, %v3157
    %v3446 = vpack.c.b16 %v3166, %v3158
    %v3447 = vpack.c.b16 %v3167, %v3159
    %v3448 = vpack.c.b16 %v3176, %v3168
    %v3449 = vpack.c.b16 %v3177, %v3169
    %v3450 = vpack.c.b16 %v3178, %v3170
    %v3451 = vpack.c.b16 %v3179, %v3171
    %v3452 = vpack.c.b16 %v3180, %v3172
    %v3453 = vpack.c.b16 %v3181, %v3173
    %v3454 = vpack.c.b16 %v3182, %v3174
    %v3455 = vpack.c.b16 %v3183, %v3175
    %v3456 = vpack.c.b16 %v3192, %v3184
    %v3457 = vpack.c.b16 %v3193, %v3185
    %v3458 = vpack.c.b16 %v3194, %v3186
    %v3459 = vpack.c.b16 %v3195, %v3187
    %v3460 = vpack.c.b16 %v3196, %v3188
    %v3461 = vpack.c.b16 %v3197, %v3189
    %v3462 = vpack.c.b16 %v3198, %v3190
    %v3463 = vpack.c.b16 %v3199, %v3191
    %v3464 = vpack.c.b16 %v3208, %v3200
    %v3465 = vpack.c.b16 %v3209, %v3201
    %v3466 = vpack.c.b16 %v3210, %v3202
    %v3467 = vpack.c.b16 %v3211, %v3203
    %v3468 = vpack.c.b16 %v3212, %v3204
    %v3469 = vpack.c.b16 %v3213, %v3205
    %v3470 = vpack.c.b16 %v3214, %v3206
    %v3471 = vpack.c.b16 %v3215, %v3207
    %3728 = vmatpush.bf16.msra.mxu0 %v3272
    %3729 = vmatpush.bf16.msra.mxu0 %v3264
    %3730 = vmatpush.bf16.msra.mxu0 %v3256
    %3731 = vmatpush.bf16.msra.mxu0 %v3248
    %3732 = vmatpush.bf16.msra.mxu0 %v3240
    %3733 = vmatpush.bf16.msra.mxu0 %v3232
    %3734 = vmatpush.bf16.msra.mxu0 %v3224
    %3735 = vmatpush.bf16.msra.mxu0 %v3216
    %3736 = vmatmul.bf16.gmra.mxu0 %v2188
    %v3737 = vpop.f32.mrf.mxu0
    %v3738 = vadd.f32 0.0, %v3737
    %v3739 = vpop.f32.mrf.mxu0
    %3740 = vdwg.mxu0
    %3741 = vmatpush.bf16.msra.mxu0 %v3336
    %3742 = vmatpush.bf16.msra.mxu0 %v3328
    %3743 = vmatpush.bf16.msra.mxu0 %v3320
    %3744 = vmatpush.bf16.msra.mxu0 %v3312
    %3745 = vmatpush.bf16.msra.mxu0 %v3304
    %3746 = vmatpush.bf16.msra.mxu0 %v3296
    %3747 = vmatpush.bf16.msra.mxu0 %v3288
    %3748 = vmatpush.bf16.msra.mxu0 %v3280
    %3749 = vmatmul.bf16.gmra.mxu0 %v2189
    %v3750 = vpop.f32.mrf.mxu0
    %v3751 = vadd.f32 %v3738, %v3750
    %v3752 = vpop.f32.mrf.mxu0
    %3753 = vdwg.mxu0
    %3754 = vmatpush.bf16.msra.mxu0 %v3400
    %3755 = vmatpush.bf16.msra.mxu0 %v3392
    %3756 = vmatpush.bf16.msra.mxu0 %v3384
    %3757 = vmatpush.bf16.msra.mxu0 %v3376
    %3758 = vmatpush.bf16.msra.mxu0 %v3368
    %3759 = vmatpush.bf16.msra.mxu0 %v3360
    %3760 = vmatpush.bf16.msra.mxu0 %v3352
    %3761 = vmatpush.bf16.msra.mxu0 %v3344
    %3762 = vmatmul.bf16.gmra.mxu0 %v2190
    %v3763 = vpop.f32.mrf.mxu0
    %v3764 = vadd.f32 %v3751, %v3763
    %v3765 = vpop.f32.mrf.mxu0
    %3766 = vdwg.mxu0
    %3767 = vmatpush.bf16.msra.mxu0 %v3464
    %3768 = vmatpush.bf16.msra.mxu0 %v3456
    %3769 = vmatpush.bf16.msra.mxu0 %v3448
    %3770 = vmatpush.bf16.msra.mxu0 %v3440
    %3771 = vmatpush.bf16.msra.mxu0 %v3432
    %3772 = vmatpush.bf16.msra.mxu0 %v3424
    %3773 = vmatpush.bf16.msra.mxu0 %v3416
    %3774 = vmatpush.bf16.msra.mxu0 %v3408
    %3775 = vmatmul.bf16.gmra.mxu0 %v2191
    %v3776 = vpop.f32.mrf.mxu0
    %v3777 = vadd.f32 %v3764, %v3776
    %v3778 = vpop.f32.mrf.mxu0
    %3779 = vdwg.mxu0
    %3780 = vmatpush.bf16.msra.mxu0 %v3273
    %3781 = vmatpush.bf16.msra.mxu0 %v3265
    %3782 = vmatpush.bf16.msra.mxu0 %v3257
    %3783 = vmatpush.bf16.msra.mxu0 %v3249
    %3784 = vmatpush.bf16.msra.mxu0 %v3241
    %3785 = vmatpush.bf16.msra.mxu0 %v3233
    %3786 = vmatpush.bf16.msra.mxu0 %v3225
    %3787 = vmatpush.bf16.msra.mxu0 %v3217
    %3788 = vmatmul.bf16.gmra.mxu0 %v2188
    %v3789 = vpop.f32.mrf.mxu0
    %v3790 = vadd.f32 0.0, %v3789
    %v3791 = vpop.f32.mrf.mxu0
    %3792 = vdwg.mxu0
    %3793 = vmatpush.bf16.msra.mxu0 %v3337
    %3794 = vmatpush.bf16.msra.mxu0 %v3329
    %3795 = vmatpush.bf16.msra.mxu0 %v3321
    %3796 = vmatpush.bf16.msra.mxu0 %v3313
    %3797 = vmatpush.bf16.msra.mxu0 %v3305
    %3798 = vmatpush.bf16.msra.mxu0 %v3297
    %3799 = vmatpush.bf16.msra.mxu0 %v3289
    %3800 = vmatpush.bf16.msra.mxu0 %v3281
    %3801 = vmatmul.bf16.gmra.mxu0 %v2189
    %v3802 = vpop.f32.mrf.mxu0
    %v3803 = vadd.f32 %v3790, %v3802
    %v3804 = vpop.f32.mrf.mxu0
    %3805 = vdwg.mxu0
    %3806 = vmatpush.bf16.msra.mxu0 %v3401
    %3807 = vmatpush.bf16.msra.mxu0 %v3393
    %3808 = vmatpush.bf16.msra.mxu0 %v3385
    %3809 = vmatpush.bf16.msra.mxu0 %v3377
    %3810 = vmatpush.bf16.msra.mxu0 %v3369
    %3811 = vmatpush.bf16.msra.mxu0 %v3361
    %3812 = vmatpush.bf16.msra.mxu0 %v3353
    %3813 = vmatpush.bf16.msra.mxu0 %v3345
    %3814 = vmatmul.bf16.gmra.mxu0 %v2190
    %v3815 = vpop.f32.mrf.mxu0
    %v3816 = vadd.f32 %v3803, %v3815
    %v3817 = vpop.f32.mrf.mxu0
    %3818 = vdwg.mxu0
    %3819 = vmatpush.bf16.msra.mxu0 %v3465
    %3820 = vmatpush.bf16.msra.mxu0 %v3457
    %3821 = vmatpush.bf16.msra.mxu0 %v3449
    %3822 = vmatpush.bf16.msra.mxu0 %v3441
    %3823 = vmatpush.bf16.msra.mxu0 %v3433
    %3824 = vmatpush.bf16.msra.mxu0 %v3425
    %3825 = vmatpush.bf16.msra.mxu0 %v3417
    %3826 = vmatpush.bf16.msra.mxu0 %v3409
    %3827 = vmatmul.bf16.gmra.mxu0 %v2191
    %v3828 = vpop.f32.mrf.mxu0
    %v3829 = vadd.f32 %v3816, %v3828
    %v3830 = vpop.f32.mrf.mxu0
    %3831 = vdwg.mxu0
    %3832 = vmatpush.bf16.msra.mxu0 %v3274
    %3833 = vmatpush.bf16.msra.mxu0 %v3266
    %3834 = vmatpush.bf16.msra.mxu0 %v3258
    %3835 = vmatpush.bf16.msra.mxu0 %v3250
    %3836 = vmatpush.bf16.msra.mxu0 %v3242
    %3837 = vmatpush.bf16.msra.mxu0 %v3234
    %3838 = vmatpush.bf16.msra.mxu0 %v3226
    %3839 = vmatpush.bf16.msra.mxu0 %v3218
    %3840 = vmatmul.bf16.gmra.mxu0 %v2188
    %v3841 = vpop.f32.mrf.mxu0
    %v3842 = vadd.f32 0.0, %v3841
    %v3843 = vpop.f32.mrf.mxu0
    %3844 = vdwg.mxu0
    %3845 = vmatpush.bf16.msra.mxu0 %v3338
    %3846 = vmatpush.bf16.msra.mxu0 %v3330
    %3847 = vmatpush.bf16.msra.mxu0 %v3322
    %3848 = vmatpush.bf16.msra.mxu0 %v3314
    %3849 = vmatpush.bf16.msra.mxu0 %v3306
    %3850 = vmatpush.bf16.msra.mxu0 %v3298
    %3851 = vmatpush.bf16.msra.mxu0 %v3290
    %3852 = vmatpush.bf16.msra.mxu0 %v3282
    %3853 = vmatmul.bf16.gmra.mxu0 %v2189
    %v3854 = vpop.f32.mrf.mxu0
    %v3855 = vadd.f32 %v3842, %v3854
    %v3856 = vpop.f32.mrf.mxu0
    %3857 = vdwg.mxu0
    %3858 = vmatpush.bf16.msra.mxu0 %v3402
    %3859 = vmatpush.bf16.msra.mxu0 %v3394
    %3860 = vmatpush.bf16.msra.mxu0 %v3386
    %3861 = vmatpush.bf16.msra.mxu0 %v3378
    %3862 = vmatpush.bf16.msra.mxu0 %v3370
    %3863 = vmatpush.bf16.msra.mxu0 %v3362
    %3864 = vmatpush.bf16.msra.mxu0 %v3354
    %3865 = vmatpush.bf16.msra.mxu0 %v3346
    %3866 = vmatmul.bf16.gmra.mxu0 %v2190
    %v3867 = vpop.f32.mrf.mxu0
    %v3868 = vadd.f32 %v3855, %v3867
    %v3869 = vpop.f32.mrf.mxu0
    %3870 = vdwg.mxu0
    %3871 = vmatpush.bf16.msra.mxu0 %v3466
    %3872 = vmatpush.bf16.msra.mxu0 %v3458
    %3873 = vmatpush.bf16.msra.mxu0 %v3450
    %3874 = vmatpush.bf16.msra.mxu0 %v3442
    %3875 = vmatpush.bf16.msra.mxu0 %v3434
    %3876 = vmatpush.bf16.msra.mxu0 %v3426
    %3877 = vmatpush.bf16.msra.mxu0 %v3418
    %3878 = vmatpush.bf16.msra.mxu0 %v3410
    %3879 = vmatmul.bf16.gmra.mxu0 %v2191
    %v3880 = vpop.f32.mrf.mxu0
    %v3881 = vadd.f32 %v3868, %v3880
    %v3882 = vpop.f32.mrf.mxu0
    %3883 = vdwg.mxu0
    %3884 = vmatpush.bf16.msra.mxu0 %v3275
    %3885 = vmatpush.bf16.msra.mxu0 %v3267
    %3886 = vmatpush.bf16.msra.mxu0 %v3259
    %3887 = vmatpush.bf16.msra.mxu0 %v3251
    %3888 = vmatpush.bf16.msra.mxu0 %v3243
    %3889 = vmatpush.bf16.msra.mxu0 %v3235
    %3890 = vmatpush.bf16.msra.mxu0 %v3227
    %3891 = vmatpush.bf16.msra.mxu0 %v3219
    %3892 = vmatmul.bf16.gmra.mxu0 %v2188
    %v3893 = vpop.f32.mrf.mxu0
    %v3894 = vadd.f32 0.0, %v3893
    %v3895 = vpop.f32.mrf.mxu0
    %3896 = vdwg.mxu0
    %3897 = vmatpush.bf16.msra.mxu0 %v3339
    %3898 = vmatpush.bf16.msra.mxu0 %v3331
    %3899 = vmatpush.bf16.msra.mxu0 %v3323
    %3900 = vmatpush.bf16.msra.mxu0 %v3315
    %3901 = vmatpush.bf16.msra.mxu0 %v3307
    %3902 = vmatpush.bf16.msra.mxu0 %v3299
    %3903 = vmatpush.bf16.msra.mxu0 %v3291
    %3904 = vmatpush.bf16.msra.mxu0 %v3283
    %3905 = vmatmul.bf16.gmra.mxu0 %v2189
    %v3906 = vpop.f32.mrf.mxu0
    %v3907 = vadd.f32 %v3894, %v3906
    %v3908 = vpop.f32.mrf.mxu0
    %3909 = vdwg.mxu0
    %3910 = vmatpush.bf16.msra.mxu0 %v3403
    %3911 = vmatpush.bf16.msra.mxu0 %v3395
    %3912 = vmatpush.bf16.msra.mxu0 %v3387
    %3913 = vmatpush.bf16.msra.mxu0 %v3379
    %3914 = vmatpush.bf16.msra.mxu0 %v3371
    %3915 = vmatpush.bf16.msra.mxu0 %v3363
    %3916 = vmatpush.bf16.msra.mxu0 %v3355
    %3917 = vmatpush.bf16.msra.mxu0 %v3347
    %3918 = vmatmul.bf16.gmra.mxu0 %v2190
    %v3919 = vpop.f32.mrf.mxu0
    %v3920 = vadd.f32 %v3907, %v3919
    %v3921 = vpop.f32.mrf.mxu0
    %3922 = vdwg.mxu0
    %3923 = vmatpush.bf16.msra.mxu0 %v3467
    %3924 = vmatpush.bf16.msra.mxu0 %v3459
    %3925 = vmatpush.bf16.msra.mxu0 %v3451
    %3926 = vmatpush.bf16.msra.mxu0 %v3443
    %3927 = vmatpush.bf16.msra.mxu0 %v3435
    %3928 = vmatpush.bf16.msra.mxu0 %v3427
    %3929 = vmatpush.bf16.msra.mxu0 %v3419
    %3930 = vmatpush.bf16.msra.mxu0 %v3411
    %3931 = vmatmul.bf16.gmra.mxu0 %v2191
    %v3932 = vpop.f32.mrf.mxu0
    %v3933 = vadd.f32 %v3920, %v3932
    %v3934 = vpop.f32.mrf.mxu0
    %3935 = vdwg.mxu0
    %3936 = vmatpush.bf16.msra.mxu0 %v3276
    %3937 = vmatpush.bf16.msra.mxu0 %v3268
    %3938 = vmatpush.bf16.msra.mxu0 %v3260
    %3939 = vmatpush.bf16.msra.mxu0 %v3252
    %3940 = vmatpush.bf16.msra.mxu0 %v3244
    %3941 = vmatpush.bf16.msra.mxu0 %v3236
    %3942 = vmatpush.bf16.msra.mxu0 %v3228
    %3943 = vmatpush.bf16.msra.mxu0 %v3220
    %3944 = vmatmul.bf16.gmra.mxu0 %v2188
    %v3945 = vpop.f32.mrf.mxu0
    %v3946 = vadd.f32 0.0, %v3945
    %v3947 = vpop.f32.mrf.mxu0
    %3948 = vdwg.mxu0
    %3949 = vmatpush.bf16.msra.mxu0 %v3340
    %3950 = vmatpush.bf16.msra.mxu0 %v3332
    %3951 = vmatpush.bf16.msra.mxu0 %v3324
    %3952 = vmatpush.bf16.msra.mxu0 %v3316
    %3953 = vmatpush.bf16.msra.mxu0 %v3308
    %3954 = vmatpush.bf16.msra.mxu0 %v3300
    %3955 = vmatpush.bf16.msra.mxu0 %v3292
    %3956 = vmatpush.bf16.msra.mxu0 %v3284
    %3957 = vmatmul.bf16.gmra.mxu0 %v2189
    %v3958 = vpop.f32.mrf.mxu0
    %v3959 = vadd.f32 %v3946, %v3958
    %v3960 = vpop.f32.mrf.mxu0
    %3961 = vdwg.mxu0
    %3962 = vmatpush.bf16.msra.mxu0 %v3404
    %3963 = vmatpush.bf16.msra.mxu0 %v3396
    %3964 = vmatpush.bf16.msra.mxu0 %v3388
    %3965 = vmatpush.bf16.msra.mxu0 %v3380
    %3966 = vmatpush.bf16.msra.mxu0 %v3372
    %3967 = vmatpush.bf16.msra.mxu0 %v3364
    %3968 = vmatpush.bf16.msra.mxu0 %v3356
    %3969 = vmatpush.bf16.msra.mxu0 %v3348
    %3970 = vmatmul.bf16.gmra.mxu0 %v2190
    %v3971 = vpop.f32.mrf.mxu0
    %v3972 = vadd.f32 %v3959, %v3971
    %v3973 = vpop.f32.mrf.mxu0
    %3974 = vdwg.mxu0
    %3975 = vmatpush.bf16.msra.mxu0 %v3468
    %3976 = vmatpush.bf16.msra.mxu0 %v3460
    %3977 = vmatpush.bf16.msra.mxu0 %v3452
    %3978 = vmatpush.bf16.msra.mxu0 %v3444
    %3979 = vmatpush.bf16.msra.mxu0 %v3436
    %3980 = vmatpush.bf16.msra.mxu0 %v3428
    %3981 = vmatpush.bf16.msra.mxu0 %v3420
    %3982 = vmatpush.bf16.msra.mxu0 %v3412
    %3983 = vmatmul.bf16.gmra.mxu0 %v2191
    %v3984 = vpop.f32.mrf.mxu0
    %v3985 = vadd.f32 %v3972, %v3984
    %v3986 = vpop.f32.mrf.mxu0
    %3987 = vdwg.mxu0
    %3988 = vmatpush.bf16.msra.mxu0 %v3277
    %3989 = vmatpush.bf16.msra.mxu0 %v3269
    %3990 = vmatpush.bf16.msra.mxu0 %v3261
    %3991 = vmatpush.bf16.msra.mxu0 %v3253
    %3992 = vmatpush.bf16.msra.mxu0 %v3245
    %3993 = vmatpush.bf16.msra.mxu0 %v3237
    %3994 = vmatpush.bf16.msra.mxu0 %v3229
    %3995 = vmatpush.bf16.msra.mxu0 %v3221
    %3996 = vmatmul.bf16.gmra.mxu0 %v2188
    %v3997 = vpop.f32.mrf.mxu0
    %v3998 = vadd.f32 0.0, %v3997
    %v3999 = vpop.f32.mrf.mxu0
    %4000 = vdwg.mxu0
    %4001 = vmatpush.bf16.msra.mxu0 %v3341
    %4002 = vmatpush.bf16.msra.mxu0 %v3333
    %4003 = vmatpush.bf16.msra.mxu0 %v3325
    %4004 = vmatpush.bf16.msra.mxu0 %v3317
    %4005 = vmatpush.bf16.msra.mxu0 %v3309
    %4006 = vmatpush.bf16.msra.mxu0 %v3301
    %4007 = vmatpush.bf16.msra.mxu0 %v3293
    %4008 = vmatpush.bf16.msra.mxu0 %v3285
    %4009 = vmatmul.bf16.gmra.mxu0 %v2189
    %v4010 = vpop.f32.mrf.mxu0
    %v4011 = vadd.f32 %v3998, %v4010
    %v4012 = vpop.f32.mrf.mxu0
    %4013 = vdwg.mxu0
    %4014 = vmatpush.bf16.msra.mxu0 %v3405
    %4015 = vmatpush.bf16.msra.mxu0 %v3397
    %4016 = vmatpush.bf16.msra.mxu0 %v3389
    %4017 = vmatpush.bf16.msra.mxu0 %v3381
    %4018 = vmatpush.bf16.msra.mxu0 %v3373
    %4019 = vmatpush.bf16.msra.mxu0 %v3365
    %4020 = vmatpush.bf16.msra.mxu0 %v3357
    %4021 = vmatpush.bf16.msra.mxu0 %v3349
    %4022 = vmatmul.bf16.gmra.mxu0 %v2190
    %v4023 = vpop.f32.mrf.mxu0
    %v4024 = vadd.f32 %v4011, %v4023
    %v4025 = vpop.f32.mrf.mxu0
    %4026 = vdwg.mxu0
    %4027 = vmatpush.bf16.msra.mxu0 %v3469
    %4028 = vmatpush.bf16.msra.mxu0 %v3461
    %4029 = vmatpush.bf16.msra.mxu0 %v3453
    %4030 = vmatpush.bf16.msra.mxu0 %v3445
    %4031 = vmatpush.bf16.msra.mxu0 %v3437
    %4032 = vmatpush.bf16.msra.mxu0 %v3429
    %4033 = vmatpush.bf16.msra.mxu0 %v3421
    %4034 = vmatpush.bf16.msra.mxu0 %v3413
    %4035 = vmatmul.bf16.gmra.mxu0 %v2191
    %v4036 = vpop.f32.mrf.mxu0
    %v4037 = vadd.f32 %v4024, %v4036
    %v4038 = vpop.f32.mrf.mxu0
    %4039 = vdwg.mxu0
    %4040 = vmatpush.bf16.msra.mxu0 %v3278
    %4041 = vmatpush.bf16.msra.mxu0 %v3270
    %4042 = vmatpush.bf16.msra.mxu0 %v3262
    %4043 = vmatpush.bf16.msra.mxu0 %v3254
    %4044 = vmatpush.bf16.msra.mxu0 %v3246
    %4045 = vmatpush.bf16.msra.mxu0 %v3238
    %4046 = vmatpush.bf16.msra.mxu0 %v3230
    %4047 = vmatpush.bf16.msra.mxu0 %v3222
    %4048 = vmatmul.bf16.gmra.mxu0 %v2188
    %v4049 = vpop.f32.mrf.mxu0
    %v4050 = vadd.f32 0.0, %v4049
    %v4051 = vpop.f32.mrf.mxu0
    %4052 = vdwg.mxu0
    %4053 = vmatpush.bf16.msra.mxu0 %v3342
    %4054 = vmatpush.bf16.msra.mxu0 %v3334
    %4055 = vmatpush.bf16.msra.mxu0 %v3326
    %4056 = vmatpush.bf16.msra.mxu0 %v3318
    %4057 = vmatpush.bf16.msra.mxu0 %v3310
    %4058 = vmatpush.bf16.msra.mxu0 %v3302
    %4059 = vmatpush.bf16.msra.mxu0 %v3294
    %4060 = vmatpush.bf16.msra.mxu0 %v3286
    %4061 = vmatmul.bf16.gmra.mxu0 %v2189
    %v4062 = vpop.f32.mrf.mxu0
    %v4063 = vadd.f32 %v4050, %v4062
    %v4064 = vpop.f32.mrf.mxu0
    %4065 = vdwg.mxu0
    %4066 = vmatpush.bf16.msra.mxu0 %v3406
    %4067 = vmatpush.bf16.msra.mxu0 %v3398
    %4068 = vmatpush.bf16.msra.mxu0 %v3390
    %4069 = vmatpush.bf16.msra.mxu0 %v3382
    %4070 = vmatpush.bf16.msra.mxu0 %v3374
    %4071 = vmatpush.bf16.msra.mxu0 %v3366
    %4072 = vmatpush.bf16.msra.mxu0 %v3358
    %4073 = vmatpush.bf16.msra.mxu0 %v3350
    %4074 = vmatmul.bf16.gmra.mxu0 %v2190
    %v4075 = vpop.f32.mrf.mxu0
    %v4076 = vadd.f32 %v4063, %v4075
    %v4077 = vpop.f32.mrf.mxu0
    %4078 = vdwg.mxu0
    %4079 = vmatpush.bf16.msra.mxu0 %v3470
    %4080 = vmatpush.bf16.msra.mxu0 %v3462
    %4081 = vmatpush.bf16.msra.mxu0 %v3454
    %4082 = vmatpush.bf16.msra.mxu0 %v3446
    %4083 = vmatpush.bf16.msra.mxu0 %v3438
    %4084 = vmatpush.bf16.msra.mxu0 %v3430
    %4085 = vmatpush.bf16.msra.mxu0 %v3422
    %4086 = vmatpush.bf16.msra.mxu0 %v3414
    %4087 = vmatmul.bf16.gmra.mxu0 %v2191
    %v4088 = vpop.f32.mrf.mxu0
    %v4089 = vadd.f32 %v4076, %v4088
    %v4090 = vpop.f32.mrf.mxu0
    %4091 = vdwg.mxu0
    %4092 = vmatpush.bf16.msra.mxu0 %v3279
    %4093 = vmatpush.bf16.msra.mxu0 %v3271
    %4094 = vmatpush.bf16.msra.mxu0 %v3263
    %4095 = vmatpush.bf16.msra.mxu0 %v3255
    %4096 = vmatpush.bf16.msra.mxu0 %v3247
    %4097 = vmatpush.bf16.msra.mxu0 %v3239
    %4098 = vmatpush.bf16.msra.mxu0 %v3231
    %4099 = vmatpush.bf16.msra.mxu0 %v3223
    %4100 = vmatmul.bf16.gmra.mxu0 %v2188
    %v4101 = vpop.f32.mrf.mxu0
    %v4102 = vadd.f32 0.0, %v4101
    %v4103 = vpop.f32.mrf.mxu0
    %4104 = vdwg.mxu0
    %4105 = vmatpush.bf16.msra.mxu0 %v3343
    %4106 = vmatpush.bf16.msra.mxu0 %v3335
    %4107 = vmatpush.bf16.msra.mxu0 %v3327
    %4108 = vmatpush.bf16.msra.mxu0 %v3319
    %4109 = vmatpush.bf16.msra.mxu0 %v3311
    %4110 = vmatpush.bf16.msra.mxu0 %v3303
    %4111 = vmatpush.bf16.msra.mxu0 %v3295
    %4112 = vmatpush.bf16.msra.mxu0 %v3287
    %4113 = vmatmul.bf16.gmra.mxu0 %v2189
    %v4114 = vpop.f32.mrf.mxu0
    %v4115 = vadd.f32 %v4102, %v4114
    %v4116 = vpop.f32.mrf.mxu0
    %4117 = vdwg.mxu0
    %4118 = vmatpush.bf16.msra.mxu0 %v3407
    %4119 = vmatpush.bf16.msra.mxu0 %v3399
    %4120 = vmatpush.bf16.msra.mxu0 %v3391
    %4121 = vmatpush.bf16.msra.mxu0 %v3383
    %4122 = vmatpush.bf16.msra.mxu0 %v3375
    %4123 = vmatpush.bf16.msra.mxu0 %v3367
    %4124 = vmatpush.bf16.msra.mxu0 %v3359
    %4125 = vmatpush.bf16.msra.mxu0 %v3351
    %4126 = vmatmul.bf16.gmra.mxu0 %v2190
    %v4127 = vpop.f32.mrf.mxu0
    %v4128 = vadd.f32 %v4115, %v4127
    %v4129 = vpop.f32.mrf.mxu0
    %4130 = vdwg.mxu0
    %4131 = vmatpush.bf16.msra.mxu0 %v3471
    %4132 = vmatpush.bf16.msra.mxu0 %v3463
    %4133 = vmatpush.bf16.msra.mxu0 %v3455
    %4134 = vmatpush.bf16.msra.mxu0 %v3447
    %4135 = vmatpush.bf16.msra.mxu0 %v3439
    %4136 = vmatpush.bf16.msra.mxu0 %v3431
    %4137 = vmatpush.bf16.msra.mxu0 %v3423
    %4138 = vmatpush.bf16.msra.mxu0 %v3415
    %4139 = vmatmul.bf16.gmra.mxu0 %v2191
    %v4140 = vpop.f32.mrf.mxu0
    %v4141 = vadd.f32 %v4128, %v4140
    %v4142 = vpop.f32.mrf.mxu0
    %4143 = vdwg.mxu0
    %v4144 = vld [vmem:[%s5] sm:$0x77]
    %v4145 = vld [vmem:[%s5 + $0x8] sm:$0x77]
    %v4148 = vperm.slane %v4144, 0
    %v4149 = vperm.slane %v4144, 4
    %v4150 = vperm.slane %v4145, 0
    %v4151 = vperm.slane %v4145, 4
    %v4156 = vperm.slane %v4148, 0
    %v4157 = vperm.slane %v4149, 0
    %v4158 = vperm.slane %v4150, 0
    %v4159 = vperm.slane %v4151, 0
    %v4160 = vadd.f32 %v3777, %v4156
    %v4161 = vadd.f32 %v3829, %v4157
    %v4162 = vadd.f32 %v3881, %v4158
    %v4163 = vadd.f32 %v3933, %v4159
    %v4164 = vmax.f32 %v4160, 0.0
    %v4165 = vmax.f32 %v4161, 0.0
    %v4166 = vmax.f32 %v4162, 0.0
    %v4167 = vmax.f32 %v4163, 0.0
    %v4168 = vadd.f32 %v3985, %v4156
    %v4169 = vadd.f32 %v4037, %v4157
    %v4170 = vadd.f32 %v4089, %v4158
    %v4171 = vadd.f32 %v4141, %v4159
    %v4172 = vmax.f32 %v4168, 0.0
    %v4173 = vmax.f32 %v4169, 0.0
    %v4174 = vmax.f32 %v4170, 0.0
    %v4175 = vmax.f32 %v4171, 0.0
    %v4176 = vadd.f32 %v4164, %v4172
    %v4177 = vadd.f32 %v4165, %v4173
    %v4178 = vadd.f32 %v4166, %v4174
    %v4179 = vadd.f32 %v4167, %v4175
    %v4180 = vmul.f32 %v4176, 0.5
    %v4181 = vmul.f32 %v4177, 0.5
    %v4182 = vmul.f32 %v4178, 0.5
    %v4183 = vmul.f32 %v4179, 0.5
    %v4184 = vld [vmem:[#allocation7] sm:$0xff]
    %v4185 = vld [vmem:[#allocation7 + $0x8] sm:$0xff]
    %v4186 = vld [vmem:[#allocation7 + $0x10] sm:$0xff]
    %v4187 = vld [vmem:[#allocation7 + $0x18] sm:$0xff]
    %v4188 = vld [vmem:[#allocation7 + $0x20] sm:$0xff]
    %v4189 = vld [vmem:[#allocation7 + $0x28] sm:$0xff]
    %v4190 = vld [vmem:[#allocation7 + $0x30] sm:$0xff]
    %v4191 = vld [vmem:[#allocation7 + $0x38] sm:$0xff]
    %v4192 = vld [vmem:[#allocation7 + $0x40] sm:$0xff]
    %v4193 = vld [vmem:[#allocation7 + $0x48] sm:$0xff]
    %v4194 = vld [vmem:[#allocation7 + $0x50] sm:$0xff]
    %v4195 = vld [vmem:[#allocation7 + $0x58] sm:$0xff]
    %v4196 = vld [vmem:[#allocation7 + $0x60] sm:$0xff]
    %v4197 = vld [vmem:[#allocation7 + $0x68] sm:$0xff]
    %v4198 = vld [vmem:[#allocation7 + $0x70] sm:$0xff]
    %v4199 = vld [vmem:[#allocation7 + $0x78] sm:$0xff]
    %v4200 = vld [vmem:[#allocation7 + $0x80] sm:$0xff]
    %v4201 = vld [vmem:[#allocation7 + $0x88] sm:$0xff]
    %v4202 = vld [vmem:[#allocation7 + $0x90] sm:$0xff]
    %v4203 = vld [vmem:[#allocation7 + $0x98] sm:$0xff]
    %v4204 = vld [vmem:[#allocation7 + $0xa0] sm:$0xff]
    %v4205 = vld [vmem:[#allocation7 + $0xa8] sm:$0xff]
    %v4206 = vld [vmem:[#allocation7 + $0xb0] sm:$0xff]
    %v4207 = vld [vmem:[#allocation7 + $0xb8] sm:$0xff]
    %v4208 = vld [vmem:[#allocation7 + $0xc0] sm:$0xff]
    %v4209 = vld [vmem:[#allocation7 + $0xc8] sm:$0xff]
    %v4210 = vld [vmem:[#allocation7 + $0xd0] sm:$0xff]
    %v4211 = vld [vmem:[#allocation7 + $0xd8] sm:$0xff]
    %v4212 = vld [vmem:[#allocation7 + $0xe0] sm:$0xff]
    %v4213 = vld [vmem:[#allocation7 + $0xe8] sm:$0xff]
    %v4214 = vld [vmem:[#allocation7 + $0xf0] sm:$0xff]
    %v4215 = vld [vmem:[#allocation7 + $0xf8] sm:$0xff]
    %v4216 = vld [vmem:[#allocation7 + $0x100] sm:$0xff]
    %v4217 = vld [vmem:[#allocation7 + $0x108] sm:$0xff]
    %v4218 = vld [vmem:[#allocation7 + $0x110] sm:$0xff]
    %v4219 = vld [vmem:[#allocation7 + $0x118] sm:$0xff]
    %v4220 = vld [vmem:[#allocation7 + $0x120] sm:$0xff]
    %v4221 = vld [vmem:[#allocation7 + $0x128] sm:$0xff]
    %v4222 = vld [vmem:[#allocation7 + $0x130] sm:$0xff]
    %v4223 = vld [vmem:[#allocation7 + $0x138] sm:$0xff]
    %v4224 = vld [vmem:[#allocation7 + $0x140] sm:$0xff]
    %v4225 = vld [vmem:[#allocation7 + $0x148] sm:$0xff]
    %v4226 = vld [vmem:[#allocation7 + $0x150] sm:$0xff]
    %v4227 = vld [vmem:[#allocation7 + $0x158] sm:$0xff]
    %v4228 = vld [vmem:[#allocation7 + $0x160] sm:$0xff]
    %v4229 = vld [vmem:[#allocation7 + $0x168] sm:$0xff]
    %v4230 = vld [vmem:[#allocation7 + $0x170] sm:$0xff]
    %v4231 = vld [vmem:[#allocation7 + $0x178] sm:$0xff]
    %v4232 = vld [vmem:[#allocation7 + $0x180] sm:$0xff]
    %v4233 = vld [vmem:[#allocation7 + $0x188] sm:$0xff]
    %v4234 = vld [vmem:[#allocation7 + $0x190] sm:$0xff]
    %v4235 = vld [vmem:[#allocation7 + $0x198] sm:$0xff]
    %v4236 = vld [vmem:[#allocation7 + $0x1a0] sm:$0xff]
    %v4237 = vld [vmem:[#allocation7 + $0x1a8] sm:$0xff]
    %v4238 = vld [vmem:[#allocation7 + $0x1b0] sm:$0xff]
    %v4239 = vld [vmem:[#allocation7 + $0x1b8] sm:$0xff]
    %v4240 = vld [vmem:[#allocation7 + $0x1c0] sm:$0xff]
    %v4241 = vld [vmem:[#allocation7 + $0x1c8] sm:$0xff]
    %v4242 = vld [vmem:[#allocation7 + $0x1d0] sm:$0xff]
    %v4243 = vld [vmem:[#allocation7 + $0x1d8] sm:$0xff]
    %v4244 = vld [vmem:[#allocation7 + $0x1e0] sm:$0xff]
    %v4245 = vld [vmem:[#allocation7 + $0x1e8] sm:$0xff]
    %v4246 = vld [vmem:[#allocation7 + $0x1f0] sm:$0xff]
    %v4247 = vld [vmem:[#allocation7 + $0x1f8] sm:$0xff]
    %v4248 = vld [vmem:[#allocation7 + $0x200] sm:$0xff]
    %v4249 = vld [vmem:[#allocation7 + $0x208] sm:$0xff]
    %v4250 = vld [vmem:[#allocation7 + $0x210] sm:$0xff]
    %v4251 = vld [vmem:[#allocation7 + $0x218] sm:$0xff]
    %v4252 = vld [vmem:[#allocation7 + $0x220] sm:$0xff]
    %v4253 = vld [vmem:[#allocation7 + $0x228] sm:$0xff]
    %v4254 = vld [vmem:[#allocation7 + $0x230] sm:$0xff]
    %v4255 = vld [vmem:[#allocation7 + $0x238] sm:$0xff]
    %v4256 = vld [vmem:[#allocation7 + $0x240] sm:$0xff]
    %v4257 = vld [vmem:[#allocation7 + $0x248] sm:$0xff]
    %v4258 = vld [vmem:[#allocation7 + $0x250] sm:$0xff]
    %v4259 = vld [vmem:[#allocation7 + $0x258] sm:$0xff]
    %v4260 = vld [vmem:[#allocation7 + $0x260] sm:$0xff]
    %v4261 = vld [vmem:[#allocation7 + $0x268] sm:$0xff]
    %v4262 = vld [vmem:[#allocation7 + $0x270] sm:$0xff]
    %v4263 = vld [vmem:[#allocation7 + $0x278] sm:$0xff]
    %v4264 = vld [vmem:[#allocation7 + $0x280] sm:$0xff]
    %v4265 = vld [vmem:[#allocation7 + $0x288] sm:$0xff]
    %v4266 = vld [vmem:[#allocation7 + $0x290] sm:$0xff]
    %v4267 = vld [vmem:[#allocation7 + $0x298] sm:$0xff]
    %v4268 = vld [vmem:[#allocation7 + $0x2a0] sm:$0xff]
    %v4269 = vld [vmem:[#allocation7 + $0x2a8] sm:$0xff]
    %v4270 = vld [vmem:[#allocation7 + $0x2b0] sm:$0xff]
    %v4271 = vld [vmem:[#allocation7 + $0x2b8] sm:$0xff]
    %v4272 = vld [vmem:[#allocation7 + $0x2c0] sm:$0xff]
    %v4273 = vld [vmem:[#allocation7 + $0x2c8] sm:$0xff]
    %v4274 = vld [vmem:[#allocation7 + $0x2d0] sm:$0xff]
    %v4275 = vld [vmem:[#allocation7 + $0x2d8] sm:$0xff]
    %v4276 = vld [vmem:[#allocation7 + $0x2e0] sm:$0xff]
    %v4277 = vld [vmem:[#allocation7 + $0x2e8] sm:$0xff]
    %v4278 = vld [vmem:[#allocation7 + $0x2f0] sm:$0xff]
    %v4279 = vld [vmem:[#allocation7 + $0x2f8] sm:$0xff]
    %v4280 = vld [vmem:[#allocation7 + $0x300] sm:$0xff]
    %v4281 = vld [vmem:[#allocation7 + $0x308] sm:$0xff]
    %v4282 = vld [vmem:[#allocation7 + $0x310] sm:$0xff]
    %v4283 = vld [vmem:[#allocation7 + $0x318] sm:$0xff]
    %v4284 = vld [vmem:[#allocation7 + $0x320] sm:$0xff]
    %v4285 = vld [vmem:[#allocation7 + $0x328] sm:$0xff]
    %v4286 = vld [vmem:[#allocation7 + $0x330] sm:$0xff]
    %v4287 = vld [vmem:[#allocation7 + $0x338] sm:$0xff]
    %v4288 = vld [vmem:[#allocation7 + $0x340] sm:$0xff]
    %v4289 = vld [vmem:[#allocation7 + $0x348] sm:$0xff]
    %v4290 = vld [vmem:[#allocation7 + $0x350] sm:$0xff]
    %v4291 = vld [vmem:[#allocation7 + $0x358] sm:$0xff]
    %v4292 = vld [vmem:[#allocation7 + $0x360] sm:$0xff]
    %v4293 = vld [vmem:[#allocation7 + $0x368] sm:$0xff]
    %v4294 = vld [vmem:[#allocation7 + $0x370] sm:$0xff]
    %v4295 = vld [vmem:[#allocation7 + $0x378] sm:$0xff]
    %v4296 = vld [vmem:[#allocation7 + $0x380] sm:$0xff]
    %v4297 = vld [vmem:[#allocation7 + $0x388] sm:$0xff]
    %v4298 = vld [vmem:[#allocation7 + $0x390] sm:$0xff]
    %v4299 = vld [vmem:[#allocation7 + $0x398] sm:$0xff]
    %v4300 = vld [vmem:[#allocation7 + $0x3a0] sm:$0xff]
    %v4301 = vld [vmem:[#allocation7 + $0x3a8] sm:$0xff]
    %v4302 = vld [vmem:[#allocation7 + $0x3b0] sm:$0xff]
    %v4303 = vld [vmem:[#allocation7 + $0x3b8] sm:$0xff]
    %v4304 = vld [vmem:[#allocation7 + $0x3c0] sm:$0xff]
    %v4305 = vld [vmem:[#allocation7 + $0x3c8] sm:$0xff]
    %v4306 = vld [vmem:[#allocation7 + $0x3d0] sm:$0xff]
    %v4307 = vld [vmem:[#allocation7 + $0x3d8] sm:$0xff]
    %v4308 = vld [vmem:[#allocation7 + $0x3e0] sm:$0xff]
    %v4309 = vld [vmem:[#allocation7 + $0x3e8] sm:$0xff]
    %v4310 = vld [vmem:[#allocation7 + $0x3f0] sm:$0xff]
    %v4311 = vld [vmem:[#allocation7 + $0x3f8] sm:$0xff]
    %v4312 = vld [vmem:[#allocation7 + $0x400] sm:$0xff]
    %v4313 = vld [vmem:[#allocation7 + $0x408] sm:$0xff]
    %v4314 = vld [vmem:[#allocation7 + $0x410] sm:$0xff]
    %v4315 = vld [vmem:[#allocation7 + $0x418] sm:$0xff]
    %v4316 = vld [vmem:[#allocation7 + $0x420] sm:$0xff]
    %v4317 = vld [vmem:[#allocation7 + $0x428] sm:$0xff]
    %v4318 = vld [vmem:[#allocation7 + $0x430] sm:$0xff]
    %v4319 = vld [vmem:[#allocation7 + $0x438] sm:$0xff]
    %v4320 = vld [vmem:[#allocation7 + $0x440] sm:$0xff]
    %v4321 = vld [vmem:[#allocation7 + $0x448] sm:$0xff]
    %v4322 = vld [vmem:[#allocation7 + $0x450] sm:$0xff]
    %v4323 = vld [vmem:[#allocation7 + $0x458] sm:$0xff]
    %v4324 = vld [vmem:[#allocation7 + $0x460] sm:$0xff]
    %v4325 = vld [vmem:[#allocation7 + $0x468] sm:$0xff]
    %v4326 = vld [vmem:[#allocation7 + $0x470] sm:$0xff]
    %v4327 = vld [vmem:[#allocation7 + $0x478] sm:$0xff]
    %v4328 = vld [vmem:[#allocation7 + $0x480] sm:$0xff]
    %v4329 = vld [vmem:[#allocation7 + $0x488] sm:$0xff]
    %v4330 = vld [vmem:[#allocation7 + $0x490] sm:$0xff]
    %v4331 = vld [vmem:[#allocation7 + $0x498] sm:$0xff]
    %v4332 = vld [vmem:[#allocation7 + $0x4a0] sm:$0xff]
    %v4333 = vld [vmem:[#allocation7 + $0x4a8] sm:$0xff]
    %v4334 = vld [vmem:[#allocation7 + $0x4b0] sm:$0xff]
    %v4335 = vld [vmem:[#allocation7 + $0x4b8] sm:$0xff]
    %v4336 = vld [vmem:[#allocation7 + $0x4c0] sm:$0xff]
    %v4337 = vld [vmem:[#allocation7 + $0x4c8] sm:$0xff]
    %v4338 = vld [vmem:[#allocation7 + $0x4d0] sm:$0xff]
    %v4339 = vld [vmem:[#allocation7 + $0x4d8] sm:$0xff]
    %v4340 = vld [vmem:[#allocation7 + $0x4e0] sm:$0xff]
    %v4341 = vld [vmem:[#allocation7 + $0x4e8] sm:$0xff]
    %v4342 = vld [vmem:[#allocation7 + $0x4f0] sm:$0xff]
    %v4343 = vld [vmem:[#allocation7 + $0x4f8] sm:$0xff]
    %v4344 = vld [vmem:[#allocation7 + $0x500] sm:$0xff]
    %v4345 = vld [vmem:[#allocation7 + $0x508] sm:$0xff]
    %v4346 = vld [vmem:[#allocation7 + $0x510] sm:$0xff]
    %v4347 = vld [vmem:[#allocation7 + $0x518] sm:$0xff]
    %v4348 = vld [vmem:[#allocation7 + $0x520] sm:$0xff]
    %v4349 = vld [vmem:[#allocation7 + $0x528] sm:$0xff]
    %v4350 = vld [vmem:[#allocation7 + $0x530] sm:$0xff]
    %v4351 = vld [vmem:[#allocation7 + $0x538] sm:$0xff]
    %v4352 = vld [vmem:[#allocation7 + $0x540] sm:$0xff]
    %v4353 = vld [vmem:[#allocation7 + $0x548] sm:$0xff]
    %v4354 = vld [vmem:[#allocation7 + $0x550] sm:$0xff]
    %v4355 = vld [vmem:[#allocation7 + $0x558] sm:$0xff]
    %v4356 = vld [vmem:[#allocation7 + $0x560] sm:$0xff]
    %v4357 = vld [vmem:[#allocation7 + $0x568] sm:$0xff]
    %v4358 = vld [vmem:[#allocation7 + $0x570] sm:$0xff]
    %v4359 = vld [vmem:[#allocation7 + $0x578] sm:$0xff]
    %v4360 = vld [vmem:[#allocation7 + $0x580] sm:$0xff]
    %v4361 = vld [vmem:[#allocation7 + $0x588] sm:$0xff]
    %v4362 = vld [vmem:[#allocation7 + $0x590] sm:$0xff]
    %v4363 = vld [vmem:[#allocation7 + $0x598] sm:$0xff]
    %v4364 = vld [vmem:[#allocation7 + $0x5a0] sm:$0xff]
    %v4365 = vld [vmem:[#allocation7 + $0x5a8] sm:$0xff]
    %v4366 = vld [vmem:[#allocation7 + $0x5b0] sm:$0xff]
    %v4367 = vld [vmem:[#allocation7 + $0x5b8] sm:$0xff]
    %v4368 = vld [vmem:[#allocation7 + $0x5c0] sm:$0xff]
    %v4369 = vld [vmem:[#allocation7 + $0x5c8] sm:$0xff]
    %v4370 = vld [vmem:[#allocation7 + $0x5d0] sm:$0xff]
    %v4371 = vld [vmem:[#allocation7 + $0x5d8] sm:$0xff]
    %v4372 = vld [vmem:[#allocation7 + $0x5e0] sm:$0xff]
    %v4373 = vld [vmem:[#allocation7 + $0x5e8] sm:$0xff]
    %v4374 = vld [vmem:[#allocation7 + $0x5f0] sm:$0xff]
    %v4375 = vld [vmem:[#allocation7 + $0x5f8] sm:$0xff]
    %v4376 = vld [vmem:[#allocation7 + $0x600] sm:$0xff]
    %v4377 = vld [vmem:[#allocation7 + $0x608] sm:$0xff]
    %v4378 = vld [vmem:[#allocation7 + $0x610] sm:$0xff]
    %v4379 = vld [vmem:[#allocation7 + $0x618] sm:$0xff]
    %v4380 = vld [vmem:[#allocation7 + $0x620] sm:$0xff]
    %v4381 = vld [vmem:[#allocation7 + $0x628] sm:$0xff]
    %v4382 = vld [vmem:[#allocation7 + $0x630] sm:$0xff]
    %v4383 = vld [vmem:[#allocation7 + $0x638] sm:$0xff]
    %v4384 = vld [vmem:[#allocation7 + $0x640] sm:$0xff]
    %v4385 = vld [vmem:[#allocation7 + $0x648] sm:$0xff]
    %v4386 = vld [vmem:[#allocation7 + $0x650] sm:$0xff]
    %v4387 = vld [vmem:[#allocation7 + $0x658] sm:$0xff]
    %v4388 = vld [vmem:[#allocation7 + $0x660] sm:$0xff]
    %v4389 = vld [vmem:[#allocation7 + $0x668] sm:$0xff]
    %v4390 = vld [vmem:[#allocation7 + $0x670] sm:$0xff]
    %v4391 = vld [vmem:[#allocation7 + $0x678] sm:$0xff]
    %v4392 = vld [vmem:[#allocation7 + $0x680] sm:$0xff]
    %v4393 = vld [vmem:[#allocation7 + $0x688] sm:$0xff]
    %v4394 = vld [vmem:[#allocation7 + $0x690] sm:$0xff]
    %v4395 = vld [vmem:[#allocation7 + $0x698] sm:$0xff]
    %v4396 = vld [vmem:[#allocation7 + $0x6a0] sm:$0xff]
    %v4397 = vld [vmem:[#allocation7 + $0x6a8] sm:$0xff]
    %v4398 = vld [vmem:[#allocation7 + $0x6b0] sm:$0xff]
    %v4399 = vld [vmem:[#allocation7 + $0x6b8] sm:$0xff]
    %v4400 = vld [vmem:[#allocation7 + $0x6c0] sm:$0xff]
    %v4401 = vld [vmem:[#allocation7 + $0x6c8] sm:$0xff]
    %v4402 = vld [vmem:[#allocation7 + $0x6d0] sm:$0xff]
    %v4403 = vld [vmem:[#allocation7 + $0x6d8] sm:$0xff]
    %v4404 = vld [vmem:[#allocation7 + $0x6e0] sm:$0xff]
    %v4405 = vld [vmem:[#allocation7 + $0x6e8] sm:$0xff]
    %v4406 = vld [vmem:[#allocation7 + $0x6f0] sm:$0xff]
    %v4407 = vld [vmem:[#allocation7 + $0x6f8] sm:$0xff]
    %v4408 = vld [vmem:[#allocation7 + $0x700] sm:$0xff]
    %v4409 = vld [vmem:[#allocation7 + $0x708] sm:$0xff]
    %v4410 = vld [vmem:[#allocation7 + $0x710] sm:$0xff]
    %v4411 = vld [vmem:[#allocation7 + $0x718] sm:$0xff]
    %v4412 = vld [vmem:[#allocation7 + $0x720] sm:$0xff]
    %v4413 = vld [vmem:[#allocation7 + $0x728] sm:$0xff]
    %v4414 = vld [vmem:[#allocation7 + $0x730] sm:$0xff]
    %v4415 = vld [vmem:[#allocation7 + $0x738] sm:$0xff]
    %v4416 = vld [vmem:[#allocation7 + $0x740] sm:$0xff]
    %v4417 = vld [vmem:[#allocation7 + $0x748] sm:$0xff]
    %v4418 = vld [vmem:[#allocation7 + $0x750] sm:$0xff]
    %v4419 = vld [vmem:[#allocation7 + $0x758] sm:$0xff]
    %v4420 = vld [vmem:[#allocation7 + $0x760] sm:$0xff]
    %v4421 = vld [vmem:[#allocation7 + $0x768] sm:$0xff]
    %v4422 = vld [vmem:[#allocation7 + $0x770] sm:$0xff]
    %v4423 = vld [vmem:[#allocation7 + $0x778] sm:$0xff]
    %v4424 = vld [vmem:[#allocation7 + $0x780] sm:$0xff]
    %v4425 = vld [vmem:[#allocation7 + $0x788] sm:$0xff]
    %v4426 = vld [vmem:[#allocation7 + $0x790] sm:$0xff]
    %v4427 = vld [vmem:[#allocation7 + $0x798] sm:$0xff]
    %v4428 = vld [vmem:[#allocation7 + $0x7a0] sm:$0xff]
    %v4429 = vld [vmem:[#allocation7 + $0x7a8] sm:$0xff]
    %v4430 = vld [vmem:[#allocation7 + $0x7b0] sm:$0xff]
    %v4431 = vld [vmem:[#allocation7 + $0x7b8] sm:$0xff]
    %v4432 = vld [vmem:[#allocation7 + $0x7c0] sm:$0xff]
    %v4433 = vld [vmem:[#allocation7 + $0x7c8] sm:$0xff]
    %v4434 = vld [vmem:[#allocation7 + $0x7d0] sm:$0xff]
    %v4435 = vld [vmem:[#allocation7 + $0x7d8] sm:$0xff]
    %v4436 = vld [vmem:[#allocation7 + $0x7e0] sm:$0xff]
    %v4437 = vld [vmem:[#allocation7 + $0x7e8] sm:$0xff]
    %v4438 = vld [vmem:[#allocation7 + $0x7f0] sm:$0xff]
    %v4439 = vld [vmem:[#allocation7 + $0x7f8] sm:$0xff]
    %v4440 = vsel %vm1387, %v4180, 0.0
    %v4441 = vrot.slane %v4440, 4
    %v4442 = vadd.f32 %v4440, %v4441
    %v4443 = vrot.slane %v4442, 2
    %v4444 = vadd.f32 %v4442, %v4443
    %v4445 = vrot.slane %v4444, 1
    %v4446 = vadd.f32 %v4444, %v4445
    %v4447 = vsel %vm1387, %v4181, 0.0
    %v4448 = vrot.slane %v4447, 4
    %v4449 = vadd.f32 %v4447, %v4448
    %v4450 = vrot.slane %v4449, 2
    %v4451 = vadd.f32 %v4449, %v4450
    %v4452 = vrot.slane %v4451, 1
    %v4453 = vadd.f32 %v4451, %v4452
    %v4454 = vsel %vm1387, %v4182, 0.0
    %v4455 = vrot.slane %v4454, 4
    %v4456 = vadd.f32 %v4454, %v4455
    %v4457 = vrot.slane %v4456, 2
    %v4458 = vadd.f32 %v4456, %v4457
    %v4459 = vrot.slane %v4458, 1
    %v4460 = vadd.f32 %v4458, %v4459
    %v4461 = vsel %vm1387, %v4183, 0.0
    %v4462 = vrot.slane %v4461, 4
    %v4463 = vadd.f32 %v4461, %v4462
    %v4464 = vrot.slane %v4463, 2
    %v4465 = vadd.f32 %v4463, %v4464
    %v4466 = vrot.slane %v4465, 1
    %v4467 = vadd.f32 %v4465, %v4466
    %4468 = vmatpush.msra.mxu0 %v4244
    %4469 = vmatpush.msra.mxu0 %v4240
    %4470 = vmatpush.msra.mxu0 %v4236
    %4471 = vmatpush.msra.mxu0 %v4232
    %4472 = vmatpush.msra.mxu0 %v4228
    %4473 = vmatpush.msra.mxu0 %v4224
    %4474 = vmatpush.msra.mxu0 %v4220
    %4475 = vmatpush.msra.mxu0 %v4216
    %4476 = vmatpush.msra.mxu0 %v4212
    %4477 = vmatpush.msra.mxu0 %v4208
    %4478 = vmatpush.msra.mxu0 %v4204
    %4479 = vmatpush.msra.mxu0 %v4200
    %4480 = vmatpush.msra.mxu0 %v4196
    %4481 = vmatpush.msra.mxu0 %v4192
    %4482 = vmatpush.msra.mxu0 %v4188
    %4483 = vmatpush.msra.mxu0 %v4184
    %4484 = vmatmul.f32.gmra.mxu0 %v4446
    %v4485 = vpop.f32.mrf.mxu0
    %v4486 = vadd.f32 0.0, %v4485
    %4487 = vdwg.mxu0
    %4488 = vmatpush.msra.mxu0 %v4308
    %4489 = vmatpush.msra.mxu0 %v4304
    %4490 = vmatpush.msra.mxu0 %v4300
    %4491 = vmatpush.msra.mxu0 %v4296
    %4492 = vmatpush.msra.mxu0 %v4292
    %4493 = vmatpush.msra.mxu0 %v4288
    %4494 = vmatpush.msra.mxu0 %v4284
    %4495 = vmatpush.msra.mxu0 %v4280
    %4496 = vmatpush.msra.mxu0 %v4276
    %4497 = vmatpush.msra.mxu0 %v4272
    %4498 = vmatpush.msra.mxu0 %v4268
    %4499 = vmatpush.msra.mxu0 %v4264
    %4500 = vmatpush.msra.mxu0 %v4260
    %4501 = vmatpush.msra.mxu0 %v4256
    %4502 = vmatpush.msra.mxu0 %v4252
    %4503 = vmatpush.msra.mxu0 %v4248
    %4504 = vmatmul.f32.gmra.mxu0 %v4453
    %v4505 = vpop.f32.mrf.mxu0
    %v4506 = vadd.f32 %v4486, %v4505
    %4507 = vdwg.mxu0
    %4508 = vmatpush.msra.mxu0 %v4372
    %4509 = vmatpush.msra.mxu0 %v4368
    %4510 = vmatpush.msra.mxu0 %v4364
    %4511 = vmatpush.msra.mxu0 %v4360
    %4512 = vmatpush.msra.mxu0 %v4356
    %4513 = vmatpush.msra.mxu0 %v4352
    %4514 = vmatpush.msra.mxu0 %v4348
    %4515 = vmatpush.msra.mxu0 %v4344
    %4516 = vmatpush.msra.mxu0 %v4340
    %4517 = vmatpush.msra.mxu0 %v4336
    %4518 = vmatpush.msra.mxu0 %v4332
    %4519 = vmatpush.msra.mxu0 %v4328
    %4520 = vmatpush.msra.mxu0 %v4324
    %4521 = vmatpush.msra.mxu0 %v4320
    %4522 = vmatpush.msra.mxu0 %v4316
    %4523 = vmatpush.msra.mxu0 %v4312
    %4524 = vmatmul.f32.gmra.mxu0 %v4460
    %v4525 = vpop.f32.mrf.mxu0
    %v4526 = vadd.f32 %v4506, %v4525
    %4527 = vdwg.mxu0
    %4528 = vmatpush.msra.mxu0 %v4436
    %4529 = vmatpush.msra.mxu0 %v4432
    %4530 = vmatpush.msra.mxu0 %v4428
    %4531 = vmatpush.msra.mxu0 %v4424
    %4532 = vmatpush.msra.mxu0 %v4420
    %4533 = vmatpush.msra.mxu0 %v4416
    %4534 = vmatpush.msra.mxu0 %v4412
    %4535 = vmatpush.msra.mxu0 %v4408
    %4536 = vmatpush.msra.mxu0 %v4404
    %4537 = vmatpush.msra.mxu0 %v4400
    %4538 = vmatpush.msra.mxu0 %v4396
    %4539 = vmatpush.msra.mxu0 %v4392
    %4540 = vmatpush.msra.mxu0 %v4388
    %4541 = vmatpush.msra.mxu0 %v4384
    %4542 = vmatpush.msra.mxu0 %v4380
    %4543 = vmatpush.msra.mxu0 %v4376
    %4544 = vmatmul.f32.gmra.mxu0 %v4467
    %v4545 = vpop.f32.mrf.mxu0
    %v4546 = vadd.f32 %v4526, %v4545
    %4547 = vdwg.mxu0
    %4548 = vmatpush.msra.mxu0 %v4245
    %4549 = vmatpush.msra.mxu0 %v4241
    %4550 = vmatpush.msra.mxu0 %v4237
    %4551 = vmatpush.msra.mxu0 %v4233
    %4552 = vmatpush.msra.mxu0 %v4229
    %4553 = vmatpush.msra.mxu0 %v4225
    %4554 = vmatpush.msra.mxu0 %v4221
    %4555 = vmatpush.msra.mxu0 %v4217
    %4556 = vmatpush.msra.mxu0 %v4213
    %4557 = vmatpush.msra.mxu0 %v4209
    %4558 = vmatpush.msra.mxu0 %v4205
    %4559 = vmatpush.msra.mxu0 %v4201
    %4560 = vmatpush.msra.mxu0 %v4197
    %4561 = vmatpush.msra.mxu0 %v4193
    %4562 = vmatpush.msra.mxu0 %v4189
    %4563 = vmatpush.msra.mxu0 %v4185
    %4564 = vmatmul.f32.gmra.mxu0 %v4446
    %v4565 = vpop.f32.mrf.mxu0
    %v4566 = vadd.f32 0.0, %v4565
    %4567 = vdwg.mxu0
    %4568 = vmatpush.msra.mxu0 %v4309
    %4569 = vmatpush.msra.mxu0 %v4305
    %4570 = vmatpush.msra.mxu0 %v4301
    %4571 = vmatpush.msra.mxu0 %v4297
    %4572 = vmatpush.msra.mxu0 %v4293
    %4573 = vmatpush.msra.mxu0 %v4289
    %4574 = vmatpush.msra.mxu0 %v4285
    %4575 = vmatpush.msra.mxu0 %v4281
    %4576 = vmatpush.msra.mxu0 %v4277
    %4577 = vmatpush.msra.mxu0 %v4273
    %4578 = vmatpush.msra.mxu0 %v4269
    %4579 = vmatpush.msra.mxu0 %v4265
    %4580 = vmatpush.msra.mxu0 %v4261
    %4581 = vmatpush.msra.mxu0 %v4257
    %4582 = vmatpush.msra.mxu0 %v4253
    %4583 = vmatpush.msra.mxu0 %v4249
    %4584 = vmatmul.f32.gmra.mxu0 %v4453
    %v4585 = vpop.f32.mrf.mxu0
    %v4586 = vadd.f32 %v4566, %v4585
    %4587 = vdwg.mxu0
    %4588 = vmatpush.msra.mxu0 %v4373
    %4589 = vmatpush.msra.mxu0 %v4369
    %4590 = vmatpush.msra.mxu0 %v4365
    %4591 = vmatpush.msra.mxu0 %v4361
    %4592 = vmatpush.msra.mxu0 %v4357
    %4593 = vmatpush.msra.mxu0 %v4353
    %4594 = vmatpush.msra.mxu0 %v4349
    %4595 = vmatpush.msra.mxu0 %v4345
    %4596 = vmatpush.msra.mxu0 %v4341
    %4597 = vmatpush.msra.mxu0 %v4337
    %4598 = vmatpush.msra.mxu0 %v4333
    %4599 = vmatpush.msra.mxu0 %v4329
    %4600 = vmatpush.msra.mxu0 %v4325
    %4601 = vmatpush.msra.mxu0 %v4321
    %4602 = vmatpush.msra.mxu0 %v4317
    %4603 = vmatpush.msra.mxu0 %v4313
    %4604 = vmatmul.f32.gmra.mxu0 %v4460
    %v4605 = vpop.f32.mrf.mxu0
    %v4606 = vadd.f32 %v4586, %v4605
    %4607 = vdwg.mxu0
    %4608 = vmatpush.msra.mxu0 %v4437
    %4609 = vmatpush.msra.mxu0 %v4433
    %4610 = vmatpush.msra.mxu0 %v4429
    %4611 = vmatpush.msra.mxu0 %v4425
    %4612 = vmatpush.msra.mxu0 %v4421
    %4613 = vmatpush.msra.mxu0 %v4417
    %4614 = vmatpush.msra.mxu0 %v4413
    %4615 = vmatpush.msra.mxu0 %v4409
    %4616 = vmatpush.msra.mxu0 %v4405
    %4617 = vmatpush.msra.mxu0 %v4401
    %4618 = vmatpush.msra.mxu0 %v4397
    %4619 = vmatpush.msra.mxu0 %v4393
    %4620 = vmatpush.msra.mxu0 %v4389
    %4621 = vmatpush.msra.mxu0 %v4385
    %4622 = vmatpush.msra.mxu0 %v4381
    %4623 = vmatpush.msra.mxu0 %v4377
    %4624 = vmatmul.f32.gmra.mxu0 %v4467
    %v4625 = vpop.f32.mrf.mxu0
    %v4626 = vadd.f32 %v4606, %v4625
    %4627 = vdwg.mxu0
    %4628 = vmatpush.msra.mxu0 %v4246
    %4629 = vmatpush.msra.mxu0 %v4242
    %4630 = vmatpush.msra.mxu0 %v4238
    %4631 = vmatpush.msra.mxu0 %v4234
    %4632 = vmatpush.msra.mxu0 %v4230
    %4633 = vmatpush.msra.mxu0 %v4226
    %4634 = vmatpush.msra.mxu0 %v4222
    %4635 = vmatpush.msra.mxu0 %v4218
    %4636 = vmatpush.msra.mxu0 %v4214
    %4637 = vmatpush.msra.mxu0 %v4210
    %4638 = vmatpush.msra.mxu0 %v4206
    %4639 = vmatpush.msra.mxu0 %v4202
    %4640 = vmatpush.msra.mxu0 %v4198
    %4641 = vmatpush.msra.mxu0 %v4194
    %4642 = vmatpush.msra.mxu0 %v4190
    %4643 = vmatpush.msra.mxu0 %v4186
    %4644 = vmatmul.f32.gmra.mxu0 %v4446
    %v4645 = vpop.f32.mrf.mxu0
    %v4646 = vadd.f32 0.0, %v4645
    %4647 = vdwg.mxu0
    %4648 = vmatpush.msra.mxu0 %v4310
    %4649 = vmatpush.msra.mxu0 %v4306
    %4650 = vmatpush.msra.mxu0 %v4302
    %4651 = vmatpush.msra.mxu0 %v4298
    %4652 = vmatpush.msra.mxu0 %v4294
    %4653 = vmatpush.msra.mxu0 %v4290
    %4654 = vmatpush.msra.mxu0 %v4286
    %4655 = vmatpush.msra.mxu0 %v4282
    %4656 = vmatpush.msra.mxu0 %v4278
    %4657 = vmatpush.msra.mxu0 %v4274
    %4658 = vmatpush.msra.mxu0 %v4270
    %4659 = vmatpush.msra.mxu0 %v4266
    %4660 = vmatpush.msra.mxu0 %v4262
    %4661 = vmatpush.msra.mxu0 %v4258
    %4662 = vmatpush.msra.mxu0 %v4254
    %4663 = vmatpush.msra.mxu0 %v4250
    %4664 = vmatmul.f32.gmra.mxu0 %v4453
    %v4665 = vpop.f32.mrf.mxu0
    %v4666 = vadd.f32 %v4646, %v4665
    %4667 = vdwg.mxu0
    %4668 = vmatpush.msra.mxu0 %v4374
    %4669 = vmatpush.msra.mxu0 %v4370
    %4670 = vmatpush.msra.mxu0 %v4366
    %4671 = vmatpush.msra.mxu0 %v4362
    %4672 = vmatpush.msra.mxu0 %v4358
    %4673 = vmatpush.msra.mxu0 %v4354
    %4674 = vmatpush.msra.mxu0 %v4350
    %4675 = vmatpush.msra.mxu0 %v4346
    %4676 = vmatpush.msra.mxu0 %v4342
    %4677 = vmatpush.msra.mxu0 %v4338
    %4678 = vmatpush.msra.mxu0 %v4334
    %4679 = vmatpush.msra.mxu0 %v4330
    %4680 = vmatpush.msra.mxu0 %v4326
    %4681 = vmatpush.msra.mxu0 %v4322
    %4682 = vmatpush.msra.mxu0 %v4318
    %4683 = vmatpush.msra.mxu0 %v4314
    %4684 = vmatmul.f32.gmra.mxu0 %v4460
    %v4685 = vpop.f32.mrf.mxu0
    %v4686 = vadd.f32 %v4666, %v4685
    %4687 = vdwg.mxu0
    %4688 = vmatpush.msra.mxu0 %v4438
    %4689 = vmatpush.msra.mxu0 %v4434
    %4690 = vmatpush.msra.mxu0 %v4430
    %4691 = vmatpush.msra.mxu0 %v4426
    %4692 = vmatpush.msra.mxu0 %v4422
    %4693 = vmatpush.msra.mxu0 %v4418
    %4694 = vmatpush.msra.mxu0 %v4414
    %4695 = vmatpush.msra.mxu0 %v4410
    %4696 = vmatpush.msra.mxu0 %v4406
    %4697 = vmatpush.msra.mxu0 %v4402
    %4698 = vmatpush.msra.mxu0 %v4398
    %4699 = vmatpush.msra.mxu0 %v4394
    %4700 = vmatpush.msra.mxu0 %v4390
    %4701 = vmatpush.msra.mxu0 %v4386
    %4702 = vmatpush.msra.mxu0 %v4382
    %4703 = vmatpush.msra.mxu0 %v4378
    %4704 = vmatmul.f32.gmra.mxu0 %v4467
    %v4705 = vpop.f32.mrf.mxu0
    %v4706 = vadd.f32 %v4686, %v4705
    %4707 = vdwg.mxu0
    %4708 = vmatpush.msra.mxu0 %v4247
    %4709 = vmatpush.msra.mxu0 %v4243
    %4710 = vmatpush.msra.mxu0 %v4239
    %4711 = vmatpush.msra.mxu0 %v4235
    %4712 = vmatpush.msra.mxu0 %v4231
    %4713 = vmatpush.msra.mxu0 %v4227
    %4714 = vmatpush.msra.mxu0 %v4223
    %4715 = vmatpush.msra.mxu0 %v4219
    %4716 = vmatpush.msra.mxu0 %v4215
    %4717 = vmatpush.msra.mxu0 %v4211
    %4718 = vmatpush.msra.mxu0 %v4207
    %4719 = vmatpush.msra.mxu0 %v4203
    %4720 = vmatpush.msra.mxu0 %v4199
    %4721 = vmatpush.msra.mxu0 %v4195
    %4722 = vmatpush.msra.mxu0 %v4191
    %4723 = vmatpush.msra.mxu0 %v4187
    %4724 = vmatmul.f32.gmra.mxu0 %v4446
    %v4725 = vpop.f32.mrf.mxu0
    %v4726 = vadd.f32 0.0, %v4725
    %4727 = vdwg.mxu0
    %4728 = vmatpush.msra.mxu0 %v4311
    %4729 = vmatpush.msra.mxu0 %v4307
    %4730 = vmatpush.msra.mxu0 %v4303
    %4731 = vmatpush.msra.mxu0 %v4299
    %4732 = vmatpush.msra.mxu0 %v4295
    %4733 = vmatpush.msra.mxu0 %v4291
    %4734 = vmatpush.msra.mxu0 %v4287
    %4735 = vmatpush.msra.mxu0 %v4283
    %4736 = vmatpush.msra.mxu0 %v4279
    %4737 = vmatpush.msra.mxu0 %v4275
    %4738 = vmatpush.msra.mxu0 %v4271
    %4739 = vmatpush.msra.mxu0 %v4267
    %4740 = vmatpush.msra.mxu0 %v4263
    %4741 = vmatpush.msra.mxu0 %v4259
    %4742 = vmatpush.msra.mxu0 %v4255
    %4743 = vmatpush.msra.mxu0 %v4251
    %4744 = vmatmul.f32.gmra.mxu0 %v4453
    %v4745 = vpop.f32.mrf.mxu0
    %v4746 = vadd.f32 %v4726, %v4745
    %4747 = vdwg.mxu0
    %4748 = vmatpush.msra.mxu0 %v4375
    %4749 = vmatpush.msra.mxu0 %v4371
    %4750 = vmatpush.msra.mxu0 %v4367
    %4751 = vmatpush.msra.mxu0 %v4363
    %4752 = vmatpush.msra.mxu0 %v4359
    %4753 = vmatpush.msra.mxu0 %v4355
    %4754 = vmatpush.msra.mxu0 %v4351
    %4755 = vmatpush.msra.mxu0 %v4347
    %4756 = vmatpush.msra.mxu0 %v4343
    %4757 = vmatpush.msra.mxu0 %v4339
    %4758 = vmatpush.msra.mxu0 %v4335
    %4759 = vmatpush.msra.mxu0 %v4331
    %4760 = vmatpush.msra.mxu0 %v4327
    %4761 = vmatpush.msra.mxu0 %v4323
    %4762 = vmatpush.msra.mxu0 %v4319
    %4763 = vmatpush.msra.mxu0 %v4315
    %4764 = vmatmul.f32.gmra.mxu0 %v4460
    %v4765 = vpop.f32.mrf.mxu0
    %v4766 = vadd.f32 %v4746, %v4765
    %4767 = vdwg.mxu0
    %4768 = vmatpush.msra.mxu0 %v4439
    %4769 = vmatpush.msra.mxu0 %v4435
    %4770 = vmatpush.msra.mxu0 %v4431
    %4771 = vmatpush.msra.mxu0 %v4427
    %4772 = vmatpush.msra.mxu0 %v4423
    %4773 = vmatpush.msra.mxu0 %v4419
    %4774 = vmatpush.msra.mxu0 %v4415
    %4775 = vmatpush.msra.mxu0 %v4411
    %4776 = vmatpush.msra.mxu0 %v4407
    %4777 = vmatpush.msra.mxu0 %v4403
    %4778 = vmatpush.msra.mxu0 %v4399
    %4779 = vmatpush.msra.mxu0 %v4395
    %4780 = vmatpush.msra.mxu0 %v4391
    %4781 = vmatpush.msra.mxu0 %v4387
    %4782 = vmatpush.msra.mxu0 %v4383
    %4783 = vmatpush.msra.mxu0 %v4379
    %4784 = vmatmul.f32.gmra.mxu0 %v4467
    %v4785 = vpop.f32.mrf.mxu0
    %v4786 = vadd.f32 %v4766, %v4785
    %4787 = vdwg.mxu0
    %v4788 = vmul.f32 %v4546, 0.5
    %v4789 = vmul.f32 %v4626, 0.5
    %v4790 = vmul.f32 %v4706, 0.5
    %v4791 = vmul.f32 %v4786, 0.5
    %v4792 = vperm.slane %v4788, 0
    %v4793 = vperm.slane %v4789, 0
    %v4794 = vperm.slane %v4790, 0
    %v4795 = vperm.slane %v4791, 0
    %v4796 = vsub.f32 %v4180, %v4792
    %v4797 = vsub.f32 %v4181, %v4793
    %v4798 = vsub.f32 %v4182, %v4794
    %v4799 = vsub.f32 %v4183, %v4795
    %v4800 = vmul.f32 %v4796, %v4796
    %v4801 = vmul.f32 %v4797, %v4797
    %v4802 = vmul.f32 %v4798, %v4798
    %v4803 = vmul.f32 %v4799, %v4799
    %v4804 = vsel %vm1387, %v4800, 0.0
    %v4805 = vrot.slane %v4804, 4
    %v4806 = vadd.f32 %v4804, %v4805
    %v4807 = vrot.slane %v4806, 2
    %v4808 = vadd.f32 %v4806, %v4807
    %v4809 = vrot.slane %v4808, 1
    %v4810 = vadd.f32 %v4808, %v4809
    %v4811 = vsel %vm1387, %v4801, 0.0
    %v4812 = vrot.slane %v4811, 4
    %v4813 = vadd.f32 %v4811, %v4812
    %v4814 = vrot.slane %v4813, 2
    %v4815 = vadd.f32 %v4813, %v4814
    %v4816 = vrot.slane %v4815, 1
    %v4817 = vadd.f32 %v4815, %v4816
    %v4818 = vsel %vm1387, %v4802, 0.0
    %v4819 = vrot.slane %v4818, 4
    %v4820 = vadd.f32 %v4818, %v4819
    %v4821 = vrot.slane %v4820, 2
    %v4822 = vadd.f32 %v4820, %v4821
    %v4823 = vrot.slane %v4822, 1
    %v4824 = vadd.f32 %v4822, %v4823
    %v4825 = vsel %vm1387, %v4803, 0.0
    %v4826 = vrot.slane %v4825, 4
    %v4827 = vadd.f32 %v4825, %v4826
    %v4828 = vrot.slane %v4827, 2
    %v4829 = vadd.f32 %v4827, %v4828
    %v4830 = vrot.slane %v4829, 1
    %v4831 = vadd.f32 %v4829, %v4830
    %4832 = vmatpush.msra.mxu0 %v4244
    %4833 = vmatpush.msra.mxu0 %v4240
    %4834 = vmatpush.msra.mxu0 %v4236
    %4835 = vmatpush.msra.mxu0 %v4232
    %4836 = vmatpush.msra.mxu0 %v4228
    %4837 = vmatpush.msra.mxu0 %v4224
    %4838 = vmatpush.msra.mxu0 %v4220
    %4839 = vmatpush.msra.mxu0 %v4216
    %4840 = vmatpush.msra.mxu0 %v4212
    %4841 = vmatpush.msra.mxu0 %v4208
    %4842 = vmatpush.msra.mxu0 %v4204
    %4843 = vmatpush.msra.mxu0 %v4200
    %4844 = vmatpush.msra.mxu0 %v4196
    %4845 = vmatpush.msra.mxu0 %v4192
    %4846 = vmatpush.msra.mxu0 %v4188
    %4847 = vmatpush.msra.mxu0 %v4184
    %4848 = vmatmul.f32.gmra.mxu0 %v4810
    %v4849 = vpop.f32.mrf.mxu0
    %v4850 = vadd.f32 0.0, %v4849
    %4851 = vdwg.mxu0
    %4852 = vmatpush.msra.mxu0 %v4308
    %4853 = vmatpush.msra.mxu0 %v4304
    %4854 = vmatpush.msra.mxu0 %v4300
    %4855 = vmatpush.msra.mxu0 %v4296
    %4856 = vmatpush.msra.mxu0 %v4292
    %4857 = vmatpush.msra.mxu0 %v4288
    %4858 = vmatpush.msra.mxu0 %v4284
    %4859 = vmatpush.msra.mxu0 %v4280
    %4860 = vmatpush.msra.mxu0 %v4276
    %4861 = vmatpush.msra.mxu0 %v4272
    %4862 = vmatpush.msra.mxu0 %v4268
    %4863 = vmatpush.msra.mxu0 %v4264
    %4864 = vmatpush.msra.mxu0 %v4260
    %4865 = vmatpush.msra.mxu0 %v4256
    %4866 = vmatpush.msra.mxu0 %v4252
    %4867 = vmatpush.msra.mxu0 %v4248
    %4868 = vmatmul.f32.gmra.mxu0 %v4817
    %v4869 = vpop.f32.mrf.mxu0
    %v4870 = vadd.f32 %v4850, %v4869
    %4871 = vdwg.mxu0
    %4872 = vmatpush.msra.mxu0 %v4372
    %4873 = vmatpush.msra.mxu0 %v4368
    %4874 = vmatpush.msra.mxu0 %v4364
    %4875 = vmatpush.msra.mxu0 %v4360
    %4876 = vmatpush.msra.mxu0 %v4356
    %4877 = vmatpush.msra.mxu0 %v4352
    %4878 = vmatpush.msra.mxu0 %v4348
    %4879 = vmatpush.msra.mxu0 %v4344
    %4880 = vmatpush.msra.mxu0 %v4340
    %4881 = vmatpush.msra.mxu0 %v4336
    %4882 = vmatpush.msra.mxu0 %v4332
    %4883 = vmatpush.msra.mxu0 %v4328
    %4884 = vmatpush.msra.mxu0 %v4324
    %4885 = vmatpush.msra.mxu0 %v4320
    %4886 = vmatpush.msra.mxu0 %v4316
    %4887 = vmatpush.msra.mxu0 %v4312
    %4888 = vmatmul.f32.gmra.mxu0 %v4824
    %v4889 = vpop.f32.mrf.mxu0
    %v4890 = vadd.f32 %v4870, %v4889
    %4891 = vdwg.mxu0
    %4892 = vmatpush.msra.mxu0 %v4436
    %4893 = vmatpush.msra.mxu0 %v4432
    %4894 = vmatpush.msra.mxu0 %v4428
    %4895 = vmatpush.msra.mxu0 %v4424
    %4896 = vmatpush.msra.mxu0 %v4420
    %4897 = vmatpush.msra.mxu0 %v4416
    %4898 = vmatpush.msra.mxu0 %v4412
    %4899 = vmatpush.msra.mxu0 %v4408
    %4900 = vmatpush.msra.mxu0 %v4404
    %4901 = vmatpush.msra.mxu0 %v4400
    %4902 = vmatpush.msra.mxu0 %v4396
    %4903 = vmatpush.msra.mxu0 %v4392
    %4904 = vmatpush.msra.mxu0 %v4388
    %4905 = vmatpush.msra.mxu0 %v4384
    %4906 = vmatpush.msra.mxu0 %v4380
    %4907 = vmatpush.msra.mxu0 %v4376
    %4908 = vmatmul.f32.gmra.mxu0 %v4831
    %v4909 = vpop.f32.mrf.mxu0
    %v4910 = vadd.f32 %v4890, %v4909
    %4911 = vdwg.mxu0
    %4912 = vmatpush.msra.mxu0 %v4245
    %4913 = vmatpush.msra.mxu0 %v4241
    %4914 = vmatpush.msra.mxu0 %v4237
    %4915 = vmatpush.msra.mxu0 %v4233
    %4916 = vmatpush.msra.mxu0 %v4229
    %4917 = vmatpush.msra.mxu0 %v4225
    %4918 = vmatpush.msra.mxu0 %v4221
    %4919 = vmatpush.msra.mxu0 %v4217
    %4920 = vmatpush.msra.mxu0 %v4213
    %4921 = vmatpush.msra.mxu0 %v4209
    %4922 = vmatpush.msra.mxu0 %v4205
    %4923 = vmatpush.msra.mxu0 %v4201
    %4924 = vmatpush.msra.mxu0 %v4197
    %4925 = vmatpush.msra.mxu0 %v4193
    %4926 = vmatpush.msra.mxu0 %v4189
    %4927 = vmatpush.msra.mxu0 %v4185
    %4928 = vmatmul.f32.gmra.mxu0 %v4810
    %v4929 = vpop.f32.mrf.mxu0
    %v4930 = vadd.f32 0.0, %v4929
    %4931 = vdwg.mxu0
    %4932 = vmatpush.msra.mxu0 %v4309
    %4933 = vmatpush.msra.mxu0 %v4305
    %4934 = vmatpush.msra.mxu0 %v4301
    %4935 = vmatpush.msra.mxu0 %v4297
    %4936 = vmatpush.msra.mxu0 %v4293
    %4937 = vmatpush.msra.mxu0 %v4289
    %4938 = vmatpush.msra.mxu0 %v4285
    %4939 = vmatpush.msra.mxu0 %v4281
    %4940 = vmatpush.msra.mxu0 %v4277
    %4941 = vmatpush.msra.mxu0 %v4273
    %4942 = vmatpush.msra.mxu0 %v4269
    %4943 = vmatpush.msra.mxu0 %v4265
    %4944 = vmatpush.msra.mxu0 %v4261
    %4945 = vmatpush.msra.mxu0 %v4257
    %4946 = vmatpush.msra.mxu0 %v4253
    %4947 = vmatpush.msra.mxu0 %v4249
    %4948 = vmatmul.f32.gmra.mxu0 %v4817
    %v4949 = vpop.f32.mrf.mxu0
    %v4950 = vadd.f32 %v4930, %v4949
    %4951 = vdwg.mxu0
    %4952 = vmatpush.msra.mxu0 %v4373
    %4953 = vmatpush.msra.mxu0 %v4369
    %4954 = vmatpush.msra.mxu0 %v4365
    %4955 = vmatpush.msra.mxu0 %v4361
    %4956 = vmatpush.msra.mxu0 %v4357
    %4957 = vmatpush.msra.mxu0 %v4353
    %4958 = vmatpush.msra.mxu0 %v4349
    %4959 = vmatpush.msra.mxu0 %v4345
    %4960 = vmatpush.msra.mxu0 %v4341
    %4961 = vmatpush.msra.mxu0 %v4337
    %4962 = vmatpush.msra.mxu0 %v4333
    %4963 = vmatpush.msra.mxu0 %v4329
    %4964 = vmatpush.msra.mxu0 %v4325
    %4965 = vmatpush.msra.mxu0 %v4321
    %4966 = vmatpush.msra.mxu0 %v4317
    %4967 = vmatpush.msra.mxu0 %v4313
    %4968 = vmatmul.f32.gmra.mxu0 %v4824
    %v4969 = vpop.f32.mrf.mxu0
    %v4970 = vadd.f32 %v4950, %v4969
    %4971 = vdwg.mxu0
    %4972 = vmatpush.msra.mxu0 %v4437
    %4973 = vmatpush.msra.mxu0 %v4433
    %4974 = vmatpush.msra.mxu0 %v4429
    %4975 = vmatpush.msra.mxu0 %v4425
    %4976 = vmatpush.msra.mxu0 %v4421
    %4977 = vmatpush.msra.mxu0 %v4417
    %4978 = vmatpush.msra.mxu0 %v4413
    %4979 = vmatpush.msra.mxu0 %v4409
    %4980 = vmatpush.msra.mxu0 %v4405
    %4981 = vmatpush.msra.mxu0 %v4401
    %4982 = vmatpush.msra.mxu0 %v4397
    %4983 = vmatpush.msra.mxu0 %v4393
    %4984 = vmatpush.msra.mxu0 %v4389
    %4985 = vmatpush.msra.mxu0 %v4385
    %4986 = vmatpush.msra.mxu0 %v4381
    %4987 = vmatpush.msra.mxu0 %v4377
    %4988 = vmatmul.f32.gmra.mxu0 %v4831
    %v4989 = vpop.f32.mrf.mxu0
    %v4990 = vadd.f32 %v4970, %v4989
    %4991 = vdwg.mxu0
    %4992 = vmatpush.msra.mxu0 %v4246
    %4993 = vmatpush.msra.mxu0 %v4242
    %4994 = vmatpush.msra.mxu0 %v4238
    %4995 = vmatpush.msra.mxu0 %v4234
    %4996 = vmatpush.msra.mxu0 %v4230
    %4997 = vmatpush.msra.mxu0 %v4226
    %4998 = vmatpush.msra.mxu0 %v4222
    %4999 = vmatpush.msra.mxu0 %v4218
    %5000 = vmatpush.msra.mxu0 %v4214
    %5001 = vmatpush.msra.mxu0 %v4210
    %5002 = vmatpush.msra.mxu0 %v4206
    %5003 = vmatpush.msra.mxu0 %v4202
    %5004 = vmatpush.msra.mxu0 %v4198
    %5005 = vmatpush.msra.mxu0 %v4194
    %5006 = vmatpush.msra.mxu0 %v4190
    %5007 = vmatpush.msra.mxu0 %v4186
    %5008 = vmatmul.f32.gmra.mxu0 %v4810
    %v5009 = vpop.f32.mrf.mxu0
    %v5010 = vadd.f32 0.0, %v5009
    %5011 = vdwg.mxu0
    %5012 = vmatpush.msra.mxu0 %v4310
    %5013 = vmatpush.msra.mxu0 %v4306
    %5014 = vmatpush.msra.mxu0 %v4302
    %5015 = vmatpush.msra.mxu0 %v4298
    %5016 = vmatpush.msra.mxu0 %v4294
    %5017 = vmatpush.msra.mxu0 %v4290
    %5018 = vmatpush.msra.mxu0 %v4286
    %5019 = vmatpush.msra.mxu0 %v4282
    %5020 = vmatpush.msra.mxu0 %v4278
    %5021 = vmatpush.msra.mxu0 %v4274
    %5022 = vmatpush.msra.mxu0 %v4270
    %5023 = vmatpush.msra.mxu0 %v4266
    %5024 = vmatpush.msra.mxu0 %v4262
    %5025 = vmatpush.msra.mxu0 %v4258
    %5026 = vmatpush.msra.mxu0 %v4254
    %5027 = vmatpush.msra.mxu0 %v4250
    %5028 = vmatmul.f32.gmra.mxu0 %v4817
    %v5029 = vpop.f32.mrf.mxu0
    %v5030 = vadd.f32 %v5010, %v5029
    %5031 = vdwg.mxu0
    %5032 = vmatpush.msra.mxu0 %v4374
    %5033 = vmatpush.msra.mxu0 %v4370
    %5034 = vmatpush.msra.mxu0 %v4366
    %5035 = vmatpush.msra.mxu0 %v4362
    %5036 = vmatpush.msra.mxu0 %v4358
    %5037 = vmatpush.msra.mxu0 %v4354
    %5038 = vmatpush.msra.mxu0 %v4350
    %5039 = vmatpush.msra.mxu0 %v4346
    %5040 = vmatpush.msra.mxu0 %v4342
    %5041 = vmatpush.msra.mxu0 %v4338
    %5042 = vmatpush.msra.mxu0 %v4334
    %5043 = vmatpush.msra.mxu0 %v4330
    %5044 = vmatpush.msra.mxu0 %v4326
    %5045 = vmatpush.msra.mxu0 %v4322
    %5046 = vmatpush.msra.mxu0 %v4318
    %5047 = vmatpush.msra.mxu0 %v4314
    %5048 = vmatmul.f32.gmra.mxu0 %v4824
    %v5049 = vpop.f32.mrf.mxu0
    %v5050 = vadd.f32 %v5030, %v5049
    %5051 = vdwg.mxu0
    %5052 = vmatpush.msra.mxu0 %v4438
    %5053 = vmatpush.msra.mxu0 %v4434
    %5054 = vmatpush.msra.mxu0 %v4430
    %5055 = vmatpush.msra.mxu0 %v4426
    %5056 = vmatpush.msra.mxu0 %v4422
    %5057 = vmatpush.msra.mxu0 %v4418
    %5058 = vmatpush.msra.mxu0 %v4414
    %5059 = vmatpush.msra.mxu0 %v4410
    %5060 = vmatpush.msra.mxu0 %v4406
    %5061 = vmatpush.msra.mxu0 %v4402
    %5062 = vmatpush.msra.mxu0 %v4398
    %5063 = vmatpush.msra.mxu0 %v4394
    %5064 = vmatpush.msra.mxu0 %v4390
    %5065 = vmatpush.msra.mxu0 %v4386
    %5066 = vmatpush.msra.mxu0 %v4382
    %5067 = vmatpush.msra.mxu0 %v4378
    %5068 = vmatmul.f32.gmra.mxu0 %v4831
    %v5069 = vpop.f32.mrf.mxu0
    %v5070 = vadd.f32 %v5050, %v5069
    %5071 = vdwg.mxu0
    %5072 = vmatpush.msra.mxu0 %v4247
    %5073 = vmatpush.msra.mxu0 %v4243
    %5074 = vmatpush.msra.mxu0 %v4239
    %5075 = vmatpush.msra.mxu0 %v4235
    %5076 = vmatpush.msra.mxu0 %v4231
    %5077 = vmatpush.msra.mxu0 %v4227
    %5078 = vmatpush.msra.mxu0 %v4223
    %5079 = vmatpush.msra.mxu0 %v4219
    %5080 = vmatpush.msra.mxu0 %v4215
    %5081 = vmatpush.msra.mxu0 %v4211
    %5082 = vmatpush.msra.mxu0 %v4207
    %5083 = vmatpush.msra.mxu0 %v4203
    %5084 = vmatpush.msra.mxu0 %v4199
    %5085 = vmatpush.msra.mxu0 %v4195
    %5086 = vmatpush.msra.mxu0 %v4191
    %5087 = vmatpush.msra.mxu0 %v4187
    %5088 = vmatmul.f32.gmra.mxu0 %v4810
    %v5089 = vpop.f32.mrf.mxu0
    %v5090 = vadd.f32 0.0, %v5089
    %5091 = vdwg.mxu0
    %5092 = vmatpush.msra.mxu0 %v4311
    %5093 = vmatpush.msra.mxu0 %v4307
    %5094 = vmatpush.msra.mxu0 %v4303
    %5095 = vmatpush.msra.mxu0 %v4299
    %5096 = vmatpush.msra.mxu0 %v4295
    %5097 = vmatpush.msra.mxu0 %v4291
    %5098 = vmatpush.msra.mxu0 %v4287
    %5099 = vmatpush.msra.mxu0 %v4283
    %5100 = vmatpush.msra.mxu0 %v4279
    %5101 = vmatpush.msra.mxu0 %v4275
    %5102 = vmatpush.msra.mxu0 %v4271
    %5103 = vmatpush.msra.mxu0 %v4267
    %5104 = vmatpush.msra.mxu0 %v4263
    %5105 = vmatpush.msra.mxu0 %v4259
    %5106 = vmatpush.msra.mxu0 %v4255
    %5107 = vmatpush.msra.mxu0 %v4251
    %5108 = vmatmul.f32.gmra.mxu0 %v4817
    %v5109 = vpop.f32.mrf.mxu0
    %v5110 = vadd.f32 %v5090, %v5109
    %5111 = vdwg.mxu0
    %5112 = vmatpush.msra.mxu0 %v4375
    %5113 = vmatpush.msra.mxu0 %v4371
    %5114 = vmatpush.msra.mxu0 %v4367
    %5115 = vmatpush.msra.mxu0 %v4363
    %5116 = vmatpush.msra.mxu0 %v4359
    %5117 = vmatpush.msra.mxu0 %v4355
    %5118 = vmatpush.msra.mxu0 %v4351
    %5119 = vmatpush.msra.mxu0 %v4347
    %5120 = vmatpush.msra.mxu0 %v4343
    %5121 = vmatpush.msra.mxu0 %v4339
    %5122 = vmatpush.msra.mxu0 %v4335
    %5123 = vmatpush.msra.mxu0 %v4331
    %5124 = vmatpush.msra.mxu0 %v4327
    %5125 = vmatpush.msra.mxu0 %v4323
    %5126 = vmatpush.msra.mxu0 %v4319
    %5127 = vmatpush.msra.mxu0 %v4315
    %5128 = vmatmul.f32.gmra.mxu0 %v4824
    %v5129 = vpop.f32.mrf.mxu0
    %v5130 = vadd.f32 %v5110, %v5129
    %5131 = vdwg.mxu0
    %5132 = vmatpush.msra.mxu0 %v4439
    %5133 = vmatpush.msra.mxu0 %v4435
    %5134 = vmatpush.msra.mxu0 %v4431
    %5135 = vmatpush.msra.mxu0 %v4427
    %5136 = vmatpush.msra.mxu0 %v4423
    %5137 = vmatpush.msra.mxu0 %v4419
    %5138 = vmatpush.msra.mxu0 %v4415
    %5139 = vmatpush.msra.mxu0 %v4411
    %5140 = vmatpush.msra.mxu0 %v4407
    %5141 = vmatpush.msra.mxu0 %v4403
    %5142 = vmatpush.msra.mxu0 %v4399
    %5143 = vmatpush.msra.mxu0 %v4395
    %5144 = vmatpush.msra.mxu0 %v4391
    %5145 = vmatpush.msra.mxu0 %v4387
    %5146 = vmatpush.msra.mxu0 %v4383
    %5147 = vmatpush.msra.mxu0 %v4379
    %5148 = vmatmul.f32.gmra.mxu0 %v4831
    %v5149 = vpop.f32.mrf.mxu0
    %v5150 = vadd.f32 %v5130, %v5149
    %5151 = vdwg.mxu0
    %v5152 = vmul.f32 %v4910, 0.5
    %v5153 = vmul.f32 %v4990, 0.5
    %v5154 = vmul.f32 %v5070, 0.5
    %v5155 = vmul.f32 %v5150, 0.5
    %v5156 = vadd.f32 %v5152, 1e-05
    %v5157 = vadd.f32 %v5153, 1e-05
    %v5158 = vadd.f32 %v5154, 1e-05
    %v5159 = vadd.f32 %v5155, 1e-05
    %v5160 = vrsqrt.pop %v5156
    %v5161 = vmul.f32 %v5160, %v5156
    %v5162 = vmul.f32 %v5161, %v5160
    %v5163 = vmul.f32 0.5, %v5162
    %v5164 = vsub.f32 1.5, %v5163
    %v5165 = vmul.f32 %v5160, %v5164
    %vm5166 = vweird.f32 %v5156
    %vm5167 = vweird.f32 %v5160
    %vm5168 = vmor %vm5166, %vm5167
    %v5169 = vsel %vm5168, %v5160, %v5165
    %v5170 = vrsqrt.pop %v5157
    %v5171 = vmul.f32 %v5170, %v5157
    %v5172 = vmul.f32 %v5171, %v5170
    %v5173 = vmul.f32 0.5, %v5172
    %v5174 = vsub.f32 1.5, %v5173
    %v5175 = vmul.f32 %v5170, %v5174
    %vm5176 = vweird.f32 %v5157
    %vm5177 = vweird.f32 %v5170
    %vm5178 = vmor %vm5176, %vm5177
    %v5179 = vsel %vm5178, %v5170, %v5175
    %v5180 = vrsqrt.pop %v5158
    %v5181 = vmul.f32 %v5180, %v5158
    %v5182 = vmul.f32 %v5181, %v5180
    %v5183 = vmul.f32 0.5, %v5182
    %v5184 = vsub.f32 1.5, %v5183
    %v5185 = vmul.f32 %v5180, %v5184
    %vm5186 = vweird.f32 %v5158
    %vm5187 = vweird.f32 %v5180
    %vm5188 = vmor %vm5186, %vm5187
    %v5189 = vsel %vm5188, %v5180, %v5185
    %v5190 = vrsqrt.pop %v5159
    %v5191 = vmul.f32 %v5190, %v5159
    %v5192 = vmul.f32 %v5191, %v5190
    %v5193 = vmul.f32 0.5, %v5192
    %v5194 = vsub.f32 1.5, %v5193
    %v5195 = vmul.f32 %v5190, %v5194
    %vm5196 = vweird.f32 %v5159
    %vm5197 = vweird.f32 %v5190
    %vm5198 = vmor %vm5196, %vm5197
    %v5199 = vsel %vm5198, %v5190, %v5195
    %v5200 = vperm.slane %v5169, 0
    %v5201 = vperm.slane %v5179, 0
    %v5202 = vperm.slane %v5189, 0
    %v5203 = vperm.slane %v5199, 0
    %v5204 = vmul.f32 %v4796, %v5200
    %v5205 = vmul.f32 %v4797, %v5201
    %v5206 = vmul.f32 %v4798, %v5202
    %v5207 = vmul.f32 %v4799, %v5203
    %v5208 = vperm.slane %v4144, 1
    %v5209 = vperm.slane %v4144, 5
    %v5210 = vperm.slane %v4145, 1
    %v5211 = vperm.slane %v4145, 5
    %v5216 = vperm.slane %v5208, 1
    %v5217 = vperm.slane %v5209, 1
    %v5218 = vperm.slane %v5210, 1
    %v5219 = vperm.slane %v5211, 1
    %v5220 = vmul.f32 %v5204, %v5216
    %v5221 = vmul.f32 %v5205, %v5217
    %v5222 = vmul.f32 %v5206, %v5218
    %v5223 = vmul.f32 %v5207, %v5219
    %v5224 = vperm.slane %v4144, 2
    %v5225 = vperm.slane %v4144, 6
    %v5226 = vperm.slane %v4145, 2
    %v5227 = vperm.slane %v4145, 6
    %v5232 = vperm.slane %v5224, 2
    %v5233 = vperm.slane %v5225, 2
    %v5234 = vperm.slane %v5226, 2
    %v5235 = vperm.slane %v5227, 2
    %v5236 = vadd.f32 %v5220, %v5232
    %v5237 = vadd.f32 %v5221, %v5233
    %v5238 = vadd.f32 %v5222, %v5234
    %v5239 = vadd.f32 %v5223, %v5235
    %v5240 = vpack.c.bf16 %v5236, %v5236
    %v5241 = vpack.c.bf16 %v5237, %v5237
    %v5242 = vpack.c.bf16 %v5238, %v5238
    %v5243 = vpack.c.bf16 %v5239, %v5239
    %v5244 = vld [vmem:[%s7] sm:$0xff]
    %v5245 = vld [vmem:[%s7 + $0x8] sm:$0xff]
    %v5246 = vld [vmem:[%s7 + $0x10] sm:$0xff]
    %v5247 = vld [vmem:[%s7 + $0x18] sm:$0xff]
    %v5248 = vld [vmem:[%s7 + $0x20] sm:$0xff]
    %v5249 = vld [vmem:[%s7 + $0x28] sm:$0xff]
    %v5250 = vld [vmem:[%s7 + $0x30] sm:$0xff]
    %v5251 = vld [vmem:[%s7 + $0x38] sm:$0xff]
    %v5252 = vld [vmem:[%s7 + $0x40] sm:$0xff]
    %v5253 = vld [vmem:[%s7 + $0x48] sm:$0xff]
    %v5254 = vld [vmem:[%s7 + $0x50] sm:$0xff]
    %v5255 = vld [vmem:[%s7 + $0x58] sm:$0xff]
    %v5256 = vld [vmem:[%s7 + $0x60] sm:$0xff]
    %v5257 = vld [vmem:[%s7 + $0x68] sm:$0xff]
    %v5258 = vld [vmem:[%s7 + $0x70] sm:$0xff]
    %v5259 = vld [vmem:[%s7 + $0x78] sm:$0xff]
    %v5260 = vld [vmem:[%s7 + $0x80] sm:$0xff]
    %v5261 = vld [vmem:[%s7 + $0x88] sm:$0xff]
    %v5262 = vld [vmem:[%s7 + $0x90] sm:$0xff]
    %v5263 = vld [vmem:[%s7 + $0x98] sm:$0xff]
    %v5264 = vld [vmem:[%s7 + $0xa0] sm:$0xff]
    %v5265 = vld [vmem:[%s7 + $0xa8] sm:$0xff]
    %v5266 = vld [vmem:[%s7 + $0xb0] sm:$0xff]
    %v5267 = vld [vmem:[%s7 + $0xb8] sm:$0xff]
    %v5268 = vld [vmem:[%s7 + $0xc0] sm:$0xff]
    %v5269 = vld [vmem:[%s7 + $0xc8] sm:$0xff]
    %v5270 = vld [vmem:[%s7 + $0xd0] sm:$0xff]
    %v5271 = vld [vmem:[%s7 + $0xd8] sm:$0xff]
    %v5272 = vld [vmem:[%s7 + $0xe0] sm:$0xff]
    %v5273 = vld [vmem:[%s7 + $0xe8] sm:$0xff]
    %v5274 = vld [vmem:[%s7 + $0xf0] sm:$0xff]
    %v5275 = vld [vmem:[%s7 + $0xf8] sm:$0xff]
    %v5276 = vld [vmem:[%s7 + $0x100] sm:$0xff]
    %v5277 = vld [vmem:[%s7 + $0x108] sm:$0xff]
    %v5278 = vld [vmem:[%s7 + $0x110] sm:$0xff]
    %v5279 = vld [vmem:[%s7 + $0x118] sm:$0xff]
    %v5280 = vld [vmem:[%s7 + $0x120] sm:$0xff]
    %v5281 = vld [vmem:[%s7 + $0x128] sm:$0xff]
    %v5282 = vld [vmem:[%s7 + $0x130] sm:$0xff]
    %v5283 = vld [vmem:[%s7 + $0x138] sm:$0xff]
    %v5284 = vld [vmem:[%s7 + $0x140] sm:$0xff]
    %v5285 = vld [vmem:[%s7 + $0x148] sm:$0xff]
    %v5286 = vld [vmem:[%s7 + $0x150] sm:$0xff]
    %v5287 = vld [vmem:[%s7 + $0x158] sm:$0xff]
    %v5288 = vld [vmem:[%s7 + $0x160] sm:$0xff]
    %v5289 = vld [vmem:[%s7 + $0x168] sm:$0xff]
    %v5290 = vld [vmem:[%s7 + $0x170] sm:$0xff]
    %v5291 = vld [vmem:[%s7 + $0x178] sm:$0xff]
    %v5292 = vld [vmem:[%s7 + $0x180] sm:$0xff]
    %v5293 = vld [vmem:[%s7 + $0x188] sm:$0xff]
    %v5294 = vld [vmem:[%s7 + $0x190] sm:$0xff]
    %v5295 = vld [vmem:[%s7 + $0x198] sm:$0xff]
    %v5296 = vld [vmem:[%s7 + $0x1a0] sm:$0xff]
    %v5297 = vld [vmem:[%s7 + $0x1a8] sm:$0xff]
    %v5298 = vld [vmem:[%s7 + $0x1b0] sm:$0xff]
    %v5299 = vld [vmem:[%s7 + $0x1b8] sm:$0xff]
    %v5300 = vld [vmem:[%s7 + $0x1c0] sm:$0xff]
    %v5301 = vld [vmem:[%s7 + $0x1c8] sm:$0xff]
    %v5302 = vld [vmem:[%s7 + $0x1d0] sm:$0xff]
    %v5303 = vld [vmem:[%s7 + $0x1d8] sm:$0xff]
    %v5304 = vld [vmem:[%s7 + $0x1e0] sm:$0xff]
    %v5305 = vld [vmem:[%s7 + $0x1e8] sm:$0xff]
    %v5306 = vld [vmem:[%s7 + $0x1f0] sm:$0xff]
    %v5307 = vld [vmem:[%s7 + $0x1f8] sm:$0xff]
    %v5308 = vld [vmem:[%s8] sm:$0x3]
    %v5310 = vperm.slane %v5308, 0
    %v5311 = vperm.slane %v5308, 1
    %v5378 = vunpack.c.l.b16 %v5244
    %v5379 = vunpack.c.h.b16 %v5244
    %v5380 = vunpack.c.l.b16 %v5245
    %v5381 = vunpack.c.h.b16 %v5245
    %v5382 = vunpack.c.l.b16 %v5246
    %v5383 = vunpack.c.h.b16 %v5246
    %v5384 = vunpack.c.l.b16 %v5247
    %v5385 = vunpack.c.h.b16 %v5247
    %v5386 = vunpack.c.l.b16 %v5248
    %v5387 = vunpack.c.h.b16 %v5248
    %v5388 = vunpack.c.l.b16 %v5249
    %v5389 = vunpack.c.h.b16 %v5249
    %v5390 = vunpack.c.l.b16 %v5250
    %v5391 = vunpack.c.h.b16 %v5250
    %v5392 = vunpack.c.l.b16 %v5251
    %v5393 = vunpack.c.h.b16 %v5251
    %v5394 = vunpack.c.l.b16 %v5252
    %v5395 = vunpack.c.h.b16 %v5252
    %v5396 = vunpack.c.l.b16 %v5253
    %v5397 = vunpack.c.h.b16 %v5253
    %v5398 = vunpack.c.l.b16 %v5254
    %v5399 = vunpack.c.h.b16 %v5254
    %v5400 = vunpack.c.l.b16 %v5255
    %v5401 = vunpack.c.h.b16 %v5255
    %v5402 = vunpack.c.l.b16 %v5256
    %v5403 = vunpack.c.h.b16 %v5256
    %v5404 = vunpack.c.l.b16 %v5257
    %v5405 = vunpack.c.h.b16 %v5257
    %v5406 = vunpack.c.l.b16 %v5258
    %v5407 = vunpack.c.h.b16 %v5258
    %v5408 = vunpack.c.l.b16 %v5259
    %v5409 = vunpack.c.h.b16 %v5259
    %v5410 = vunpack.c.l.b16 %v5260
    %v5411 = vunpack.c.h.b16 %v5260
    %v5412 = vunpack.c.l.b16 %v5261
    %v5413 = vunpack.c.h.b16 %v5261
    %v5414 = vunpack.c.l.b16 %v5262
    %v5415 = vunpack.c.h.b16 %v5262
    %v5416 = vunpack.c.l.b16 %v5263
    %v5417 = vunpack.c.h.b16 %v5263
    %v5418 = vunpack.c.l.b16 %v5264
    %v5419 = vunpack.c.h.b16 %v5264
    %v5420 = vunpack.c.l.b16 %v5265
    %v5421 = vunpack.c.h.b16 %v5265
    %v5422 = vunpack.c.l.b16 %v5266
    %v5423 = vunpack.c.h.b16 %v5266
    %v5424 = vunpack.c.l.b16 %v5267
    %v5425 = vunpack.c.h.b16 %v5267
    %v5426 = vunpack.c.l.b16 %v5268
    %v5427 = vunpack.c.h.b16 %v5268
    %v5428 = vunpack.c.l.b16 %v5269
    %v5429 = vunpack.c.h.b16 %v5269
    %v5430 = vunpack.c.l.b16 %v5270
    %v5431 = vunpack.c.h.b16 %v5270
    %v5432 = vunpack.c.l.b16 %v5271
    %v5433 = vunpack.c.h.b16 %v5271
    %v5434 = vunpack.c.l.b16 %v5272
    %v5435 = vunpack.c.h.b16 %v5272
    %v5436 = vunpack.c.l.b16 %v5273
    %v5437 = vunpack.c.h.b16 %v5273
    %v5438 = vunpack.c.l.b16 %v5274
    %v5439 = vunpack.c.h.b16 %v5274
    %v5440 = vunpack.c.l.b16 %v5275
    %v5441 = vunpack.c.h.b16 %v5275
    %v5442 = vunpack.c.l.b16 %v5276
    %v5443 = vunpack.c.h.b16 %v5276
    %v5444 = vunpack.c.l.b16 %v5277
    %v5445 = vunpack.c.h.b16 %v5277
    %v5446 = vunpack.c.l.b16 %v5278
    %v5447 = vunpack.c.h.b16 %v5278
    %v5448 = vunpack.c.l.b16 %v5279
    %v5449 = vunpack.c.h.b16 %v5279
    %v5450 = vunpack.c.l.b16 %v5280
    %v5451 = vunpack.c.h.b16 %v5280
    %v5452 = vunpack.c.l.b16 %v5281
    %v5453 = vunpack.c.h.b16 %v5281
    %v5454 = vunpack.c.l.b16 %v5282
    %v5455 = vunpack.c.h.b16 %v5282
    %v5456 = vunpack.c.l.b16 %v5283
    %v5457 = vunpack.c.h.b16 %v5283
    %v5458 = vunpack.c.l.b16 %v5284
    %v5459 = vunpack.c.h.b16 %v5284
    %v5460 = vunpack.c.l.b16 %v5285
    %v5461 = vunpack.c.h.b16 %v5285
    %v5462 = vunpack.c.l.b16 %v5286
    %v5463 = vunpack.c.h.b16 %v5286
    %v5464 = vunpack.c.l.b16 %v5287
    %v5465 = vunpack.c.h.b16 %v5287
    %v5466 = vunpack.c.l.b16 %v5288
    %v5467 = vunpack.c.h.b16 %v5288
    %v5468 = vunpack.c.l.b16 %v5289
    %v5469 = vunpack.c.h.b16 %v5289
    %v5470 = vunpack.c.l.b16 %v5290
    %v5471 = vunpack.c.h.b16 %v5290
    %v5472 = vunpack.c.l.b16 %v5291
    %v5473 = vunpack.c.h.b16 %v5291
    %v5474 = vunpack.c.l.b16 %v5292
    %v5475 = vunpack.c.h.b16 %v5292
    %v5476 = vunpack.c.l.b16 %v5293
    %v5477 = vunpack.c.h.b16 %v5293
    %v5478 = vunpack.c.l.b16 %v5294
    %v5479 = vunpack.c.h.b16 %v5294
    %v5480 = vunpack.c.l.b16 %v5295
    %v5481 = vunpack.c.h.b16 %v5295
    %v5482 = vunpack.c.l.b16 %v5296
    %v5483 = vunpack.c.h.b16 %v5296
    %v5484 = vunpack.c.l.b16 %v5297
    %v5485 = vunpack.c.h.b16 %v5297
    %v5486 = vunpack.c.l.b16 %v5298
    %v5487 = vunpack.c.h.b16 %v5298
    %v5488 = vunpack.c.l.b16 %v5299
    %v5489 = vunpack.c.h.b16 %v5299
    %v5490 = vunpack.c.l.b16 %v5300
    %v5491 = vunpack.c.h.b16 %v5300
    %v5492 = vunpack.c.l.b16 %v5301
    %v5493 = vunpack.c.h.b16 %v5301
    %v5494 = vunpack.c.l.b16 %v5302
    %v5495 = vunpack.c.h.b16 %v5302
    %v5496 = vunpack.c.l.b16 %v5303
    %v5497 = vunpack.c.h.b16 %v5303
    %v5498 = vunpack.c.l.b16 %v5304
    %v5499 = vunpack.c.h.b16 %v5304
    %v5500 = vunpack.c.l.b16 %v5305
    %v5501 = vunpack.c.h.b16 %v5305
    %v5502 = vunpack.c.l.b16 %v5306
    %v5503 = vunpack.c.h.b16 %v5306
    %v5504 = vunpack.c.l.b16 %v5307
    %v5505 = vunpack.c.h.b16 %v5307
    %v5506 = vpack.c.b16 %v5380, %v5378
    %v5507 = vpack.c.b16 %v5381, %v5379
    %v5508 = vpack.c.b16 %v5384, %v5382
    %v5509 = vpack.c.b16 %v5385, %v5383
    %v5510 = vpack.c.b16 %v5388, %v5386
    %v5511 = vpack.c.b16 %v5389, %v5387
    %v5512 = vpack.c.b16 %v5392, %v5390
    %v5513 = vpack.c.b16 %v5393, %v5391
    %v5514 = vpack.c.b16 %v5396, %v5394
    %v5515 = vpack.c.b16 %v5397, %v5395
    %v5516 = vpack.c.b16 %v5400, %v5398
    %v5517 = vpack.c.b16 %v5401, %v5399
    %v5518 = vpack.c.b16 %v5404, %v5402
    %v5519 = vpack.c.b16 %v5405, %v5403
    %v5520 = vpack.c.b16 %v5408, %v5406
    %v5521 = vpack.c.b16 %v5409, %v5407
    %v5522 = vpack.c.b16 %v5412, %v5410
    %v5523 = vpack.c.b16 %v5413, %v5411
    %v5524 = vpack.c.b16 %v5416, %v5414
    %v5525 = vpack.c.b16 %v5417, %v5415
    %v5526 = vpack.c.b16 %v5420, %v5418
    %v5527 = vpack.c.b16 %v5421, %v5419
    %v5528 = vpack.c.b16 %v5424, %v5422
    %v5529 = vpack.c.b16 %v5425, %v5423
    %v5530 = vpack.c.b16 %v5428, %v5426
    %v5531 = vpack.c.b16 %v5429, %v5427
    %v5532 = vpack.c.b16 %v5432, %v5430
    %v5533 = vpack.c.b16 %v5433, %v5431
    %v5534 = vpack.c.b16 %v5436, %v5434
    %v5535 = vpack.c.b16 %v5437, %v5435
    %v5536 = vpack.c.b16 %v5440, %v5438
    %v5537 = vpack.c.b16 %v5441, %v5439
    %v5538 = vpack.c.b16 %v5444, %v5442
    %v5539 = vpack.c.b16 %v5445, %v5443
    %v5540 = vpack.c.b16 %v5448, %v5446
    %v5541 = vpack.c.b16 %v5449, %v5447
    %v5542 = vpack.c.b16 %v5452, %v5450
    %v5543 = vpack.c.b16 %v5453, %v5451
    %v5544 = vpack.c.b16 %v5456, %v5454
    %v5545 = vpack.c.b16 %v5457, %v5455
    %v5546 = vpack.c.b16 %v5460, %v5458
    %v5547 = vpack.c.b16 %v5461, %v5459
    %v5548 = vpack.c.b16 %v5464, %v5462
    %v5549 = vpack.c.b16 %v5465, %v5463
    %v5550 = vpack.c.b16 %v5468, %v5466
    %v5551 = vpack.c.b16 %v5469, %v5467
    %v5552 = vpack.c.b16 %v5472, %v5470
    %v5553 = vpack.c.b16 %v5473, %v5471
    %v5554 = vpack.c.b16 %v5476, %v5474
    %v5555 = vpack.c.b16 %v5477, %v5475
    %v5556 = vpack.c.b16 %v5480, %v5478
    %v5557 = vpack.c.b16 %v5481, %v5479
    %v5558 = vpack.c.b16 %v5484, %v5482
    %v5559 = vpack.c.b16 %v5485, %v5483
    %v5560 = vpack.c.b16 %v5488, %v5486
    %v5561 = vpack.c.b16 %v5489, %v5487
    %v5562 = vpack.c.b16 %v5492, %v5490
    %v5563 = vpack.c.b16 %v5493, %v5491
    %v5564 = vpack.c.b16 %v5496, %v5494
    %v5565 = vpack.c.b16 %v5497, %v5495
    %v5566 = vpack.c.b16 %v5500, %v5498
    %v5567 = vpack.c.b16 %v5501, %v5499
    %v5568 = vpack.c.b16 %v5504, %v5502
    %v5569 = vpack.c.b16 %v5505, %v5503
    %5634 = vmatpush.bf16.msra.mxu0 %v5520
    %5635 = vmatpush.bf16.msra.mxu0 %v5518
    %5636 = vmatpush.bf16.msra.mxu0 %v5516
    %5637 = vmatpush.bf16.msra.mxu0 %v5514
    %5638 = vmatpush.bf16.msra.mxu0 %v5512
    %5639 = vmatpush.bf16.msra.mxu0 %v5510
    %5640 = vmatpush.bf16.msra.mxu0 %v5508
    %5641 = vmatpush.bf16.msra.mxu0 %v5506
    %5642 = vmatmul.bf16.gmra.mxu0 %v5240
    %v5643 = vpop.f32.mrf.mxu0
    %v5644 = vadd.f32 %v5310, %v5643
    %v5645 = vpop.f32.mrf.mxu0
    %5646 = vdwg.mxu0
    %5647 = vmatpush.bf16.msra.mxu0 %v5536
    %5648 = vmatpush.bf16.msra.mxu0 %v5534
    %5649 = vmatpush.bf16.msra.mxu0 %v5532
    %5650 = vmatpush.bf16.msra.mxu0 %v5530
    %5651 = vmatpush.bf16.msra.mxu0 %v5528
    %5652 = vmatpush.bf16.msra.mxu0 %v5526
    %5653 = vmatpush.bf16.msra.mxu0 %v5524
    %5654 = vmatpush.bf16.msra.mxu0 %v5522
    %5655 = vmatmul.bf16.gmra.mxu0 %v5241
    %v5656 = vpop.f32.mrf.mxu0
    %v5657 = vadd.f32 %v5644, %v5656
    %v5658 = vpop.f32.mrf.mxu0
    %5659 = vdwg.mxu0
    %5660 = vmatpush.bf16.msra.mxu0 %v5552
    %5661 = vmatpush.bf16.msra.mxu0 %v5550
    %5662 = vmatpush.bf16.msra.mxu0 %v5548
    %5663 = vmatpush.bf16.msra.mxu0 %v5546
    %5664 = vmatpush.bf16.msra.mxu0 %v5544
    %5665 = vmatpush.bf16.msra.mxu0 %v5542
    %5666 = vmatpush.bf16.msra.mxu0 %v5540
    %5667 = vmatpush.bf16.msra.mxu0 %v5538
    %5668 = vmatmul.bf16.gmra.mxu0 %v5242
    %v5669 = vpop.f32.mrf.mxu0
    %v5670 = vadd.f32 %v5657, %v5669
    %v5671 = vpop.f32.mrf.mxu0
    %5672 = vdwg.mxu0
    %5673 = vmatpush.bf16.msra.mxu0 %v5568
    %5674 = vmatpush.bf16.msra.mxu0 %v5566
    %5675 = vmatpush.bf16.msra.mxu0 %v5564
    %5676 = vmatpush.bf16.msra.mxu0 %v5562
    %5677 = vmatpush.bf16.msra.mxu0 %v5560
    %5678 = vmatpush.bf16.msra.mxu0 %v5558
    %5679 = vmatpush.bf16.msra.mxu0 %v5556
    %5680 = vmatpush.bf16.msra.mxu0 %v5554
    %5681 = vmatmul.bf16.gmra.mxu0 %v5243
    %v5682 = vpop.f32.mrf.mxu0
    %v5683 = vadd.f32 %v5670, %v5682
    %v5684 = vpop.f32.mrf.mxu0
    %5685 = vdwg.mxu0
    %5686 = vmatpush.bf16.msra.mxu0 %v5521
    %5687 = vmatpush.bf16.msra.mxu0 %v5519
    %5688 = vmatpush.bf16.msra.mxu0 %v5517
    %5689 = vmatpush.bf16.msra.mxu0 %v5515
    %5690 = vmatpush.bf16.msra.mxu0 %v5513
    %5691 = vmatpush.bf16.msra.mxu0 %v5511
    %5692 = vmatpush.bf16.msra.mxu0 %v5509
    %5693 = vmatpush.bf16.msra.mxu0 %v5507
    %5694 = vmatmul.bf16.gmra.mxu0 %v5240
    %v5695 = vpop.f32.mrf.mxu0
    %v5696 = vadd.f32 %v5311, %v5695
    %v5697 = vpop.f32.mrf.mxu0
    %5698 = vdwg.mxu0
    %5699 = vmatpush.bf16.msra.mxu0 %v5537
    %5700 = vmatpush.bf16.msra.mxu0 %v5535
    %5701 = vmatpush.bf16.msra.mxu0 %v5533
    %5702 = vmatpush.bf16.msra.mxu0 %v5531
    %5703 = vmatpush.bf16.msra.mxu0 %v5529
    %5704 = vmatpush.bf16.msra.mxu0 %v5527
    %5705 = vmatpush.bf16.msra.mxu0 %v5525
    %5706 = vmatpush.bf16.msra.mxu0 %v5523
    %5707 = vmatmul.bf16.gmra.mxu0 %v5241
    %v5708 = vpop.f32.mrf.mxu0
    %v5709 = vadd.f32 %v5696, %v5708
    %v5710 = vpop.f32.mrf.mxu0
    %5711 = vdwg.mxu0
    %5712 = vmatpush.bf16.msra.mxu0 %v5553
    %5713 = vmatpush.bf16.msra.mxu0 %v5551
    %5714 = vmatpush.bf16.msra.mxu0 %v5549
    %5715 = vmatpush.bf16.msra.mxu0 %v5547
    %5716 = vmatpush.bf16.msra.mxu0 %v5545
    %5717 = vmatpush.bf16.msra.mxu0 %v5543
    %5718 = vmatpush.bf16.msra.mxu0 %v5541
    %5719 = vmatpush.bf16.msra.mxu0 %v5539
    %5720 = vmatmul.bf16.gmra.mxu0 %v5242
    %v5721 = vpop.f32.mrf.mxu0
    %v5722 = vadd.f32 %v5709, %v5721
    %v5723 = vpop.f32.mrf.mxu0
    %5724 = vdwg.mxu0
    %5725 = vmatpush.bf16.msra.mxu0 %v5569
    %5726 = vmatpush.bf16.msra.mxu0 %v5567
    %5727 = vmatpush.bf16.msra.mxu0 %v5565
    %5728 = vmatpush.bf16.msra.mxu0 %v5563
    %5729 = vmatpush.bf16.msra.mxu0 %v5561
    %5730 = vmatpush.bf16.msra.mxu0 %v5559
    %5731 = vmatpush.bf16.msra.mxu0 %v5557
    %5732 = vmatpush.bf16.msra.mxu0 %v5555
    %5733 = vmatmul.bf16.gmra.mxu0 %v5243
    %v5734 = vpop.f32.mrf.mxu0
    %v5735 = vadd.f32 %v5722, %v5734
    %v5736 = vpop.f32.mrf.mxu0
    %5737 = vdwg.mxu0
    %v5738 = vmax.f32 %v5683, 0.0
    %v5739 = vmax.f32 %v5735, 0.0
    %v5740 = vpack.c.bf16 %v5738, %v5738
    %v5741 = vpack.c.bf16 %v5739, %v5739
    %v5742 = vld [vmem:[%s9] sm:$0xf]
    %v5743 = vld [vmem:[%s9 + $0x4] sm:$0xf]
    %v5744 = vld [vmem:[%s9 + $0x8] sm:$0xf]
    %v5745 = vld [vmem:[%s9 + $0xc] sm:$0xf]
    %v5746 = vld [vmem:[%s9 + $0x10] sm:$0xf]
    %v5747 = vld [vmem:[%s9 + $0x14] sm:$0xf]
    %v5748 = vld [vmem:[%s9 + $0x18] sm:$0xf]
    %v5749 = vld [vmem:[%s9 + $0x1c] sm:$0xf]
    %v5750 = vld [vmem:[%s9 + $0x20] sm:$0xf]
    %v5751 = vld [vmem:[%s9 + $0x24] sm:$0xf]
    %v5752 = vld [vmem:[%s9 + $0x28] sm:$0xf]
    %v5753 = vld [vmem:[%s9 + $0x2c] sm:$0xf]
    %v5754 = vld [vmem:[%s9 + $0x30] sm:$0xf]
    %v5755 = vld [vmem:[%s9 + $0x34] sm:$0xf]
    %v5756 = vld [vmem:[%s9 + $0x38] sm:$0xf]
    %v5757 = vld [vmem:[%s9 + $0x3c] sm:$0xf]
    %v5758 = vld [vmem:[%s9 + $0x40] sm:$0xf]
    %v5759 = vld [vmem:[%s9 + $0x44] sm:$0xf]
    %v5760 = vld [vmem:[%s9 + $0x48] sm:$0xf]
    %v5761 = vld [vmem:[%s9 + $0x4c] sm:$0xf]
    %v5762 = vld [vmem:[%s9 + $0x50] sm:$0xf]
    %v5763 = vld [vmem:[%s9 + $0x54] sm:$0xf]
    %v5764 = vld [vmem:[%s9 + $0x58] sm:$0xf]
    %v5765 = vld [vmem:[%s9 + $0x5c] sm:$0xf]
    %v5766 = vld [vmem:[%s9 + $0x60] sm:$0xf]
    %v5767 = vld [vmem:[%s10] sm:$0x1]
    %v5769 = vperm.slane %v5767, 0
    %v5796 = vunpack.c.l.b16 %v5742
    %v5797 = vunpack.c.l.b16 %v5743
    %v5798 = vunpack.c.l.b16 %v5744
    %v5799 = vunpack.c.l.b16 %v5745
    %v5800 = vunpack.c.l.b16 %v5746
    %v5801 = vunpack.c.l.b16 %v5747
    %v5802 = vunpack.c.l.b16 %v5748
    %v5803 = vunpack.c.l.b16 %v5749
    %v5804 = vunpack.c.l.b16 %v5750
    %v5805 = vunpack.c.l.b16 %v5751
    %v5806 = vunpack.c.l.b16 %v5752
    %v5807 = vunpack.c.l.b16 %v5753
    %v5808 = vunpack.c.l.b16 %v5754
    %v5809 = vunpack.c.l.b16 %v5755
    %v5810 = vunpack.c.l.b16 %v5756
    %v5811 = vunpack.c.l.b16 %v5757
    %v5812 = vunpack.c.l.b16 %v5758
    %v5813 = vunpack.c.l.b16 %v5759
    %v5814 = vunpack.c.l.b16 %v5760
    %v5815 = vunpack.c.l.b16 %v5761
    %v5816 = vunpack.c.l.b16 %v5762
    %v5817 = vunpack.c.l.b16 %v5763
    %v5818 = vunpack.c.l.b16 %v5764
    %v5819 = vunpack.c.l.b16 %v5765
    %v5820 = vunpack.c.l.b16 %v5766
    %v5821 = vpack.c.b16 %v5797, %v5796
    %v5822 = vpack.c.b16 %v5799, %v5798
    %v5823 = vpack.c.b16 %v5801, %v5800
    %v5824 = vpack.c.b16 %v5803, %v5802
    %v5825 = vpack.c.b16 %v5805, %v5804
    %v5826 = vpack.c.b16 %v5807, %v5806
    %v5827 = vpack.c.b16 %v5809, %v5808
    %v5828 = vpack.c.b16 %v5811, %v5810
    %v5829 = vpack.c.b16 %v5813, %v5812
    %v5830 = vpack.c.b16 %v5815, %v5814
    %v5831 = vpack.c.b16 %v5817, %v5816
    %v5832 = vpack.c.b16 %v5819, %v5818
    %v5833 = vpack.c.b16 %v5820, %v5820
    %vm5846 = vcmask 588800
    %v5848 = vsel %vm5846, %v5741, 0
    %vm5850 = vcmask 1043456
    %v5852 = vsel %vm5850, %v5833, 0
    %5854 = vmatpush.bf16.msra.mxu0 %v5828
    %5855 = vmatpush.bf16.msra.mxu0 %v5827
    %5856 = vmatpush.bf16.msra.mxu0 %v5826
    %5857 = vmatpush.bf16.msra.mxu0 %v5825
    %5858 = vmatpush.bf16.msra.mxu0 %v5824
    %5859 = vmatpush.bf16.msra.mxu0 %v5823
    %5860 = vmatpush.bf16.msra.mxu0 %v5822
    %5861 = vmatpush.bf16.msra.mxu0 %v5821
    %5862 = vmatmul.bf16.gmra.mxu0 %v5740
    %v5863 = vpop.f32.mrf.mxu0
    %v5864 = vadd.f32 %v5769, %v5863
    %v5865 = vpop.f32.mrf.mxu0
    %5866 = vdwg.mxu0
    %5867 = vmatpush.bf16.msra.mxu0 0
    %5868 = vmatpush.bf16.msra.mxu0 0
    %5869 = vmatpush.bf16.msra.mxu0 0
    %5870 = vmatpush.bf16.msra.mxu0 %v5852
    %5871 = vmatpush.bf16.msra.mxu0 %v5832
    %5872 = vmatpush.bf16.msra.mxu0 %v5831
    %5873 = vmatpush.bf16.msra.mxu0 %v5830
    %5874 = vmatpush.bf16.msra.mxu0 %v5829
    %5875 = vmatmul.bf16.gmra.mxu0 %v5848
    %v5876 = vpop.f32.mrf.mxu0
    %v5877 = vadd.f32 %v5864, %v5876
    %v5878 = vpop.f32.mrf.mxu0
    %5879 = vdwg.mxu0
    %v5880 = vmax.f32 %v5877, 0.0
    %v5881 = vpack.c.bf16 %v5880, %v5880
    %v5882 = vld [vmem:[%s11] sm:$0xf]
    %v5883 = vld [vmem:[%s11 + $0x4] sm:$0xf]
    %v5884 = vld [vmem:[%s11 + $0x8] sm:$0xf]
    %v5885 = vld [vmem:[%s11 + $0xc] sm:$0xf]
    %v5886 = vld [vmem:[%s11 + $0x10] sm:$0xf]
    %v5887 = vld [vmem:[%s11 + $0x14] sm:$0xf]
    %v5888 = vld [vmem:[%s11 + $0x18] sm:$0xf]
    %v5889 = vld [vmem:[%s11 + $0x1c] sm:$0xf]
    %v5890 = vld [vmem:[%s11 + $0x20] sm:$0xf]
    %v5891 = vld [vmem:[%s11 + $0x24] sm:$0xf]
    %v5892 = vld [vmem:[%s11 + $0x28] sm:$0xf]
    %v5893 = vld [vmem:[%s11 + $0x2c] sm:$0xf]
    %v5894 = vld [vmem:[%s11 + $0x30] sm:$0x3]
    %v5895 = vld [vmem:[%s12] sm:$0x1]
    %v5897 = vperm.slane %v5895, 0
    %v5912 = vunpack.c.l.b16 %v5882
    %v5913 = vunpack.c.l.b16 %v5883
    %v5914 = vunpack.c.l.b16 %v5884
    %v5915 = vunpack.c.l.b16 %v5885
    %v5916 = vunpack.c.l.b16 %v5886
    %v5917 = vunpack.c.l.b16 %v5887
    %v5918 = vunpack.c.l.b16 %v5888
    %v5919 = vunpack.c.l.b16 %v5889
    %v5920 = vunpack.c.l.b16 %v5890
    %v5921 = vunpack.c.l.b16 %v5891
    %v5922 = vunpack.c.l.b16 %v5892
    %v5923 = vunpack.c.l.b16 %v5893
    %v5924 = vunpack.c.l.b16 %v5894
    %v5925 = vpack.c.b16 %v5913, %v5912
    %v5926 = vpack.c.b16 %v5915, %v5914
    %v5927 = vpack.c.b16 %v5917, %v5916
    %v5928 = vpack.c.b16 %v5919, %v5918
    %v5929 = vpack.c.b16 %v5921, %v5920
    %v5930 = vpack.c.b16 %v5923, %v5922
    %v5931 = vpack.c.b16 %v5924, %v5924
    %vm5938 = vcmask 818176
    %v5940 = vsel %vm5938, %v5881, 0
    %v5943 = vsel %vm1387, %v5931, 0
    %5945 = vmatpush.bf16.msra.mxu0 0
    %5946 = vmatpush.bf16.msra.mxu0 %v5943
    %5947 = vmatpush.bf16.msra.mxu0 %v5930
    %5948 = vmatpush.bf16.msra.mxu0 %v5929
    %5949 = vmatpush.bf16.msra.mxu0 %v5928
    %5950 = vmatpush.bf16.msra.mxu0 %v5927
    %5951 = vmatpush.bf16.msra.mxu0 %v5926
    %5952 = vmatpush.bf16.msra.mxu0 %v5925
    %5953 = vmatmul.bf16.gmra.mxu0 %v5940
    %v5954 = vpop.f32.mrf.mxu0
    %v5955 = vadd.f32 %v5897, %v5954
    %v5956 = vpop.f32.mrf.mxu0
    %5957 = vdwg.mxu0
    %vm5958 = vcmask 58368
    %5959 = vst.msk [vmem:[%s13] sm:$0x3] %vm5958, %v5955
    // Predicated region
    $region70: #{encoder_forward.1} parent=1 // pred_check
      _
    $region71: #{encoder_forward.1} parent=1 // pred_check_branch
      %5961 = sbr.rel (0) target = $region73
    $region72: #{encoder_forward.1} parent=1 // pred_region
      _
    $region73: #{encoder_forward.1} parent=1 // pred_fallthru
      _
    // Predicated region
    $region74: #{encoder_forward.1} parent=1 // pred_check
      _
    $region75: #{encoder_forward.1} parent=1 // pred_check_branch
      %5963 = sbr.rel (0) target = $region77
    $region76: #{encoder_forward.1} parent=1 // pred_region
      _
    $region77: #{encoder_forward.1} parent=1 // pred_fallthru
      _
    %5964 = vsyncpa [#allocation3], 1
    %5965 = vsyncpa [#allocation5], 1
    %5966 = vsyncpa [#allocation8], 1

</llo_original>
